<compile_context>
chip_gen: v7x
topology: tpu7x:2x2x1
jax: 0.10.0
libtpu: 0.0.40
codegen_flags: <defaults>
</compile_context>

<pallas_src>
import functools
import math

import jax
import jax.numpy as jnp
from jax.experimental import pallas as pl
from jax.experimental.pallas import tpu as pltpu

_MXU_WEIGHT_KEYS = ("wq", "wk", "wv", "wo", "wi", "w2")


# -----------------------------------------------------------------------------
# Kernel: one full BERT layer (self-attention + FFN) for one batch element and
# one query tile of TQ rows.  K/V for the full sequence are cached in VMEM
# scratch across the q-tile loop.
# -----------------------------------------------------------------------------
def _bert_layer_kernel(nh, hd,
                       x_ref, m_ref,
                       wq_ref, bq_ref, wk_ref, bk_ref, wv_ref, bv_ref,
                       wo_ref, bo_ref, g1_ref, be1_ref,
                       wi_ref, bi_ref, w2_ref, b2_ref, g2_ref, be2_ref,
                       out_ref,
                       k_scratch, v_scratch):
    seq, hidden = x_ref.shape
    tq = out_ref.shape[0]
    cdt = x_ref.dtype                       # MXU operand dtype (bf16-ready)
    f32 = jnp.float32
    scale = 1.0 / math.sqrt(hd)

    # ---- K/V projection: once per batch element, cached head-major in VMEM.
    @pl.when(pl.program_id(1) == 0)
    def _project_kv():
        xkv = x_ref[...]                                            # (S, H)
        k = jnp.dot(xkv, wk_ref[...], preferred_element_type=f32)
        k = k + bk_ref[...].astype(f32)
        v = jnp.dot(xkv, wv_ref[...], preferred_element_type=f32)
        v = v + bv_ref[...].astype(f32)
        # Cast to the compute dtype BEFORE the relayout (halves moved bytes in
        # bf16); head-major layout means no per-q-tile K/V transpose later.
        k_scratch[...] = jnp.transpose(k.astype(cdt).reshape(seq, nh, hd),
                                       (1, 0, 2))                   # (nh, S, hd)
        v_scratch[...] = jnp.transpose(v.astype(cdt).reshape(seq, nh, hd),
                                       (1, 0, 2))

    qi = pl.program_id(1)
    row0 = pl.multiple_of(qi * tq, tq)
    xq = x_ref[pl.ds(row0, tq), :]                                  # (TQ, H)
    mask = m_ref[...].astype(f32)                                   # (1, S)

    # ---- Q projection for this tile; 1/sqrt(hd) folded into q once.
    q = jnp.dot(xq, wq_ref[...], preferred_element_type=f32)
    q = (q + bq_ref[...].astype(f32)) * scale
    qh = jnp.transpose(q.astype(cdt).reshape(tq, nh, hd), (1, 0, 2))  # (nh,TQ,hd)

    # ---- Attention scores + softmax (f32 statistics).  'hqd,hkd->hqk'
    s = jax.lax.dot_general(qh, k_scratch[...],
                            (((2,), (2,)), ((0,), (0,))),
                            preferred_element_type=f32)             # (nh, TQ, S)
    s = s + mask                                                    # key-axis mask
    s = s - jnp.max(s, axis=-1, keepdims=True)
    p = jnp.exp(s)
    p = p * pl.reciprocal(jnp.sum(p, axis=-1, keepdims=True), approx=True)

    # ---- Context: 'hqk,hkd->hqd'
    ctx = jax.lax.dot_general(p.astype(cdt), v_scratch[...],
                              (((2,), (1,)), ((0,), (0,))),
                              preferred_element_type=f32)           # (nh, TQ, hd)

    # ---- Output projection fused with the head merge: per-head batched
    # matmul against Wo reshaped (nh, hd, H), then a cheap sum over heads —
    # no XLU transpose / lane-splitting reshape of ctx.
    wo3 = wo_ref[...].reshape(nh, hd, hidden)                       # (nh, hd, H)
    attn_h = jax.lax.dot_general(ctx.astype(cdt), wo3,
                                 (((2,), (1,)), ((0,), (0,))),
                                 preferred_element_type=f32)        # (nh, TQ, H)
    attn = attn_h[0]
    for h in range(1, nh):                                          # static unroll
        attn = attn + attn_h[h]
    attn = attn + bo_ref[...].astype(f32)

    def layernorm(z, g_ref, b_ref):
        u = jnp.mean(z, axis=-1, keepdims=True)
        var = jnp.mean(jnp.square(z - u), axis=-1, keepdims=True)
        zn = (z - u) * jax.lax.rsqrt(var + 1e-12)
        return g_ref[...].astype(f32) * zn + b_ref[...].astype(f32)

    # Attention output + residual + LayerNorm (f32).
    y = layernorm(attn + xq.astype(f32), g1_ref, be1_ref)           # (TQ, H)

    # FFN: intermediate dense + erf GELU (matches the PyTorch reference).
    inter = jnp.dot(y.astype(cdt), wi_ref[...], preferred_element_type=f32)
    inter = inter + bi_ref[...].astype(f32)
    inter = inter * 0.5 * (1.0 + jax.lax.erf(inter * (1.0 / math.sqrt(2.0))))

    # Output dense + residual + LayerNorm.
    o = jnp.dot(inter.astype(cdt), w2_ref[...], preferred_element_type=f32)
    o = o + b2_ref[...].astype(f32)
    o = layernorm(o + y, g2_ref, be2_ref)

    out_ref[...] = o.astype(out_ref.dtype)


# -----------------------------------------------------------------------------
# VMEM sizing / tile selection (chip-aware via get_tpu_info).
# -----------------------------------------------------------------------------
def _vmem_capacity_bytes():
    try:
        return int(pltpu.get_tpu_info().vmem_capacity_bytes)
    except Exception:
        return 64 << 20        # conservative: v7x per-TensorCore VMEM


def _vmem_bytes_estimate(S, H, I, nh, tq, act_bytes, w_bytes,
                         double_buffer_params):
    f32 = 4
    mult = 2 if double_buffer_params else 1
    params = mult * ((4 * H * H + 2 * H * I) * w_bytes
                     + (6 * H + I + 4 * H) * f32)          # weights + biases/LN
    io = 2 * S * H * act_bytes + 2 * S * f32 + 2 * tq * H * act_bytes
    scratch = 2 * S * H * act_bytes                        # K/V cache
    tmp_f32 = (2 * S * H            # K/V projection (q == 0 step)
               + 3 * tq * H         # q / attn / y
               + 2 * nh * tq * S    # scores + probs
               + tq * H             # ctx
               + nh * tq * H        # per-head Wo products before head sum
               + 2 * tq * I)        # intermediate + GELU temp
    tmp_cdt = nh * tq * S + tq * H + 2 * tq * I + S * H    # casts / relayouts
    return params + io + scratch + tmp_f32 * f32 + tmp_cdt * act_bytes


def _choose_q_tile(S, H, I, nh, act_bytes, w_bytes, vmem_cap,
                   double_buffer_params):
    cands = [c for c in (256, 128, 64, 32, 16, 8) if c <= S and S % c == 0]
    if not cands:
        return S                                           # full-dim block
    for tq in cands:                                       # largest that fits
        if _vmem_bytes_estimate(S, H, I, nh, tq, act_bytes, w_bytes,
                                double_buffer_params) <= int(0.8 * vmem_cap):
            return tq
    return cands[-1]


# -----------------------------------------------------------------------------
# Wrapper: one BERT layer via pallas_call, grid over (batch, query tiles).
# -----------------------------------------------------------------------------
def bert_layer_pallas(hidden, mask3d, params, num_heads):
    B, S, H = hidden.shape
    I = params["wi"].shape[1]
    assert H % num_heads == 0
    hd = H // num_heads
    act_bytes = hidden.dtype.itemsize
    w_bytes = params["wq"].dtype.itemsize

    vmem_cap = _vmem_capacity_bytes()
    can_single_buffer = hasattr(pl, "Buffered")
    tq = _choose_q_tile(S, H, I, num_heads, act_bytes, w_bytes, vmem_cap,
                        double_buffer_params=not can_single_buffer)
    nq = S // tq

    est = _vmem_bytes_estimate(S, H, I, num_heads, tq, act_bytes, w_bytes,
                               double_buffer_params=not can_single_buffer)
    vmem_limit = int(min(max(1.15 * est + (4 << 20), 32 << 20),
                         0.9 * vmem_cap))

    kernel = functools.partial(_bert_layer_kernel, num_heads, hd)
    args = (hidden, mask3d,
            params["wq"], params["bq"], params["wk"], params["bk"],
            params["wv"], params["bv"], params["wo"], params["bo"],
            params["g1"], params["be1"], params["wi"], params["bi"],
            params["w2"], params["b2"], params["g2"], params["be2"])

    def build(param_mode):
        def rep(shape):
            idx = lambda b, q: (0,) * len(shape)
            if param_mode is None:
                return pl.BlockSpec(shape, idx)
            return pl.BlockSpec(shape, idx, pipeline_mode=param_mode)

        in_specs = [
            # Full sequence, resident per batch element (index constant over q);
            # query rows + residual are sliced from it inside the kernel, so no
            # separate per-tile hq stream.  Kept double-buffered (small) so the
            # next batch element's sequence DMA overlaps the last q tile.
            pl.BlockSpec((None, S, H), lambda b, q: (b, 0, 0)),
            pl.BlockSpec((None, 1, S), lambda b, q: (b, 0, 0)),  # additive key mask
            rep((H, H)), rep((1, H)),                            # wq, bq
            rep((H, H)), rep((1, H)),                            # wk, bk
            rep((H, H)), rep((1, H)),                            # wv, bv
            rep((H, H)), rep((1, H)),                            # wo, bo
            rep((1, H)), rep((1, H)),                            # gamma1, beta1
            rep((H, I)), rep((1, I)),                            # wi, bi
            rep((I, H)), rep((1, H)),                            # w2, b2
            rep((1, H)), rep((1, H)),                            # gamma2, beta2
        ]
        return pl.pallas_call(
            kernel,
            out_shape=jax.ShapeDtypeStruct((B, S, H), hidden.dtype),
            grid=(B, nq),
            in_specs=in_specs,
            out_specs=pl.BlockSpec((None, tq, H), lambda b, q: (b, q, 0)),
            scratch_shapes=[pltpu.VMEM((num_heads, S, hd), hidden.dtype),
                            pltpu.VMEM((num_heads, S, hd), hidden.dtype)],
            compiler_params=pltpu.CompilerParams(
                # K/V are cached in scratch across q tiles -> q axis must be
                # "arbitrary"; batch is the megacore-parallel axis.
                dimension_semantics=("parallel", "arbitrary"),
                vmem_limit_bytes=vmem_limit),
        )

    if can_single_buffer:
        try:
            # Constant-index parameter blocks gain nothing from double
            # buffering; Buffered(1) halves their VMEM footprint (key on v7x).
            return build(pl.Buffered(1))(*args)
        except Exception:
            pass   # fall back to default double buffering below
    return build(None)(*args)


def bert_encoder_pallas(hidden, attention_mask, layer_params, num_heads,
                        compute_dtype=None):
    """Mirrors BERTEncoder.forward: returns the list of per-layer outputs."""
    B, S, H = hidden.shape
    mask3d = attention_mask.reshape(B, 1, S).astype(jnp.float32)
    if compute_dtype is not None:
        hidden = hidden.astype(compute_dtype)
        # Hoisted once (outside the per-layer loop): convert the MXU-facing
        # weight matrices to the compute dtype (bf16).  Biases / LayerNorm
        # params stay f32 (they feed the f32 accumulation path).
        layer_params = [
            {k: (v.astype(compute_dtype) if k in _MXU_WEIGHT_KEYS else v)
             for k, v in p.items()}
            for p in layer_params
        ]
    all_encoder_layers = []
    for p in layer_params:
        hidden = bert_layer_pallas(hidden, mask3d, p, num_heads)
        all_encoder_layers.append(hidden)
    return all_encoder_layers


# -----------------------------------------------------------------------------
# Deterministic parameter initialization (nn.Linear-style uniform bounds).
# -----------------------------------------------------------------------------
def _linear_init(key, fan_in, fan_out):
    kw, kb = jax.random.split(key)
    bound = 1.0 / math.sqrt(fan_in)
    w = jax.random.uniform(kw, (fan_in, fan_out), jnp.float32, -bound, bound)
    b = jax.random.uniform(kb, (1, fan_out), jnp.float32, -bound, bound)
    return w, b


def init_layer_params(key, hidden_size, intermediate_size):
    keys = jax.random.split(key, 6)
    wq, bq = _linear_init(keys[0], hidden_size, hidden_size)
    wk, bk = _linear_init(keys[1], hidden_size, hidden_size)
    wv, bv = _linear_init(keys[2], hidden_size, hidden_size)
    wo, bo = _linear_init(keys[3], hidden_size, hidden_size)
    wi, bi = _linear_init(keys[4], hidden_size, intermediate_size)
    w2, b2 = _linear_init(keys[5], intermediate_size, hidden_size)
    return dict(
        wq=wq, bq=bq, wk=wk, bk=bk, wv=wv, bv=bv, wo=wo, bo=bo,
        g1=jnp.ones((1, hidden_size), jnp.float32),
        be1=jnp.zeros((1, hidden_size), jnp.float32),
        wi=wi, bi=bi, w2=w2, b2=b2,
        g2=jnp.ones((1, hidden_size), jnp.float32),
        be2=jnp.zeros((1, hidden_size), jnp.float32),
    )


# -----------------------------------------------------------------------------
# Pure-JAX reference of the PyTorch module (for validation only).
# -----------------------------------------------------------------------------
def _bert_layer_ref(hidden, mask2d, p, num_heads):
    B, S, H = hidden.shape
    hd = H // num_heads
    x = hidden.astype(jnp.float32)

    def lin(z, w, b):
        return z @ w.astype(jnp.float32) + b.astype(jnp.float32).reshape(-1)

    def split(z):
        return z.reshape(B, S, num_heads, hd).transpose(0, 2, 1, 3)

    q, k, v = split(lin(x, p["wq"], p["bq"])), split(lin(x, p["wk"], p["bk"])), \
        split(lin(x, p["wv"], p["bv"]))
    s = jnp.einsum("bhqd,bhkd->bhqk", q, k) / math.sqrt(hd)
    s = s + mask2d.astype(jnp.float32).reshape(B, 1, 1, S)
    pr = jax.nn.softmax(s, axis=-1)
    ctx = jnp.einsum("bhqk,bhkd->bhqd", pr, v).transpose(0, 2, 1, 3).reshape(B, S, H)

    def ln(z, g, b):
        u = z.mean(-1, keepdims=True)
        var = ((z - u) ** 2).mean(-1, keepdims=True)
        return g.reshape(-1) * (z - u) / jnp.sqrt(var + 1e-12) + b.reshape(-1)

    attn = ln(lin(ctx, p["wo"], p["bo"]) + x, p["g1"], p["be1"])
    inter = lin(attn, p["wi"], p["bi"])
    inter = inter * 0.5 * (1.0 + jax.lax.erf(inter / math.sqrt(2.0)))
    return ln(lin(inter, p["w2"], p["b2"]) + attn, p["g2"], p["be2"])


if __name__ == "__main__":
    # Small config: batch=2, seq=8, hidden=32, heads=4, intermediate=64, layers=2
    B, S, H = 2, 8, 32
    NUM_HEADS = 4
    INTERMEDIATE = 64
    NUM_LAYERS = 2

    root = jax.random.PRNGKey(0)
    k_in, k_layers = jax.random.split(root)

    hidden_states = jax.random.normal(k_in, (B, S, H), jnp.float32)

    # Additive key mask: 0 = attend, -10000 = masked (last 2 keys of batch 1).
    mask2d = jnp.zeros((B, S), jnp.float32).at[1, S - 2:].set(-10000.0)

    layer_keys = jax.random.split(k_layers, NUM_LAYERS)
    layer_params = [init_layer_params(k, H, INTERMEDIATE) for k in layer_keys]

    # f32 run, validated against the pure-JAX reference of the PyTorch module.
    outs = bert_encoder_pallas(hidden_states, mask2d, layer_params, NUM_HEADS)
    for o in outs:
        jax.block_until_ready(o)
    assert len(outs) == NUM_LAYERS
    ref = hidden_states
    for p, o in zip(layer_params, outs):
        ref = _bert_layer_ref(ref, mask2d, p, NUM_HEADS)
        assert o.shape == (B, S, H)
        err = float(jnp.max(jnp.abs(o.astype(jnp.float32) - ref)))
        assert err < 5e-2, f"mismatch vs reference: {err}"

    # bf16 run (recommended production path): weights converted once, outside
    # the per-layer loop; f32 accumulation / statistics inside the kernel.
    outs_bf16 = bert_encoder_pallas(hidden_states, mask2d, layer_params,
                                    NUM_HEADS, compute_dtype=jnp.bfloat16)
    for o in outs_bf16:
        jax.block_until_ready(o)
    assert all(bool(jnp.all(jnp.isfinite(o.astype(jnp.float32))))
               for o in outs_bf16)

    print("KERNEL_OK")
</pallas_src>

<mosaic_0001>
module attributes {stable_mosaic.version = 11 : i64} {
  func.func @_bert_layer_kernel(%arg0: i32, %arg1: i32, %arg2: memref<1x8x32xf32, #tpu.memory_space<vmem>>, %arg3: memref<1x1x8xf32, #tpu.memory_space<vmem>>, %arg4: memref<32x32xf32, #tpu.memory_space<vmem>>, %arg5: memref<1x32xf32, #tpu.memory_space<vmem>>, %arg6: memref<32x32xf32, #tpu.memory_space<vmem>>, %arg7: memref<1x32xf32, #tpu.memory_space<vmem>>, %arg8: memref<32x32xf32, #tpu.memory_space<vmem>>, %arg9: memref<1x32xf32, #tpu.memory_space<vmem>>, %arg10: memref<32x32xf32, #tpu.memory_space<vmem>>, %arg11: memref<1x32xf32, #tpu.memory_space<vmem>>, %arg12: memref<1x32xf32, #tpu.memory_space<vmem>>, %arg13: memref<1x32xf32, #tpu.memory_space<vmem>>, %arg14: memref<32x64xf32, #tpu.memory_space<vmem>>, %arg15: memref<1x64xf32, #tpu.memory_space<vmem>>, %arg16: memref<64x32xf32, #tpu.memory_space<vmem>>, %arg17: memref<1x32xf32, #tpu.memory_space<vmem>>, %arg18: memref<1x32xf32, #tpu.memory_space<vmem>>, %arg19: memref<1x32xf32, #tpu.memory_space<vmem>>, %arg20: memref<1x8x32xf32, #tpu.memory_space<vmem>>, %arg21: memref<4x8x8xf32, #tpu.memory_space<vmem>>, %arg22: memref<4x8x8xf32, #tpu.memory_space<vmem>>) attributes {dimension_semantics = [#tpu.dimension_semantics<parallel>, #tpu.dimension_semantics<arbitrary>], iteration_bounds = array<i64: 2, 1>, scalar_prefetch = 0 : i64, scratch_operands = 2 : i64, tpu.core_type = #tpu.core_type<tc>, window_params = [{transform_indices = @transform_0, window_bounds = array<i64: 1, 8, 32>}, {transform_indices = @transform_1, window_bounds = array<i64: 1, 1, 8>}, {pipeline_mode = #tpu.pipeline_mode<synchronous>, transform_indices = @transform_2, window_bounds = array<i64: 32, 32>}, {pipeline_mode = #tpu.pipeline_mode<synchronous>, transform_indices = @transform_3, window_bounds = array<i64: 1, 32>}, {pipeline_mode = #tpu.pipeline_mode<synchronous>, transform_indices = @transform_4, window_bounds = array<i64: 32, 32>}, {pipeline_mode = #tpu.pipeline_mode<synchronous>, transform_indices = @transform_5, window_bounds = array<i64: 1, 32>}, {pipeline_mode = #tpu.pipeline_mode<synchronous>, transform_indices = @transform_6, window_bounds = array<i64: 32, 32>}, {pipeline_mode = #tpu.pipeline_mode<synchronous>, transform_indices = @transform_7, window_bounds = array<i64: 1, 32>}, {pipeline_mode = #tpu.pipeline_mode<synchronous>, transform_indices = @transform_8, window_bounds = array<i64: 32, 32>}, {pipeline_mode = #tpu.pipeline_mode<synchronous>, transform_indices = @transform_9, window_bounds = array<i64: 1, 32>}, {pipeline_mode = #tpu.pipeline_mode<synchronous>, transform_indices = @transform_10, window_bounds = array<i64: 1, 32>}, {pipeline_mode = #tpu.pipeline_mode<synchronous>, transform_indices = @transform_11, window_bounds = array<i64: 1, 32>}, {pipeline_mode = #tpu.pipeline_mode<synchronous>, transform_indices = @transform_12, window_bounds = array<i64: 32, 64>}, {pipeline_mode = #tpu.pipeline_mode<synchronous>, transform_indices = @transform_13, window_bounds = array<i64: 1, 64>}, {pipeline_mode = #tpu.pipeline_mode<synchronous>, transform_indices = @transform_14, window_bounds = array<i64: 64, 32>}, {pipeline_mode = #tpu.pipeline_mode<synchronous>, transform_indices = @transform_15, window_bounds = array<i64: 1, 32>}, {pipeline_mode = #tpu.pipeline_mode<synchronous>, transform_indices = @transform_16, window_bounds = array<i64: 1, 32>}, {pipeline_mode = #tpu.pipeline_mode<synchronous>, transform_indices = @transform_17, window_bounds = array<i64: 1, 32>}, {transform_indices = @transform_18, window_bounds = array<i64: 1, 8, 32>}]} {
    %c0_i32 = arith.constant 0 : i32
    %0 = arith.cmpi eq, %arg1, %c0_i32 : i32
    %1 = arith.extui %0 : i1 to i32
    %c0_i32_0 = arith.constant 0 : i32
    %2 = arith.cmpi ne, %1, %c0_i32_0 : i32
    scf.if %2 {
      %c0_59 = arith.constant 0 : index
      %c0_60 = arith.constant 0 : index
      %c0_61 = arith.constant 0 : index
      %124 = vector.load %arg2[%c0_59, %c0_60, %c0_61] : memref<1x8x32xf32, #tpu.memory_space<vmem>>, vector<1x8x32xf32>
      %125 = vector.shape_cast %124 : vector<1x8x32xf32> to vector<8x32xf32>
      %c0_62 = arith.constant 0 : index
      %c0_63 = arith.constant 0 : index
      %126 = vector.load %arg6[%c0_62, %c0_63] : memref<32x32xf32, #tpu.memory_space<vmem>>, vector<32x32xf32>
      %cst_64 = arith.constant dense<0.000000e+00> : vector<8x32xf32>
      %127 = tpu.matmul %125, %126, %cst_64 {dimension_numbers = #tpu.dot_dimension_numbers<[1], [0], [0], [1], [0, 0, 1, 1], [], []>} : vector<8x32xf32>, vector<32x32xf32>, vector<8x32xf32> -> vector<8x32xf32>
      %c0_65 = arith.constant 0 : index
      %c0_66 = arith.constant 0 : index
      %128 = vector.load %arg7[%c0_65, %c0_66] : memref<1x32xf32, #tpu.memory_space<vmem>>, vector<1x32xf32>
      %129 = vector.broadcast %128 : vector<1x32xf32> to vector<8x32xf32>
      %130 = arith.addf %127, %129 : vector<8x32xf32>
      %c0_67 = arith.constant 0 : index
      %c0_68 = arith.constant 0 : index
      %131 = vector.load %arg8[%c0_67, %c0_68] : memref<32x32xf32, #tpu.memory_space<vmem>>, vector<32x32xf32>
      %cst_69 = arith.constant dense<0.000000e+00> : vector<8x32xf32>
      %132 = tpu.matmul %125, %131, %cst_69 {dimension_numbers = #tpu.dot_dimension_numbers<[1], [0], [0], [1], [0, 0, 1, 1], [], []>} : vector<8x32xf32>, vector<32x32xf32>, vector<8x32xf32> -> vector<8x32xf32>
      %c0_70 = arith.constant 0 : index
      %c0_71 = arith.constant 0 : index
      %133 = vector.load %arg9[%c0_70, %c0_71] : memref<1x32xf32, #tpu.memory_space<vmem>>, vector<1x32xf32>
      %134 = vector.broadcast %133 : vector<1x32xf32> to vector<8x32xf32>
      %135 = arith.addf %132, %134 : vector<8x32xf32>
      %136 = vector.shape_cast %130 : vector<8x32xf32> to vector<8x4x8xf32>
      %137 = tpu.transpose %136, [1, 0, 2] : vector<8x4x8xf32> -> vector<4x8x8xf32>
      %c0_72 = arith.constant 0 : index
      %c0_73 = arith.constant 0 : index
      %c0_74 = arith.constant 0 : index
      %138 = vector.load %arg21[%c0_72, %c0_73, %c0_74] : memref<4x8x8xf32, #tpu.memory_space<vmem>>, vector<4x8x8xf32>
      tpu.vector_store %arg21[%c0_72, %c0_73, %c0_74], %137 {strides = array<i32>} : memref<4x8x8xf32, #tpu.memory_space<vmem>>, vector<4x8x8xf32>,
      %139 = vector.shape_cast %135 : vector<8x32xf32> to vector<8x4x8xf32>
      %140 = tpu.transpose %139, [1, 0, 2] : vector<8x4x8xf32> -> vector<4x8x8xf32>
      %c0_75 = arith.constant 0 : index
      %c0_76 = arith.constant 0 : index
      %c0_77 = arith.constant 0 : index
      %141 = vector.load %arg22[%c0_75, %c0_76, %c0_77] : memref<4x8x8xf32, #tpu.memory_space<vmem>>, vector<4x8x8xf32>
      tpu.vector_store %arg22[%c0_75, %c0_76, %c0_77], %140 {strides = array<i32>} : memref<4x8x8xf32, #tpu.memory_space<vmem>>, vector<4x8x8xf32>,
    } else {
    }
    %c8_i32 = arith.constant 8 : i32
    %3 = arith.muli %arg1, %c8_i32 : i32
    %4 = tpu.assume_multiple %3, 8 : i32
    %c0 = arith.constant 0 : index
    %5 = arith.index_cast %4 : i32 to index
    %c0_1 = arith.constant 0 : index
    %6 = vector.load %arg2[%c0, %5, %c0_1] : memref<1x8x32xf32, #tpu.memory_space<vmem>>, vector<1x8x32xf32>
    %7 = vector.shape_cast %6 : vector<1x8x32xf32> to vector<8x32xf32>
    %c0_2 = arith.constant 0 : index
    %c0_3 = arith.constant 0 : index
    %c0_4 = arith.constant 0 : index
    %8 = vector.load %arg3[%c0_2, %c0_3, %c0_4] : memref<1x1x8xf32, #tpu.memory_space<vmem>>, vector<1x1x8xf32>
    %9 = vector.shape_cast %8 : vector<1x1x8xf32> to vector<1x8xf32>
    %c0_5 = arith.constant 0 : index
    %c0_6 = arith.constant 0 : index
    %10 = vector.load %arg4[%c0_5, %c0_6] : memref<32x32xf32, #tpu.memory_space<vmem>>, vector<32x32xf32>
    %cst = arith.constant dense<0.000000e+00> : vector<8x32xf32>
    %11 = tpu.matmul %7, %10, %cst {dimension_numbers = #tpu.dot_dimension_numbers<[1], [0], [0], [1], [0, 0, 1, 1], [], []>} : vector<8x32xf32>, vector<32x32xf32>, vector<8x32xf32> -> vector<8x32xf32>
    %c0_7 = arith.constant 0 : index
    %c0_8 = arith.constant 0 : index
    %12 = vector.load %arg5[%c0_7, %c0_8] : memref<1x32xf32, #tpu.memory_space<vmem>>, vector<1x32xf32>
    %13 = vector.broadcast %12 : vector<1x32xf32> to vector<8x32xf32>
    %14 = arith.addf %11, %13 : vector<8x32xf32>
    %cst_9 = arith.constant 0.353553385 : f32
    %15 = vector.broadcast %cst_9 : f32 to vector<8x32xf32>
    %16 = arith.mulf %14, %15 : vector<8x32xf32>
    %17 = vector.shape_cast %16 : vector<8x32xf32> to vector<8x4x8xf32>
    %18 = tpu.transpose %17, [1, 0, 2] : vector<8x4x8xf32> -> vector<4x8x8xf32>
    %c0_10 = arith.constant 0 : index
    %c0_11 = arith.constant 0 : index
    %c0_12 = arith.constant 0 : index
    %19 = vector.load %arg21[%c0_10, %c0_11, %c0_12] : memref<4x8x8xf32, #tpu.memory_space<vmem>>, vector<4x8x8xf32>
    %cst_13 = arith.constant dense<0.000000e+00> : vector<4x8x8xf32>
    %20 = tpu.matmul %18, %19, %cst_13 {dimension_numbers = #tpu.dot_dimension_numbers<[2], [2], [1], [1], [0, 0, 0, 1, 1, 1], [0], [0]>} : vector<4x8x8xf32>, vector<4x8x8xf32>, vector<4x8x8xf32> -> vector<4x8x8xf32>
    %21 = vector.shape_cast %9 : vector<1x8xf32> to vector<1x1x8xf32>
    %22 = vector.broadcast %21 : vector<1x1x8xf32> to vector<4x8x8xf32>
    %23 = arith.addf %20, %22 : vector<4x8x8xf32>
    %cst_14 = arith.constant dense<0xFF800000> : vector<4x8xf32>
    %24 = vector.multi_reduction <maximumf>, %23, %cst_14 [2] : vector<4x8x8xf32> to vector<4x8xf32>
    %25 = vector.shape_cast %24 : vector<4x8xf32> to vector<4x8x1xf32>
    %26 = vector.broadcast %25 : vector<4x8x1xf32> to vector<4x8x8xf32>
    %27 = arith.subf %23, %26 : vector<4x8x8xf32>
    %28 = math.exp %27 : vector<4x8x8xf32>
    %cst_15 = arith.constant dense<0.000000e+00> : vector<4x8xf32>
    %29 = vector.multi_reduction <add>, %28, %cst_15 [2] : vector<4x8x8xf32> to vector<4x8xf32>
    %30 = vector.shape_cast %29 : vector<4x8xf32> to vector<4x8x1xf32>
    %31 = tpu.reciprocal %30 {approx = true} : vector<4x8x1xf32> -> vector<4x8x1xf32>
    %32 = vector.broadcast %31 : vector<4x8x1xf32> to vector<4x8x8xf32>
    %33 = arith.mulf %28, %32 : vector<4x8x8xf32>
    %c0_16 = arith.constant 0 : index
    %c0_17 = arith.constant 0 : index
    %c0_18 = arith.constant 0 : index
    %34 = vector.load %arg22[%c0_16, %c0_17, %c0_18] : memref<4x8x8xf32, #tpu.memory_space<vmem>>, vector<4x8x8xf32>
    %cst_19 = arith.constant dense<0.000000e+00> : vector<4x8x8xf32>
    %35 = tpu.matmul %33, %34, %cst_19 {dimension_numbers = #tpu.dot_dimension_numbers<[2], [1], [1], [2], [0, 0, 0, 1, 1, 2], [0], [0]>} : vector<4x8x8xf32>, vector<4x8x8xf32>, vector<4x8x8xf32> -> vector<4x8x8xf32>
    %c0_20 = arith.constant 0 : index
    %c0_21 = arith.constant 0 : index
    %36 = vector.load %arg10[%c0_20, %c0_21] : memref<32x32xf32, #tpu.memory_space<vmem>>, vector<32x32xf32>
    %37 = vector.shape_cast %36 : vector<32x32xf32> to vector<4x8x32xf32>
    %cst_22 = arith.constant dense<0.000000e+00> : vector<4x8x32xf32>
    %38 = tpu.matmul %35, %37, %cst_22 {dimension_numbers = #tpu.dot_dimension_numbers<[2], [1], [1], [2], [0, 0, 0, 1, 1, 2], [0], [0]>} : vector<4x8x8xf32>, vector<4x8x32xf32>, vector<4x8x32xf32> -> vector<4x8x32xf32>
    %39 = vector.extract_strided_slice %38 {offsets = [0, 0, 0], sizes = [1, 8, 32], strides = [1, 1, 1]} : vector<4x8x32xf32> to vector<1x8x32xf32>
    %40 = vector.shape_cast %39 : vector<1x8x32xf32> to vector<8x32xf32>
    %41 = vector.extract_strided_slice %38 {offsets = [1, 0, 0], sizes = [1, 8, 32], strides = [1, 1, 1]} : vector<4x8x32xf32> to vector<1x8x32xf32>
    %42 = vector.shape_cast %41 : vector<1x8x32xf32> to vector<8x32xf32>
    %43 = arith.addf %40, %42 : vector<8x32xf32>
    %44 = vector.extract_strided_slice %38 {offsets = [2, 0, 0], sizes = [1, 8, 32], strides = [1, 1, 1]} : vector<4x8x32xf32> to vector<1x8x32xf32>
    %45 = vector.shape_cast %44 : vector<1x8x32xf32> to vector<8x32xf32>
    %46 = arith.addf %43, %45 : vector<8x32xf32>
    %47 = vector.extract_strided_slice %38 {offsets = [3, 0, 0], sizes = [1, 8, 32], strides = [1, 1, 1]} : vector<4x8x32xf32> to vector<1x8x32xf32>
    %48 = vector.shape_cast %47 : vector<1x8x32xf32> to vector<8x32xf32>
    %49 = arith.addf %46, %48 : vector<8x32xf32>
    %c0_23 = arith.constant 0 : index
    %c0_24 = arith.constant 0 : index
    %50 = vector.load %arg11[%c0_23, %c0_24] : memref<1x32xf32, #tpu.memory_space<vmem>>, vector<1x32xf32>
    %51 = vector.broadcast %50 : vector<1x32xf32> to vector<8x32xf32>
    %52 = arith.addf %49, %51 : vector<8x32xf32>
    %53 = arith.addf %52, %7 : vector<8x32xf32>
    %cst_25 = arith.constant dense<0.000000e+00> : vector<8xf32>
    %54 = vector.multi_reduction <add>, %53, %cst_25 [1] : vector<8x32xf32> to vector<8xf32>
    %55 = vector.shape_cast %54 : vector<8xf32> to vector<8x1xf32>
    %cst_26 = arith.constant 3.200000e+01 : f32
    %56 = vector.broadcast %cst_26 : f32 to vector<8x1xf32>
    %57 = arith.divf %55, %56 : vector<8x1xf32>
    %58 = vector.broadcast %57 : vector<8x1xf32> to vector<8x32xf32>
    %59 = arith.subf %53, %58 : vector<8x32xf32>
    %60 = arith.mulf %59, %59 : vector<8x32xf32>
    %cst_27 = arith.constant dense<0.000000e+00> : vector<8xf32>
    %61 = vector.multi_reduction <add>, %60, %cst_27 [1] : vector<8x32xf32> to vector<8xf32>
    %62 = vector.shape_cast %61 : vector<8xf32> to vector<8x1xf32>
    %cst_28 = arith.constant 3.200000e+01 : f32
    %63 = vector.broadcast %cst_28 : f32 to vector<8x1xf32>
    %64 = arith.divf %62, %63 : vector<8x1xf32>
    %65 = vector.broadcast %57 : vector<8x1xf32> to vector<8x32xf32>
    %66 = arith.subf %53, %65 : vector<8x32xf32>
    %cst_29 = arith.constant 9.99999996E-13 : f32
    %67 = vector.broadcast %cst_29 : f32 to vector<8x1xf32>
    %68 = arith.addf %64, %67 : vector<8x1xf32>
    %69 = math.rsqrt %68 : vector<8x1xf32>
    %70 = vector.broadcast %69 : vector<8x1xf32> to vector<8x32xf32>
    %71 = arith.mulf %66, %70 : vector<8x32xf32>
    %c0_30 = arith.constant 0 : index
    %c0_31 = arith.constant 0 : index
    %72 = vector.load %arg12[%c0_30, %c0_31] : memref<1x32xf32, #tpu.memory_space<vmem>>, vector<1x32xf32>
    %73 = vector.broadcast %72 : vector<1x32xf32> to vector<8x32xf32>
    %74 = arith.mulf %73, %71 : vector<8x32xf32>
    %c0_32 = arith.constant 0 : index
    %c0_33 = arith.constant 0 : index
    %75 = vector.load %arg13[%c0_32, %c0_33] : memref<1x32xf32, #tpu.memory_space<vmem>>, vector<1x32xf32>
    %76 = vector.broadcast %75 : vector<1x32xf32> to vector<8x32xf32>
    %77 = arith.addf %74, %76 : vector<8x32xf32>
    %c0_34 = arith.constant 0 : index
    %c0_35 = arith.constant 0 : index
    %78 = vector.load %arg14[%c0_34, %c0_35] : memref<32x64xf32, #tpu.memory_space<vmem>>, vector<32x64xf32>
    %cst_36 = arith.constant dense<0.000000e+00> : vector<8x64xf32>
    %79 = tpu.matmul %77, %78, %cst_36 {dimension_numbers = #tpu.dot_dimension_numbers<[1], [0], [0], [1], [0, 0, 1, 1], [], []>} : vector<8x32xf32>, vector<32x64xf32>, vector<8x64xf32> -> vector<8x64xf32>
    %c0_37 = arith.constant 0 : index
    %c0_38 = arith.constant 0 : index
    %80 = vector.load %arg15[%c0_37, %c0_38] : memref<1x64xf32, #tpu.memory_space<vmem>>, vector<1x64xf32>
    %81 = vector.broadcast %80 : vector<1x64xf32> to vector<8x64xf32>
    %82 = arith.addf %79, %81 : vector<8x64xf32>
    %cst_39 = arith.constant 5.000000e-01 : f32
    %83 = vector.broadcast %cst_39 : f32 to vector<8x64xf32>
    %84 = arith.mulf %82, %83 : vector<8x64xf32>
    %cst_40 = arith.constant 0.707106769 : f32
    %85 = vector.broadcast %cst_40 : f32 to vector<8x64xf32>
    %86 = arith.mulf %82, %85 : vector<8x64xf32>
    %87 = math.erf %86 : vector<8x64xf32>
    %cst_41 = arith.constant 1.000000e+00 : f32
    %88 = vector.broadcast %cst_41 : f32 to vector<8x64xf32>
    %89 = arith.addf %88, %87 : vector<8x64xf32>
    %90 = arith.mulf %84, %89 : vector<8x64xf32>
    %c0_42 = arith.constant 0 : index
    %c0_43 = arith.constant 0 : index
    %91 = vector.load %arg16[%c0_42, %c0_43] : memref<64x32xf32, #tpu.memory_space<vmem>>, vector<64x32xf32>
    %cst_44 = arith.constant dense<0.000000e+00> : vector<8x32xf32>
    %92 = tpu.matmul %90, %91, %cst_44 {dimension_numbers = #tpu.dot_dimension_numbers<[1], [0], [0], [1], [0, 0, 1, 1], [], []>} : vector<8x64xf32>, vector<64x32xf32>, vector<8x32xf32> -> vector<8x32xf32>
    %c0_45 = arith.constant 0 : index
    %c0_46 = arith.constant 0 : index
    %93 = vector.load %arg17[%c0_45, %c0_46] : memref<1x32xf32, #tpu.memory_space<vmem>>, vector<1x32xf32>
    %94 = vector.broadcast %93 : vector<1x32xf32> to vector<8x32xf32>
    %95 = arith.addf %92, %94 : vector<8x32xf32>
    %96 = arith.addf %95, %77 : vector<8x32xf32>
    %cst_47 = arith.constant dense<0.000000e+00> : vector<8xf32>
    %97 = vector.multi_reduction <add>, %96, %cst_47 [1] : vector<8x32xf32> to vector<8xf32>
    %98 = vector.shape_cast %97 : vector<8xf32> to vector<8x1xf32>
    %cst_48 = arith.constant 3.200000e+01 : f32
    %99 = vector.broadcast %cst_48 : f32 to vector<8x1xf32>
    %100 = arith.divf %98, %99 : vector<8x1xf32>
    %101 = vector.broadcast %100 : vector<8x1xf32> to vector<8x32xf32>
    %102 = arith.subf %96, %101 : vector<8x32xf32>
    %103 = arith.mulf %102, %102 : vector<8x32xf32>
    %cst_49 = arith.constant dense<0.000000e+00> : vector<8xf32>
    %104 = vector.multi_reduction <add>, %103, %cst_49 [1] : vector<8x32xf32> to vector<8xf32>
    %105 = vector.shape_cast %104 : vector<8xf32> to vector<8x1xf32>
    %cst_50 = arith.constant 3.200000e+01 : f32
    %106 = vector.broadcast %cst_50 : f32 to vector<8x1xf32>
    %107 = arith.divf %105, %106 : vector<8x1xf32>
    %108 = vector.broadcast %100 : vector<8x1xf32> to vector<8x32xf32>
    %109 = arith.subf %96, %108 : vector<8x32xf32>
    %cst_51 = arith.constant 9.99999996E-13 : f32
    %110 = vector.broadcast %cst_51 : f32 to vector<8x1xf32>
    %111 = arith.addf %107, %110 : vector<8x1xf32>
    %112 = math.rsqrt %111 : vector<8x1xf32>
    %113 = vector.broadcast %112 : vector<8x1xf32> to vector<8x32xf32>
    %114 = arith.mulf %109, %113 : vector<8x32xf32>
    %c0_52 = arith.constant 0 : index
    %c0_53 = arith.constant 0 : index
    %115 = vector.load %arg18[%c0_52, %c0_53] : memref<1x32xf32, #tpu.memory_space<vmem>>, vector<1x32xf32>
    %116 = vector.broadcast %115 : vector<1x32xf32> to vector<8x32xf32>
    %117 = arith.mulf %116, %114 : vector<8x32xf32>
    %c0_54 = arith.constant 0 : index
    %c0_55 = arith.constant 0 : index
    %118 = vector.load %arg19[%c0_54, %c0_55] : memref<1x32xf32, #tpu.memory_space<vmem>>, vector<1x32xf32>
    %119 = vector.broadcast %118 : vector<1x32xf32> to vector<8x32xf32>
    %120 = arith.addf %117, %119 : vector<8x32xf32>
    %c0_56 = arith.constant 0 : index
    %c0_57 = arith.constant 0 : index
    %c0_58 = arith.constant 0 : index
    %121 = vector.load %arg20[%c0_56, %c0_57, %c0_58] : memref<1x8x32xf32, #tpu.memory_space<vmem>>, vector<1x8x32xf32>
    %122 = vector.shape_cast %121 : vector<1x8x32xf32> to vector<8x32xf32>
    %123 = vector.shape_cast %120 : vector<8x32xf32> to vector<1x8x32xf32>
    tpu.vector_store %arg20[%c0_56, %c0_57, %c0_58], %123 {strides = array<i32>} : memref<1x8x32xf32, #tpu.memory_space<vmem>>, vector<1x8x32xf32>,
    return
  }
  func.func @transform_0(%arg0: i32, %arg1: i32) -> (i32, i32, i32) {
    %c0_i32 = arith.constant 0 : i32
    %c0_i32_0 = arith.constant 0 : i32
    %c0_i32_1 = arith.constant 0 : i32
    return %arg0, %c0_i32, %c0_i32_0 : i32, i32, i32
  }
  func.func @transform_1(%arg0: i32, %arg1: i32) -> (i32, i32, i32) {
    %c0_i32 = arith.constant 0 : i32
    %c0_i32_0 = arith.constant 0 : i32
    %c0_i32_1 = arith.constant 0 : i32
    return %arg0, %c0_i32, %c0_i32_0 : i32, i32, i32
  }
  func.func @transform_2(%arg0: i32, %arg1: i32) -> (i32, i32) {
    %c0_i32 = arith.constant 0 : i32
    %c0_i32_0 = arith.constant 0 : i32
    %c0_i32_1 = arith.constant 0 : i32
    return %c0_i32, %c0_i32_0 : i32, i32
  }
  func.func @transform_3(%arg0: i32, %arg1: i32) -> (i32, i32) {
    %c0_i32 = arith.constant 0 : i32
    %c0_i32_0 = arith.constant 0 : i32
    %c0_i32_1 = arith.constant 0 : i32
    return %c0_i32, %c0_i32_0 : i32, i32
  }
  func.func @transform_4(%arg0: i32, %arg1: i32) -> (i32, i32) {
    %c0_i32 = arith.constant 0 : i32
    %c0_i32_0 = arith.constant 0 : i32
    %c0_i32_1 = arith.constant 0 : i32
    return %c0_i32, %c0_i32_0 : i32, i32
  }
  func.func @transform_5(%arg0: i32, %arg1: i32) -> (i32, i32) {
    %c0_i32 = arith.constant 0 : i32
    %c0_i32_0 = arith.constant 0 : i32
    %c0_i32_1 = arith.constant 0 : i32
    return %c0_i32, %c0_i32_0 : i32, i32
  }
  func.func @transform_6(%arg0: i32, %arg1: i32) -> (i32, i32) {
    %c0_i32 = arith.constant 0 : i32
    %c0_i32_0 = arith.constant 0 : i32
    %c0_i32_1 = arith.constant 0 : i32
    return %c0_i32, %c0_i32_0 : i32, i32
  }
  func.func @transform_7(%arg0: i32, %arg1: i32) -> (i32, i32) {
    %c0_i32 = arith.constant 0 : i32
    %c0_i32_0 = arith.constant 0 : i32
    %c0_i32_1 = arith.constant 0 : i32
    return %c0_i32, %c0_i32_0 : i32, i32
  }
  func.func @transform_8(%arg0: i32, %arg1: i32) -> (i32, i32) {
    %c0_i32 = arith.constant 0 : i32
    %c0_i32_0 = arith.constant 0 : i32
    %c0_i32_1 = arith.constant 0 : i32
    return %c0_i32, %c0_i32_0 : i32, i32
  }
  func.func @transform_9(%arg0: i32, %arg1: i32) -> (i32, i32) {
    %c0_i32 = arith.constant 0 : i32
    %c0_i32_0 = arith.constant 0 : i32
    %c0_i32_1 = arith.constant 0 : i32
    return %c0_i32, %c0_i32_0 : i32, i32
  }
  func.func @transform_10(%arg0: i32, %arg1: i32) -> (i32, i32) {
    %c0_i32 = arith.constant 0 : i32
    %c0_i32_0 = arith.constant 0 : i32
    %c0_i32_1 = arith.constant 0 : i32
    return %c0_i32, %c0_i32_0 : i32, i32
  }
  func.func @transform_11(%arg0: i32, %arg1: i32) -> (i32, i32) {
    %c0_i32 = arith.constant 0 : i32
    %c0_i32_0 = arith.constant 0 : i32
    %c0_i32_1 = arith.constant 0 : i32
    return %c0_i32, %c0_i32_0 : i32, i32
  }
  func.func @transform_12(%arg0: i32, %arg1: i32) -> (i32, i32) {
    %c0_i32 = arith.constant 0 : i32
    %c0_i32_0 = arith.constant 0 : i32
    %c0_i32_1 = arith.constant 0 : i32
    return %c0_i32, %c0_i32_0 : i32, i32
  }
  func.func @transform_13(%arg0: i32, %arg1: i32) -> (i32, i32) {
    %c0_i32 = arith.constant 0 : i32
    %c0_i32_0 = arith.constant 0 : i32
    %c0_i32_1 = arith.constant 0 : i32
    return %c0_i32, %c0_i32_0 : i32, i32
  }
  func.func @transform_14(%arg0: i32, %arg1: i32) -> (i32, i32) {
    %c0_i32 = arith.constant 0 : i32
    %c0_i32_0 = arith.constant 0 : i32
    %c0_i32_1 = arith.constant 0 : i32
    return %c0_i32, %c0_i32_0 : i32, i32
  }
  func.func @transform_15(%arg0: i32, %arg1: i32) -> (i32, i32) {
    %c0_i32 = arith.constant 0 : i32
    %c0_i32_0 = arith.constant 0 : i32
    %c0_i32_1 = arith.constant 0 : i32
    return %c0_i32, %c0_i32_0 : i32, i32
  }
  func.func @transform_16(%arg0: i32, %arg1: i32) -> (i32, i32) {
    %c0_i32 = arith.constant 0 : i32
    %c0_i32_0 = arith.constant 0 : i32
    %c0_i32_1 = arith.constant 0 : i32
    return %c0_i32, %c0_i32_0 : i32, i32
  }
  func.func @transform_17(%arg0: i32, %arg1: i32) -> (i32, i32) {
    %c0_i32 = arith.constant 0 : i32
    %c0_i32_0 = arith.constant 0 : i32
    %c0_i32_1 = arith.constant 0 : i32
    return %c0_i32, %c0_i32_0 : i32, i32
  }
  func.func @transform_18(%arg0: i32, %arg1: i32) -> (i32, i32, i32) {
    %c0_i32 = arith.constant 0 : i32
    %c0_i32_0 = arith.constant 0 : i32
    return %arg0, %arg1, %c0_i32 : i32, i32, i32
  }
}

module attributes {stable_mosaic.version = 11 : i64} {
  func.func @_bert_layer_kernel(%arg0: i32, %arg1: i32, %arg2: memref<1x8x32xf32, #tpu.memory_space<vmem>>, %arg3: memref<1x1x8xf32, #tpu.memory_space<vmem>>, %arg4: memref<32x32xf32, #tpu.memory_space<vmem>>, %arg5: memref<1x32xf32, #tpu.memory_space<vmem>>, %arg6: memref<32x32xf32, #tpu.memory_space<vmem>>, %arg7: memref<1x32xf32, #tpu.memory_space<vmem>>, %arg8: memref<32x32xf32, #tpu.memory_space<vmem>>, %arg9: memref<1x32xf32, #tpu.memory_space<vmem>>, %arg10: memref<32x32xf32, #tpu.memory_space<vmem>>, %arg11: memref<1x32xf32, #tpu.memory_space<vmem>>, %arg12: memref<1x32xf32, #tpu.memory_space<vmem>>, %arg13: memref<1x32xf32, #tpu.memory_space<vmem>>, %arg14: memref<32x64xf32, #tpu.memory_space<vmem>>, %arg15: memref<1x64xf32, #tpu.memory_space<vmem>>, %arg16: memref<64x32xf32, #tpu.memory_space<vmem>>, %arg17: memref<1x32xf32, #tpu.memory_space<vmem>>, %arg18: memref<1x32xf32, #tpu.memory_space<vmem>>, %arg19: memref<1x32xf32, #tpu.memory_space<vmem>>, %arg20: memref<1x8x32xf32, #tpu.memory_space<vmem>>, %arg21: memref<4x8x8xf32, #tpu.memory_space<vmem>>, %arg22: memref<4x8x8xf32, #tpu.memory_space<vmem>>) attributes {dimension_semantics = [#tpu.dimension_semantics<parallel>, #tpu.dimension_semantics<arbitrary>], iteration_bounds = array<i64: 2, 1>, scalar_prefetch = 0 : i64, scratch_operands = 2 : i64, tpu.core_type = #tpu.core_type<tc>, window_params = [{transform_indices = @transform_0, window_bounds = array<i64: 1, 8, 32>}, {transform_indices = @transform_1, window_bounds = array<i64: 1, 1, 8>}, {pipeline_mode = #tpu.pipeline_mode<synchronous>, transform_indices = @transform_2, window_bounds = array<i64: 32, 32>}, {pipeline_mode = #tpu.pipeline_mode<synchronous>, transform_indices = @transform_3, window_bounds = array<i64: 1, 32>}, {pipeline_mode = #tpu.pipeline_mode<synchronous>, transform_indices = @transform_4, window_bounds = array<i64: 32, 32>}, {pipeline_mode = #tpu.pipeline_mode<synchronous>, transform_indices = @transform_5, window_bounds = array<i64: 1, 32>}, {pipeline_mode = #tpu.pipeline_mode<synchronous>, transform_indices = @transform_6, window_bounds = array<i64: 32, 32>}, {pipeline_mode = #tpu.pipeline_mode<synchronous>, transform_indices = @transform_7, window_bounds = array<i64: 1, 32>}, {pipeline_mode = #tpu.pipeline_mode<synchronous>, transform_indices = @transform_8, window_bounds = array<i64: 32, 32>}, {pipeline_mode = #tpu.pipeline_mode<synchronous>, transform_indices = @transform_9, window_bounds = array<i64: 1, 32>}, {pipeline_mode = #tpu.pipeline_mode<synchronous>, transform_indices = @transform_10, window_bounds = array<i64: 1, 32>}, {pipeline_mode = #tpu.pipeline_mode<synchronous>, transform_indices = @transform_11, window_bounds = array<i64: 1, 32>}, {pipeline_mode = #tpu.pipeline_mode<synchronous>, transform_indices = @transform_12, window_bounds = array<i64: 32, 64>}, {pipeline_mode = #tpu.pipeline_mode<synchronous>, transform_indices = @transform_13, window_bounds = array<i64: 1, 64>}, {pipeline_mode = #tpu.pipeline_mode<synchronous>, transform_indices = @transform_14, window_bounds = array<i64: 64, 32>}, {pipeline_mode = #tpu.pipeline_mode<synchronous>, transform_indices = @transform_15, window_bounds = array<i64: 1, 32>}, {pipeline_mode = #tpu.pipeline_mode<synchronous>, transform_indices = @transform_16, window_bounds = array<i64: 1, 32>}, {pipeline_mode = #tpu.pipeline_mode<synchronous>, transform_indices = @transform_17, window_bounds = array<i64: 1, 32>}, {transform_indices = @transform_18, window_bounds = array<i64: 1, 8, 32>}]} {
    %c0_i32 = arith.constant 0 : i32
    %0 = arith.cmpi eq, %arg1, %c0_i32 : i32
    %1 = arith.extui %0 : i1 to i32
    %c0_i32_0 = arith.constant 0 : i32
    %2 = arith.cmpi ne, %1, %c0_i32_0 : i32
    scf.if %2 {
      %c0_59 = arith.constant 0 : index
      %c0_60 = arith.constant 0 : index
      %c0_61 = arith.constant 0 : index
      %124 = vector.load %arg2[%c0_59, %c0_60, %c0_61] : memref<1x8x32xf32, #tpu.memory_space<vmem>>, vector<1x8x32xf32>
      %125 = vector.shape_cast %124 : vector<1x8x32xf32> to vector<8x32xf32>
      %c0_62 = arith.constant 0 : index
      %c0_63 = arith.constant 0 : index
      %126 = vector.load %arg6[%c0_62, %c0_63] : memref<32x32xf32, #tpu.memory_space<vmem>>, vector<32x32xf32>
      %cst_64 = arith.constant dense<0.000000e+00> : vector<8x32xf32>
      %127 = tpu.matmul %125, %126, %cst_64 {dimension_numbers = #tpu.dot_dimension_numbers<[1], [0], [0], [1], [0, 0, 1, 1], [], []>} : vector<8x32xf32>, vector<32x32xf32>, vector<8x32xf32> -> vector<8x32xf32>
      %c0_65 = arith.constant 0 : index
      %c0_66 = arith.constant 0 : index
      %128 = vector.load %arg7[%c0_65, %c0_66] : memref<1x32xf32, #tpu.memory_space<vmem>>, vector<1x32xf32>
      %129 = vector.broadcast %128 : vector<1x32xf32> to vector<8x32xf32>
      %130 = arith.addf %127, %129 : vector<8x32xf32>
      %c0_67 = arith.constant 0 : index
      %c0_68 = arith.constant 0 : index
      %131 = vector.load %arg8[%c0_67, %c0_68] : memref<32x32xf32, #tpu.memory_space<vmem>>, vector<32x32xf32>
      %cst_69 = arith.constant dense<0.000000e+00> : vector<8x32xf32>
      %132 = tpu.matmul %125, %131, %cst_69 {dimension_numbers = #tpu.dot_dimension_numbers<[1], [0], [0], [1], [0, 0, 1, 1], [], []>} : vector<8x32xf32>, vector<32x32xf32>, vector<8x32xf32> -> vector<8x32xf32>
      %c0_70 = arith.constant 0 : index
      %c0_71 = arith.constant 0 : index
      %133 = vector.load %arg9[%c0_70, %c0_71] : memref<1x32xf32, #tpu.memory_space<vmem>>, vector<1x32xf32>
      %134 = vector.broadcast %133 : vector<1x32xf32> to vector<8x32xf32>
      %135 = arith.addf %132, %134 : vector<8x32xf32>
      %136 = vector.shape_cast %130 : vector<8x32xf32> to vector<8x4x8xf32>
      %137 = tpu.transpose %136, [1, 0, 2] : vector<8x4x8xf32> -> vector<4x8x8xf32>
      %c0_72 = arith.constant 0 : index
      %c0_73 = arith.constant 0 : index
      %c0_74 = arith.constant 0 : index
      %138 = vector.load %arg21[%c0_72, %c0_73, %c0_74] : memref<4x8x8xf32, #tpu.memory_space<vmem>>, vector<4x8x8xf32>
      tpu.vector_store %arg21[%c0_72, %c0_73, %c0_74], %137 {strides = array<i32>} : memref<4x8x8xf32, #tpu.memory_space<vmem>>, vector<4x8x8xf32>,
      %139 = vector.shape_cast %135 : vector<8x32xf32> to vector<8x4x8xf32>
      %140 = tpu.transpose %139, [1, 0, 2] : vector<8x4x8xf32> -> vector<4x8x8xf32>
      %c0_75 = arith.constant 0 : index
      %c0_76 = arith.constant 0 : index
      %c0_77 = arith.constant 0 : index
      %141 = vector.load %arg22[%c0_75, %c0_76, %c0_77] : memref<4x8x8xf32, #tpu.memory_space<vmem>>, vector<4x8x8xf32>
      tpu.vector_store %arg22[%c0_75, %c0_76, %c0_77], %140 {strides = array<i32>} : memref<4x8x8xf32, #tpu.memory_space<vmem>>, vector<4x8x8xf32>,
    } else {
    }
    %c8_i32 = arith.constant 8 : i32
    %3 = arith.muli %arg1, %c8_i32 : i32
    %4 = tpu.assume_multiple %3, 8 : i32
    %c0 = arith.constant 0 : index
    %5 = arith.index_cast %4 : i32 to index
    %c0_1 = arith.constant 0 : index
    %6 = vector.load %arg2[%c0, %5, %c0_1] : memref<1x8x32xf32, #tpu.memory_space<vmem>>, vector<1x8x32xf32>
    %7 = vector.shape_cast %6 : vector<1x8x32xf32> to vector<8x32xf32>
    %c0_2 = arith.constant 0 : index
    %c0_3 = arith.constant 0 : index
    %c0_4 = arith.constant 0 : index
    %8 = vector.load %arg3[%c0_2, %c0_3, %c0_4] : memref<1x1x8xf32, #tpu.memory_space<vmem>>, vector<1x1x8xf32>
    %9 = vector.shape_cast %8 : vector<1x1x8xf32> to vector<1x8xf32>
    %c0_5 = arith.constant 0 : index
    %c0_6 = arith.constant 0 : index
    %10 = vector.load %arg4[%c0_5, %c0_6] : memref<32x32xf32, #tpu.memory_space<vmem>>, vector<32x32xf32>
    %cst = arith.constant dense<0.000000e+00> : vector<8x32xf32>
    %11 = tpu.matmul %7, %10, %cst {dimension_numbers = #tpu.dot_dimension_numbers<[1], [0], [0], [1], [0, 0, 1, 1], [], []>} : vector<8x32xf32>, vector<32x32xf32>, vector<8x32xf32> -> vector<8x32xf32>
    %c0_7 = arith.constant 0 : index
    %c0_8 = arith.constant 0 : index
    %12 = vector.load %arg5[%c0_7, %c0_8] : memref<1x32xf32, #tpu.memory_space<vmem>>, vector<1x32xf32>
    %13 = vector.broadcast %12 : vector<1x32xf32> to vector<8x32xf32>
    %14 = arith.addf %11, %13 : vector<8x32xf32>
    %cst_9 = arith.constant 0.353553385 : f32
    %15 = vector.broadcast %cst_9 : f32 to vector<8x32xf32>
    %16 = arith.mulf %14, %15 : vector<8x32xf32>
    %17 = vector.shape_cast %16 : vector<8x32xf32> to vector<8x4x8xf32>
    %18 = tpu.transpose %17, [1, 0, 2] : vector<8x4x8xf32> -> vector<4x8x8xf32>
    %c0_10 = arith.constant 0 : index
    %c0_11 = arith.constant 0 : index
    %c0_12 = arith.constant 0 : index
    %19 = vector.load %arg21[%c0_10, %c0_11, %c0_12] : memref<4x8x8xf32, #tpu.memory_space<vmem>>, vector<4x8x8xf32>
    %cst_13 = arith.constant dense<0.000000e+00> : vector<4x8x8xf32>
    %20 = tpu.matmul %18, %19, %cst_13 {dimension_numbers = #tpu.dot_dimension_numbers<[2], [2], [1], [1], [0, 0, 0, 1, 1, 1], [0], [0]>} : vector<4x8x8xf32>, vector<4x8x8xf32>, vector<4x8x8xf32> -> vector<4x8x8xf32>
    %21 = vector.shape_cast %9 : vector<1x8xf32> to vector<1x1x8xf32>
    %22 = vector.broadcast %21 : vector<1x1x8xf32> to vector<4x8x8xf32>
    %23 = arith.addf %20, %22 : vector<4x8x8xf32>
    %cst_14 = arith.constant dense<0xFF800000> : vector<4x8xf32>
    %24 = vector.multi_reduction <maximumf>, %23, %cst_14 [2] : vector<4x8x8xf32> to vector<4x8xf32>
    %25 = vector.shape_cast %24 : vector<4x8xf32> to vector<4x8x1xf32>
    %26 = vector.broadcast %25 : vector<4x8x1xf32> to vector<4x8x8xf32>
    %27 = arith.subf %23, %26 : vector<4x8x8xf32>
    %28 = math.exp %27 : vector<4x8x8xf32>
    %cst_15 = arith.constant dense<0.000000e+00> : vector<4x8xf32>
    %29 = vector.multi_reduction <add>, %28, %cst_15 [2] : vector<4x8x8xf32> to vector<4x8xf32>
    %30 = vector.shape_cast %29 : vector<4x8xf32> to vector<4x8x1xf32>
    %31 = tpu.reciprocal %30 {approx = true} : vector<4x8x1xf32> -> vector<4x8x1xf32>
    %32 = vector.broadcast %31 : vector<4x8x1xf32> to vector<4x8x8xf32>
    %33 = arith.mulf %28, %32 : vector<4x8x8xf32>
    %c0_16 = arith.constant 0 : index
    %c0_17 = arith.constant 0 : index
    %c0_18 = arith.constant 0 : index
    %34 = vector.load %arg22[%c0_16, %c0_17, %c0_18] : memref<4x8x8xf32, #tpu.memory_space<vmem>>, vector<4x8x8xf32>
    %cst_19 = arith.constant dense<0.000000e+00> : vector<4x8x8xf32>
    %35 = tpu.matmul %33, %34, %cst_19 {dimension_numbers = #tpu.dot_dimension_numbers<[2], [1], [1], [2], [0, 0, 0, 1, 1, 2], [0], [0]>} : vector<4x8x8xf32>, vector<4x8x8xf32>, vector<4x8x8xf32> -> vector<4x8x8xf32>
    %c0_20 = arith.constant 0 : index
    %c0_21 = arith.constant 0 : index
    %36 = vector.load %arg10[%c0_20, %c0_21] : memref<32x32xf32, #tpu.memory_space<vmem>>, vector<32x32xf32>
    %37 = vector.shape_cast %36 : vector<32x32xf32> to vector<4x8x32xf32>
    %cst_22 = arith.constant dense<0.000000e+00> : vector<4x8x32xf32>
    %38 = tpu.matmul %35, %37, %cst_22 {dimension_numbers = #tpu.dot_dimension_numbers<[2], [1], [1], [2], [0, 0, 0, 1, 1, 2], [0], [0]>} : vector<4x8x8xf32>, vector<4x8x32xf32>, vector<4x8x32xf32> -> vector<4x8x32xf32>
    %39 = vector.extract_strided_slice %38 {offsets = [0, 0, 0], sizes = [1, 8, 32], strides = [1, 1, 1]} : vector<4x8x32xf32> to vector<1x8x32xf32>
    %40 = vector.shape_cast %39 : vector<1x8x32xf32> to vector<8x32xf32>
    %41 = vector.extract_strided_slice %38 {offsets = [1, 0, 0], sizes = [1, 8, 32], strides = [1, 1, 1]} : vector<4x8x32xf32> to vector<1x8x32xf32>
    %42 = vector.shape_cast %41 : vector<1x8x32xf32> to vector<8x32xf32>
    %43 = arith.addf %40, %42 : vector<8x32xf32>
    %44 = vector.extract_strided_slice %38 {offsets = [2, 0, 0], sizes = [1, 8, 32], strides = [1, 1, 1]} : vector<4x8x32xf32> to vector<1x8x32xf32>
    %45 = vector.shape_cast %44 : vector<1x8x32xf32> to vector<8x32xf32>
    %46 = arith.addf %43, %45 : vector<8x32xf32>
    %47 = vector.extract_strided_slice %38 {offsets = [3, 0, 0], sizes = [1, 8, 32], strides = [1, 1, 1]} : vector<4x8x32xf32> to vector<1x8x32xf32>
    %48 = vector.shape_cast %47 : vector<1x8x32xf32> to vector<8x32xf32>
    %49 = arith.addf %46, %48 : vector<8x32xf32>
    %c0_23 = arith.constant 0 : index
    %c0_24 = arith.constant 0 : index
    %50 = vector.load %arg11[%c0_23, %c0_24] : memref<1x32xf32, #tpu.memory_space<vmem>>, vector<1x32xf32>
    %51 = vector.broadcast %50 : vector<1x32xf32> to vector<8x32xf32>
    %52 = arith.addf %49, %51 : vector<8x32xf32>
    %53 = arith.addf %52, %7 : vector<8x32xf32>
    %cst_25 = arith.constant dense<0.000000e+00> : vector<8xf32>
    %54 = vector.multi_reduction <add>, %53, %cst_25 [1] : vector<8x32xf32> to vector<8xf32>
    %55 = vector.shape_cast %54 : vector<8xf32> to vector<8x1xf32>
    %cst_26 = arith.constant 3.200000e+01 : f32
    %56 = vector.broadcast %cst_26 : f32 to vector<8x1xf32>
    %57 = arith.divf %55, %56 : vector<8x1xf32>
    %58 = vector.broadcast %57 : vector<8x1xf32> to vector<8x32xf32>
    %59 = arith.subf %53, %58 : vector<8x32xf32>
    %60 = arith.mulf %59, %59 : vector<8x32xf32>
    %cst_27 = arith.constant dense<0.000000e+00> : vector<8xf32>
    %61 = vector.multi_reduction <add>, %60, %cst_27 [1] : vector<8x32xf32> to vector<8xf32>
    %62 = vector.shape_cast %61 : vector<8xf32> to vector<8x1xf32>
    %cst_28 = arith.constant 3.200000e+01 : f32
    %63 = vector.broadcast %cst_28 : f32 to vector<8x1xf32>
    %64 = arith.divf %62, %63 : vector<8x1xf32>
    %65 = vector.broadcast %57 : vector<8x1xf32> to vector<8x32xf32>
    %66 = arith.subf %53, %65 : vector<8x32xf32>
    %cst_29 = arith.constant 9.99999996E-13 : f32
    %67 = vector.broadcast %cst_29 : f32 to vector<8x1xf32>
    %68 = arith.addf %64, %67 : vector<8x1xf32>
    %69 = math.rsqrt %68 : vector<8x1xf32>
    %70 = vector.broadcast %69 : vector<8x1xf32> to vector<8x32xf32>
    %71 = arith.mulf %66, %70 : vector<8x32xf32>
    %c0_30 = arith.constant 0 : index
    %c0_31 = arith.constant 0 : index
    %72 = vector.load %arg12[%c0_30, %c0_31] : memref<1x32xf32, #tpu.memory_space<vmem>>, vector<1x32xf32>
    %73 = vector.broadcast %72 : vector<1x32xf32> to vector<8x32xf32>
    %74 = arith.mulf %73, %71 : vector<8x32xf32>
    %c0_32 = arith.constant 0 : index
    %c0_33 = arith.constant 0 : index
    %75 = vector.load %arg13[%c0_32, %c0_33] : memref<1x32xf32, #tpu.memory_space<vmem>>, vector<1x32xf32>
    %76 = vector.broadcast %75 : vector<1x32xf32> to vector<8x32xf32>
    %77 = arith.addf %74, %76 : vector<8x32xf32>
    %c0_34 = arith.constant 0 : index
    %c0_35 = arith.constant 0 : index
    %78 = vector.load %arg14[%c0_34, %c0_35] : memref<32x64xf32, #tpu.memory_space<vmem>>, vector<32x64xf32>
    %cst_36 = arith.constant dense<0.000000e+00> : vector<8x64xf32>
    %79 = tpu.matmul %77, %78, %cst_36 {dimension_numbers = #tpu.dot_dimension_numbers<[1], [0], [0], [1], [0, 0, 1, 1], [], []>} : vector<8x32xf32>, vector<32x64xf32>, vector<8x64xf32> -> vector<8x64xf32>
    %c0_37 = arith.constant 0 : index
    %c0_38 = arith.constant 0 : index
    %80 = vector.load %arg15[%c0_37, %c0_38] : memref<1x64xf32, #tpu.memory_space<vmem>>, vector<1x64xf32>
    %81 = vector.broadcast %80 : vector<1x64xf32> to vector<8x64xf32>
    %82 = arith.addf %79, %81 : vector<8x64xf32>
    %cst_39 = arith.constant 5.000000e-01 : f32
    %83 = vector.broadcast %cst_39 : f32 to vector<8x64xf32>
    %84 = arith.mulf %82, %83 : vector<8x64xf32>
    %cst_40 = arith.constant 0.707106769 : f32
    %85 = vector.broadcast %cst_40 : f32 to vector<8x64xf32>
    %86 = arith.mulf %82, %85 : vector<8x64xf32>
    %87 = math.erf %86 : vector<8x64xf32>
    %cst_41 = arith.constant 1.000000e+00 : f32
    %88 = vector.broadcast %cst_41 : f32 to vector<8x64xf32>
    %89 = arith.addf %88, %87 : vector<8x64xf32>
    %90 = arith.mulf %84, %89 : vector<8x64xf32>
    %c0_42 = arith.constant 0 : index
    %c0_43 = arith.constant 0 : index
    %91 = vector.load %arg16[%c0_42, %c0_43] : memref<64x32xf32, #tpu.memory_space<vmem>>, vector<64x32xf32>
    %cst_44 = arith.constant dense<0.000000e+00> : vector<8x32xf32>
    %92 = tpu.matmul %90, %91, %cst_44 {dimension_numbers = #tpu.dot_dimension_numbers<[1], [0], [0], [1], [0, 0, 1, 1], [], []>} : vector<8x64xf32>, vector<64x32xf32>, vector<8x32xf32> -> vector<8x32xf32>
    %c0_45 = arith.constant 0 : index
    %c0_46 = arith.constant 0 : index
    %93 = vector.load %arg17[%c0_45, %c0_46] : memref<1x32xf32, #tpu.memory_space<vmem>>, vector<1x32xf32>
    %94 = vector.broadcast %93 : vector<1x32xf32> to vector<8x32xf32>
    %95 = arith.addf %92, %94 : vector<8x32xf32>
    %96 = arith.addf %95, %77 : vector<8x32xf32>
    %cst_47 = arith.constant dense<0.000000e+00> : vector<8xf32>
    %97 = vector.multi_reduction <add>, %96, %cst_47 [1] : vector<8x32xf32> to vector<8xf32>
    %98 = vector.shape_cast %97 : vector<8xf32> to vector<8x1xf32>
    %cst_48 = arith.constant 3.200000e+01 : f32
    %99 = vector.broadcast %cst_48 : f32 to vector<8x1xf32>
    %100 = arith.divf %98, %99 : vector<8x1xf32>
    %101 = vector.broadcast %100 : vector<8x1xf32> to vector<8x32xf32>
    %102 = arith.subf %96, %101 : vector<8x32xf32>
    %103 = arith.mulf %102, %102 : vector<8x32xf32>
    %cst_49 = arith.constant dense<0.000000e+00> : vector<8xf32>
    %104 = vector.multi_reduction <add>, %103, %cst_49 [1] : vector<8x32xf32> to vector<8xf32>
    %105 = vector.shape_cast %104 : vector<8xf32> to vector<8x1xf32>
    %cst_50 = arith.constant 3.200000e+01 : f32
    %106 = vector.broadcast %cst_50 : f32 to vector<8x1xf32>
    %107 = arith.divf %105, %106 : vector<8x1xf32>
    %108 = vector.broadcast %100 : vector<8x1xf32> to vector<8x32xf32>
    %109 = arith.subf %96, %108 : vector<8x32xf32>
    %cst_51 = arith.constant 9.99999996E-13 : f32
    %110 = vector.broadcast %cst_51 : f32 to vector<8x1xf32>
    %111 = arith.addf %107, %110 : vector<8x1xf32>
    %112 = math.rsqrt %111 : vector<8x1xf32>
    %113 = vector.broadcast %112 : vector<8x1xf32> to vector<8x32xf32>
    %114 = arith.mulf %109, %113 : vector<8x32xf32>
    %c0_52 = arith.constant 0 : index
    %c0_53 = arith.constant 0 : index
    %115 = vector.load %arg18[%c0_52, %c0_53] : memref<1x32xf32, #tpu.memory_space<vmem>>, vector<1x32xf32>
    %116 = vector.broadcast %115 : vector<1x32xf32> to vector<8x32xf32>
    %117 = arith.mulf %116, %114 : vector<8x32xf32>
    %c0_54 = arith.constant 0 : index
    %c0_55 = arith.constant 0 : index
    %118 = vector.load %arg19[%c0_54, %c0_55] : memref<1x32xf32, #tpu.memory_space<vmem>>, vector<1x32xf32>
    %119 = vector.broadcast %118 : vector<1x32xf32> to vector<8x32xf32>
    %120 = arith.addf %117, %119 : vector<8x32xf32>
    %c0_56 = arith.constant 0 : index
    %c0_57 = arith.constant 0 : index
    %c0_58 = arith.constant 0 : index
    %121 = vector.load %arg20[%c0_56, %c0_57, %c0_58] : memref<1x8x32xf32, #tpu.memory_space<vmem>>, vector<1x8x32xf32>
    %122 = vector.shape_cast %121 : vector<1x8x32xf32> to vector<8x32xf32>
    %123 = vector.shape_cast %120 : vector<8x32xf32> to vector<1x8x32xf32>
    tpu.vector_store %arg20[%c0_56, %c0_57, %c0_58], %123 {strides = array<i32>} : memref<1x8x32xf32, #tpu.memory_space<vmem>>, vector<1x8x32xf32>,
    return
  }
  func.func @transform_0(%arg0: i32, %arg1: i32) -> (i32, i32, i32) {
    %c0_i32 = arith.constant 0 : i32
    %c0_i32_0 = arith.constant 0 : i32
    %c0_i32_1 = arith.constant 0 : i32
    return %arg0, %c0_i32, %c0_i32_0 : i32, i32, i32
  }
  func.func @transform_1(%arg0: i32, %arg1: i32) -> (i32, i32, i32) {
    %c0_i32 = arith.constant 0 : i32
    %c0_i32_0 = arith.constant 0 : i32
    %c0_i32_1 = arith.constant 0 : i32
    return %arg0, %c0_i32, %c0_i32_0 : i32, i32, i32
  }
  func.func @transform_2(%arg0: i32, %arg1: i32) -> (i32, i32) {
    %c0_i32 = arith.constant 0 : i32
    %c0_i32_0 = arith.constant 0 : i32
    %c0_i32_1 = arith.constant 0 : i32
    return %c0_i32, %c0_i32_0 : i32, i32
  }
  func.func @transform_3(%arg0: i32, %arg1: i32) -> (i32, i32) {
    %c0_i32 = arith.constant 0 : i32
    %c0_i32_0 = arith.constant 0 : i32
    %c0_i32_1 = arith.constant 0 : i32
    return %c0_i32, %c0_i32_0 : i32, i32
  }
  func.func @transform_4(%arg0: i32, %arg1: i32) -> (i32, i32) {
    %c0_i32 = arith.constant 0 : i32
    %c0_i32_0 = arith.constant 0 : i32
    %c0_i32_1 = arith.constant 0 : i32
    return %c0_i32, %c0_i32_0 : i32, i32
  }
  func.func @transform_5(%arg0: i32, %arg1: i32) -> (i32, i32) {
    %c0_i32 = arith.constant 0 : i32
    %c0_i32_0 = arith.constant 0 : i32
    %c0_i32_1 = arith.constant 0 : i32
    return %c0_i32, %c0_i32_0 : i32, i32
  }
  func.func @transform_6(%arg0: i32, %arg1: i32) -> (i32, i32) {
    %c0_i32 = arith.constant 0 : i32
    %c0_i32_0 = arith.constant 0 : i32
    %c0_i32_1 = arith.constant 0 : i32
    return %c0_i32, %c0_i32_0 : i32, i32
  }
  func.func @transform_7(%arg0: i32, %arg1: i32) -> (i32, i32) {
    %c0_i32 = arith.constant 0 : i32
    %c0_i32_0 = arith.constant 0 : i32
    %c0_i32_1 = arith.constant 0 : i32
    return %c0_i32, %c0_i32_0 : i32, i32
  }
  func.func @transform_8(%arg0: i32, %arg1: i32) -> (i32, i32) {
    %c0_i32 = arith.constant 0 : i32
    %c0_i32_0 = arith.constant 0 : i32
    %c0_i32_1 = arith.constant 0 : i32
    return %c0_i32, %c0_i32_0 : i32, i32
  }
  func.func @transform_9(%arg0: i32, %arg1: i32) -> (i32, i32) {
    %c0_i32 = arith.constant 0 : i32
    %c0_i32_0 = arith.constant 0 : i32
    %c0_i32_1 = arith.constant 0 : i32
    return %c0_i32, %c0_i32_0 : i32, i32
  }
  func.func @transform_10(%arg0: i32, %arg1: i32) -> (i32, i32) {
    %c0_i32 = arith.constant 0 : i32
    %c0_i32_0 = arith.constant 0 : i32
    %c0_i32_1 = arith.constant 0 : i32
    return %c0_i32, %c0_i32_0 : i32, i32
  }
  func.func @transform_11(%arg0: i32, %arg1: i32) -> (i32, i32) {
    %c0_i32 = arith.constant 0 : i32
    %c0_i32_0 = arith.constant 0 : i32
    %c0_i32_1 = arith.constant 0 : i32
    return %c0_i32, %c0_i32_0 : i32, i32
  }
  func.func @transform_12(%arg0: i32, %arg1: i32) -> (i32, i32) {
    %c0_i32 = arith.constant 0 : i32
    %c0_i32_0 = arith.constant 0 : i32
    %c0_i32_1 = arith.constant 0 : i32
    return %c0_i32, %c0_i32_0 : i32, i32
  }
  func.func @transform_13(%arg0: i32, %arg1: i32) -> (i32, i32) {
    %c0_i32 = arith.constant 0 : i32
    %c0_i32_0 = arith.constant 0 : i32
    %c0_i32_1 = arith.constant 0 : i32
    return %c0_i32, %c0_i32_0 : i32, i32
  }
  func.func @transform_14(%arg0: i32, %arg1: i32) -> (i32, i32) {
    %c0_i32 = arith.constant 0 : i32
    %c0_i32_0 = arith.constant 0 : i32
    %c0_i32_1 = arith.constant 0 : i32
    return %c0_i32, %c0_i32_0 : i32, i32
  }
  func.func @transform_15(%arg0: i32, %arg1: i32) -> (i32, i32) {
    %c0_i32 = arith.constant 0 : i32
    %c0_i32_0 = arith.constant 0 : i32
    %c0_i32_1 = arith.constant 0 : i32
    return %c0_i32, %c0_i32_0 : i32, i32
  }
  func.func @transform_16(%arg0: i32, %arg1: i32) -> (i32, i32) {
    %c0_i32 = arith.constant 0 : i32
    %c0_i32_0 = arith.constant 0 : i32
    %c0_i32_1 = arith.constant 0 : i32
    return %c0_i32, %c0_i32_0 : i32, i32
  }
  func.func @transform_17(%arg0: i32, %arg1: i32) -> (i32, i32) {
    %c0_i32 = arith.constant 0 : i32
    %c0_i32_0 = arith.constant 0 : i32
    %c0_i32_1 = arith.constant 0 : i32
    return %c0_i32, %c0_i32_0 : i32, i32
  }
  func.func @transform_18(%arg0: i32, %arg1: i32) -> (i32, i32, i32) {
    %c0_i32 = arith.constant 0 : i32
    %c0_i32_0 = arith.constant 0 : i32
    return %arg0, %arg1, %c0_i32 : i32, i32, i32
  }
}

</mosaic_0001>

<llo_original>
// kernel: tpu_custom_call.1
$region0: #{tpu_custom_call.1}
  #allocation0 [shape = 'u32[]', space=smem, size = 0x4, offset = 0x4, fixed_abs, tag = 'smem constant byte address 0x4 - core index']
  #allocation1 [shape = 'u32[144,128]{1,0:T(1,128)}', space=vmem, size = 0x12000, scoped, tag = 'internal scratch']
  #allocation2 [shape = 'f32[4,8,8]{2,1,0:T(8,128)}', space=vmem, size = 0x4000, scoped, tag = 'scratch operand']
  #allocation3 [shape = 'f32[4,8,8]{2,1,0:T(8,128)}', space=vmem, size = 0x4000, scoped, tag = 'scratch operand']
  %s0 = inlined_call_operand.hbm [shape: f32[2,8,32], index: 0, kind: input, shape index: {}]
  %s1 = inlined_call_operand.vmem [shape: f32[2,1,8], index: 1, kind: input, shape index: {}]
  %s2 = inlined_call_operand.vmem [shape: f32[32,32], index: 2, kind: input, shape index: {}]
  %s3 = inlined_call_operand.vmem [shape: f32[1,32], index: 3, kind: input, shape index: {}]
  %s4 = inlined_call_operand.vmem [shape: f32[32,32], index: 4, kind: input, shape index: {}]
  %s5 = inlined_call_operand.vmem [shape: f32[1,32], index: 5, kind: input, shape index: {}]
  %s6 = inlined_call_operand.vmem [shape: f32[32,32], index: 6, kind: input, shape index: {}]
  %s7 = inlined_call_operand.vmem [shape: f32[1,32], index: 7, kind: input, shape index: {}]
  %s8 = inlined_call_operand.hbm [shape: f32[32,32], index: 8, kind: input, shape index: {}]
  %s9 = inlined_call_operand.vmem [shape: f32[1,32], index: 9, kind: input, shape index: {}]
  %s10 = inlined_call_operand.vmem [shape: f32[1,32], index: 10, kind: input, shape index: {}]
  %s11 = inlined_call_operand.vmem [shape: f32[1,32], index: 11, kind: input, shape index: {}]
  %s12 = inlined_call_operand.hbm [shape: f32[32,64], index: 12, kind: input, shape index: {}]
  %s13 = inlined_call_operand.vmem [shape: f32[1,64], index: 13, kind: input, shape index: {}]
  %s14 = inlined_call_operand.vmem [shape: f32[64,32], index: 14, kind: input, shape index: {}]
  %s15 = inlined_call_operand.vmem [shape: f32[1,32], index: 15, kind: input, shape index: {}]
  %s16 = inlined_call_operand.vmem [shape: f32[1,32], index: 16, kind: input, shape index: {}]
  %s17 = inlined_call_operand.vmem [shape: f32[1,32], index: 17, kind: input, shape index: {}]
  %s18 = inlined_call_operand.hbm [shape: f32[2,8,32], index: 18, kind: output, shape index: {}]
  %s19 = sld [smem:[#allocation0]]
  $region121: #{tpu_custom_call.1} parent=0
    _
  %s21 = ssub.s32 1, %s19
  %s22 = scalar_select 0, %s21, %s19
  $region1: #{tpu_custom_call.1} parent=0
    #allocation4 [shape = 'u8[8192]{0}', space=vmem, size = 0x2000, scoped, tag = 'input window, operand 0']
    #allocation5 [shape = 's32[2]{0}', space=sflag, size = 0x8, scoped, tag = 'scoped memory for tpu_custom_call.1']
    #allocation6 [shape = 's32[2]{0}', space=sflag, size = 0x8, scoped, tag = 'scoped memory for tpu_custom_call.1']
    #allocation7 [shape = 'u8[16384]{0}', space=vmem, size = 0x4000, scoped, tag = 'input window, operand 8, single buffered']
    #allocation8 [shape = 's32[1]{0}', space=sflag, size = 0x4, scoped, tag = 'scoped memory for tpu_custom_call.1']
    #allocation9 [shape = 'u8[16384]{0}', space=vmem, size = 0x4000, scoped, tag = 'input window, operand 12, single buffered']
    #allocation10 [shape = 'u8[8192]{0}', space=vmem, size = 0x2000, scoped, tag = 'output window, operand 0']
    %23 = vsyncpa [#allocation5], 0
    %s24 = scalar_lea.sflag [#allocation5], 1
    %25 = vsyncpa %s24, 0
    %26 = vsyncpa [#allocation8], 0
    %27 = vsyncpa [#allocation6], 0
    %s28 = scalar_lea.sflag [#allocation6], 1
    %29 = vsyncpa %s28, 0
    loop: start=0, step=1, limit=4
    $region2: #{tpu_custom_call.1} parent=1 // loop_pre_header
      _
    $region3: #{tpu_custom_call.1} parent=1 // loop_header
      %s31 = sphi 0, %s35
      %p32 = scmp.ge.s32.totalorder %s31, 4
      %s38 = sphi 0, %s50
      %s39 = sphi 0, %s46
      %s40 = sphi 0, %s38
      %s41 = sphi 0, %s39
      %s42 = sphi 0, %s40
      %s43 = sphi 0, %s41
      %s53 = sphi 0, %s55
      %s56 = sphi 0, %s53
      %s57 = sphi 0, %s56
      %s73 = sphi 0, %s57
      %s79 = sphi 0, %s81
      %s82 = sphi 0, %s79
      %s83 = sphi 0, %s82
      %s99 = sphi 0, %s83
      %s103 = sphi 0, %s103
      %s105 = sphi 0, %s103
      %s106 = sphi 0, %s105
      %s120 = sphi 0, %s106
      %s124 = sphi 0, %s124
      %s126 = sphi 0, %s124
      %s127 = sphi 0, %s126
      %s141 = sphi 0, %s127
      %s145 = sphi 0, %s145
      %s147 = sphi 0, %s145
      %s148 = sphi 0, %s147
      %s162 = sphi 0, %s148
      %s166 = sphi 0, %s166
      %s168 = sphi 0, %s166
      %s169 = sphi 0, %s168
      %s183 = sphi 0, %s169
      %s187 = sphi 0, %s187
      %s189 = sphi 0, %s187
      %s190 = sphi 0, %s189
      %s204 = sphi 0, %s190
      %s208 = sphi 0, %s208
      %s210 = sphi 0, %s208
      %s211 = sphi 0, %s210
      %s225 = sphi 0, %s211
      %s229 = sphi 0, %s229
      %s231 = sphi 0, %s229
      %s232 = sphi 0, %s231
      %s246 = sphi 0, %s232
      %s250 = sphi 0, %s250
      %s252 = sphi 0, %s250
      %s253 = sphi 0, %s252
      %s267 = sphi 0, %s253
      %s271 = sphi 0, %s271
      %s273 = sphi 0, %s271
      %s274 = sphi 0, %s273
      %s288 = sphi 0, %s274
      %s292 = sphi 0, %s292
      %s294 = sphi 0, %s292
      %s295 = sphi 0, %s294
      %s309 = sphi 0, %s295
      %s313 = sphi 0, %s313
      %s315 = sphi 0, %s313
      %s316 = sphi 0, %s315
      %s330 = sphi 0, %s316
      %s334 = sphi 0, %s334
      %s336 = sphi 0, %s334
      %s337 = sphi 0, %s336
      %s351 = sphi 0, %s337
      %s355 = sphi 0, %s355
      %s357 = sphi 0, %s355
      %s358 = sphi 0, %s357
      %s372 = sphi 0, %s358
      %s376 = sphi 0, %s376
      %s378 = sphi 0, %s376
      %s379 = sphi 0, %s378
      %s393 = sphi 0, %s379
      %s397 = sphi 0, %s397
      %s399 = sphi 0, %s397
      %s400 = sphi 0, %s399
      %s414 = sphi 0, %s400
      %s418 = sphi 0, %s418
      %s420 = sphi 0, %s418
      %s421 = sphi 0, %s420
      %s435 = sphi 0, %s421
      %s443 = sphi 0, %s445
      %s446 = sphi 0, %s443
      %s447 = sphi 0, %s446
      %s463 = sphi 0, %s447
    $region4: #{tpu_custom_call.1} parent=1 // loop_header_branch
      %34 = sbr.rel (%p32) target = $region8
    $region5: #{tpu_custom_call.1} parent=1 // loop_body
      %s36 = ssub.s32 %s31, 1
      %s37 = ssub.s32 %s31, 2
      %s44 = sadd.s32 1, %s39
      %p45 = scmp.ge.s32.totalorder %s44, 1
      %s46 = scalar_select %p45, 0, %s44
      %s47 = sadd.s32 1, %s38
      %s48 = scalar_select %p45, %s47, %s38
      %p49 = scmp.ge.s32.totalorder %s48, 2
      %s50 = scalar_select %p49, 0, %s48
      %s51 = ssub.s32 %s38, %s50
      %p52 = scmp.eq.s32.totalorder %s51, 0
      %s54 = sadd.s32 %s53, 1
      %s55 = scalar_select %p52, %s53, %s54
      %p58 = pneg %p52
      %p59 = scmp.eq.s32.totalorder %s31, 1
      %p60 = por %p58, %p59
      %p61 = scmp.ne.s32.totalorder %s53, %s56
      %p62 = scmp.eq.s32.totalorder %s31, 0
      %p63 = por %p61, %p62
      %p64 = scmp.ne.s32.totalorder %s53, %s56
      %p65 = scmp.eq.s32.totalorder %s36, 1
      %p66 = por %p64, %p65
      %p67 = scmp.ne.s32.totalorder %s56, %s57
      %p68 = scmp.eq.s32.totalorder %s36, 0
      %p69 = por %p67, %p68
      %p70 = scmp.ne.s32.totalorder %s56, %s57
      %p71 = scmp.eq.s32.totalorder %s37, 1
      %p72 = por %p70, %p71
      %p74 = scmp.ne.s32.totalorder %s57, %s73
      %p75 = scmp.eq.s32.totalorder %s37, 0
      %p76 = por %p74, %p75
      %s77 = ssub.s32 %s38, %s50
      %p78 = scmp.eq.s32.totalorder %s77, 0
      %s80 = sadd.s32 %s79, 1
      %s81 = scalar_select %p78, %s79, %s80
      %p84 = pneg %p78
      %p85 = scmp.eq.s32.totalorder %s31, 1
      %p86 = por %p84, %p85
      %p87 = scmp.ne.s32.totalorder %s79, %s82
      %p88 = scmp.eq.s32.totalorder %s31, 0
      %p89 = por %p87, %p88
      %p90 = scmp.ne.s32.totalorder %s79, %s82
      %p91 = scmp.eq.s32.totalorder %s36, 1
      %p92 = por %p90, %p91
      %p93 = scmp.ne.s32.totalorder %s82, %s83
      %p94 = scmp.eq.s32.totalorder %s36, 0
      %p95 = por %p93, %p94
      %p96 = scmp.ne.s32.totalorder %s82, %s83
      %p97 = scmp.eq.s32.totalorder %s37, 1
      %p98 = por %p96, %p97
      %p100 = scmp.ne.s32.totalorder %s83, %s99
      %p101 = scmp.eq.s32.totalorder %s37, 0
      %p102 = por %p100, %p101
      %s104 = sadd.s32 %s103, 1
      %p107 = scmp.eq.s32.totalorder %s31, 1
      %p108 = scmp.ne.s32.totalorder %s103, %s105
      %p109 = scmp.eq.s32.totalorder %s31, 0
      %p110 = por %p108, %p109
      %p111 = scmp.ne.s32.totalorder %s103, %s105
      %p112 = scmp.eq.s32.totalorder %s36, 1
      %p113 = por %p111, %p112
      %p114 = scmp.ne.s32.totalorder %s105, %s106
      %p115 = scmp.eq.s32.totalorder %s36, 0
      %p116 = por %p114, %p115
      %p117 = scmp.ne.s32.totalorder %s105, %s106
      %p118 = scmp.eq.s32.totalorder %s37, 1
      %p119 = por %p117, %p118
      %p121 = scmp.ne.s32.totalorder %s106, %s120
      %p122 = scmp.eq.s32.totalorder %s37, 0
      %p123 = por %p121, %p122
      %s125 = sadd.s32 %s124, 1
      %p128 = scmp.eq.s32.totalorder %s31, 1
      %p129 = scmp.ne.s32.totalorder %s124, %s126
      %p130 = scmp.eq.s32.totalorder %s31, 0
      %p131 = por %p129, %p130
      %p132 = scmp.ne.s32.totalorder %s124, %s126
      %p133 = scmp.eq.s32.totalorder %s36, 1
      %p134 = por %p132, %p133
      %p135 = scmp.ne.s32.totalorder %s126, %s127
      %p136 = scmp.eq.s32.totalorder %s36, 0
      %p137 = por %p135, %p136
      %p138 = scmp.ne.s32.totalorder %s126, %s127
      %p139 = scmp.eq.s32.totalorder %s37, 1
      %p140 = por %p138, %p139
      %p142 = scmp.ne.s32.totalorder %s127, %s141
      %p143 = scmp.eq.s32.totalorder %s37, 0
      %p144 = por %p142, %p143
      %s146 = sadd.s32 %s145, 1
      %p149 = scmp.eq.s32.totalorder %s31, 1
      %p150 = scmp.ne.s32.totalorder %s145, %s147
      %p151 = scmp.eq.s32.totalorder %s31, 0
      %p152 = por %p150, %p151
      %p153 = scmp.ne.s32.totalorder %s145, %s147
      %p154 = scmp.eq.s32.totalorder %s36, 1
      %p155 = por %p153, %p154
      %p156 = scmp.ne.s32.totalorder %s147, %s148
      %p157 = scmp.eq.s32.totalorder %s36, 0
      %p158 = por %p156, %p157
      %p159 = scmp.ne.s32.totalorder %s147, %s148
      %p160 = scmp.eq.s32.totalorder %s37, 1
      %p161 = por %p159, %p160
      %p163 = scmp.ne.s32.totalorder %s148, %s162
      %p164 = scmp.eq.s32.totalorder %s37, 0
      %p165 = por %p163, %p164
      %s167 = sadd.s32 %s166, 1
      %p170 = scmp.eq.s32.totalorder %s31, 1
      %p171 = scmp.ne.s32.totalorder %s166, %s168
      %p172 = scmp.eq.s32.totalorder %s31, 0
      %p173 = por %p171, %p172
      %p174 = scmp.ne.s32.totalorder %s166, %s168
      %p175 = scmp.eq.s32.totalorder %s36, 1
      %p176 = por %p174, %p175
      %p177 = scmp.ne.s32.totalorder %s168, %s169
      %p178 = scmp.eq.s32.totalorder %s36, 0
      %p179 = por %p177, %p178
      %p180 = scmp.ne.s32.totalorder %s168, %s169
      %p181 = scmp.eq.s32.totalorder %s37, 1
      %p182 = por %p180, %p181
      %p184 = scmp.ne.s32.totalorder %s169, %s183
      %p185 = scmp.eq.s32.totalorder %s37, 0
      %p186 = por %p184, %p185
      %s188 = sadd.s32 %s187, 1
      %p191 = scmp.eq.s32.totalorder %s31, 1
      %p192 = scmp.ne.s32.totalorder %s187, %s189
      %p193 = scmp.eq.s32.totalorder %s31, 0
      %p194 = por %p192, %p193
      %p195 = scmp.ne.s32.totalorder %s187, %s189
      %p196 = scmp.eq.s32.totalorder %s36, 1
      %p197 = por %p195, %p196
      %p198 = scmp.ne.s32.totalorder %s189, %s190
      %p199 = scmp.eq.s32.totalorder %s36, 0
      %p200 = por %p198, %p199
      %p201 = scmp.ne.s32.totalorder %s189, %s190
      %p202 = scmp.eq.s32.totalorder %s37, 1
      %p203 = por %p201, %p202
      %p205 = scmp.ne.s32.totalorder %s190, %s204
      %p206 = scmp.eq.s32.totalorder %s37, 0
      %p207 = por %p205, %p206
      %s209 = sadd.s32 %s208, 1
      %p212 = scmp.eq.s32.totalorder %s31, 1
      %p213 = scmp.ne.s32.totalorder %s208, %s210
      %p214 = scmp.eq.s32.totalorder %s31, 0
      %p215 = por %p213, %p214
      %p216 = scmp.ne.s32.totalorder %s208, %s210
      %p217 = scmp.eq.s32.totalorder %s36, 1
      %p218 = por %p216, %p217
      %p219 = scmp.ne.s32.totalorder %s210, %s211
      %p220 = scmp.eq.s32.totalorder %s36, 0
      %p221 = por %p219, %p220
      %p222 = scmp.ne.s32.totalorder %s210, %s211
      %p223 = scmp.eq.s32.totalorder %s37, 1
      %p224 = por %p222, %p223
      %p226 = scmp.ne.s32.totalorder %s211, %s225
      %p227 = scmp.eq.s32.totalorder %s37, 0
      %p228 = por %p226, %p227
      %s230 = sadd.s32 %s229, 1
      %p233 = scmp.eq.s32.totalorder %s31, 1
      %p234 = scmp.ne.s32.totalorder %s229, %s231
      %p235 = scmp.eq.s32.totalorder %s31, 0
      %p236 = por %p234, %p235
      %p237 = scmp.ne.s32.totalorder %s229, %s231
      %p238 = scmp.eq.s32.totalorder %s36, 1
      %p239 = por %p237, %p238
      %p240 = scmp.ne.s32.totalorder %s231, %s232
      %p241 = scmp.eq.s32.totalorder %s36, 0
      %p242 = por %p240, %p241
      %p243 = scmp.ne.s32.totalorder %s231, %s232
      %p244 = scmp.eq.s32.totalorder %s37, 1
      %p245 = por %p243, %p244
      %p247 = scmp.ne.s32.totalorder %s232, %s246
      %p248 = scmp.eq.s32.totalorder %s37, 0
      %p249 = por %p247, %p248
      %s251 = sadd.s32 %s250, 1
      %p254 = scmp.eq.s32.totalorder %s31, 1
      %p255 = scmp.ne.s32.totalorder %s250, %s252
      %p256 = scmp.eq.s32.totalorder %s31, 0
      %p257 = por %p255, %p256
      %p258 = scmp.ne.s32.totalorder %s250, %s252
      %p259 = scmp.eq.s32.totalorder %s36, 1
      %p260 = por %p258, %p259
      %p261 = scmp.ne.s32.totalorder %s252, %s253
      %p262 = scmp.eq.s32.totalorder %s36, 0
      %p263 = por %p261, %p262
      %p264 = scmp.ne.s32.totalorder %s252, %s253
      %p265 = scmp.eq.s32.totalorder %s37, 1
      %p266 = por %p264, %p265
      %p268 = scmp.ne.s32.totalorder %s253, %s267
      %p269 = scmp.eq.s32.totalorder %s37, 0
      %p270 = por %p268, %p269
      %s272 = sadd.s32 %s271, 1
      %p275 = scmp.eq.s32.totalorder %s31, 1
      %p276 = scmp.ne.s32.totalorder %s271, %s273
      %p277 = scmp.eq.s32.totalorder %s31, 0
      %p278 = por %p276, %p277
      %p279 = scmp.ne.s32.totalorder %s271, %s273
      %p280 = scmp.eq.s32.totalorder %s36, 1
      %p281 = por %p279, %p280
      %p282 = scmp.ne.s32.totalorder %s273, %s274
      %p283 = scmp.eq.s32.totalorder %s36, 0
      %p284 = por %p282, %p283
      %p285 = scmp.ne.s32.totalorder %s273, %s274
      %p286 = scmp.eq.s32.totalorder %s37, 1
      %p287 = por %p285, %p286
      %p289 = scmp.ne.s32.totalorder %s274, %s288
      %p290 = scmp.eq.s32.totalorder %s37, 0
      %p291 = por %p289, %p290
      %s293 = sadd.s32 %s292, 1
      %p296 = scmp.eq.s32.totalorder %s31, 1
      %p297 = scmp.ne.s32.totalorder %s292, %s294
      %p298 = scmp.eq.s32.totalorder %s31, 0
      %p299 = por %p297, %p298
      %p300 = scmp.ne.s32.totalorder %s292, %s294
      %p301 = scmp.eq.s32.totalorder %s36, 1
      %p302 = por %p300, %p301
      %p303 = scmp.ne.s32.totalorder %s294, %s295
      %p304 = scmp.eq.s32.totalorder %s36, 0
      %p305 = por %p303, %p304
      %p306 = scmp.ne.s32.totalorder %s294, %s295
      %p307 = scmp.eq.s32.totalorder %s37, 1
      %p308 = por %p306, %p307
      %p310 = scmp.ne.s32.totalorder %s295, %s309
      %p311 = scmp.eq.s32.totalorder %s37, 0
      %p312 = por %p310, %p311
      %s314 = sadd.s32 %s313, 1
      %p317 = scmp.eq.s32.totalorder %s31, 1
      %p318 = scmp.ne.s32.totalorder %s313, %s315
      %p319 = scmp.eq.s32.totalorder %s31, 0
      %p320 = por %p318, %p319
      %p321 = scmp.ne.s32.totalorder %s313, %s315
      %p322 = scmp.eq.s32.totalorder %s36, 1
      %p323 = por %p321, %p322
      %p324 = scmp.ne.s32.totalorder %s315, %s316
      %p325 = scmp.eq.s32.totalorder %s36, 0
      %p326 = por %p324, %p325
      %p327 = scmp.ne.s32.totalorder %s315, %s316
      %p328 = scmp.eq.s32.totalorder %s37, 1
      %p329 = por %p327, %p328
      %p331 = scmp.ne.s32.totalorder %s316, %s330
      %p332 = scmp.eq.s32.totalorder %s37, 0
      %p333 = por %p331, %p332
      %s335 = sadd.s32 %s334, 1
      %p338 = scmp.eq.s32.totalorder %s31, 1
      %p339 = scmp.ne.s32.totalorder %s334, %s336
      %p340 = scmp.eq.s32.totalorder %s31, 0
      %p341 = por %p339, %p340
      %p342 = scmp.ne.s32.totalorder %s334, %s336
      %p343 = scmp.eq.s32.totalorder %s36, 1
      %p344 = por %p342, %p343
      %p345 = scmp.ne.s32.totalorder %s336, %s337
      %p346 = scmp.eq.s32.totalorder %s36, 0
      %p347 = por %p345, %p346
      %p348 = scmp.ne.s32.totalorder %s336, %s337
      %p349 = scmp.eq.s32.totalorder %s37, 1
      %p350 = por %p348, %p349
      %p352 = scmp.ne.s32.totalorder %s337, %s351
      %p353 = scmp.eq.s32.totalorder %s37, 0
      %p354 = por %p352, %p353
      %s356 = sadd.s32 %s355, 1
      %p359 = scmp.eq.s32.totalorder %s31, 1
      %p360 = scmp.ne.s32.totalorder %s355, %s357
      %p361 = scmp.eq.s32.totalorder %s31, 0
      %p362 = por %p360, %p361
      %p363 = scmp.ne.s32.totalorder %s355, %s357
      %p364 = scmp.eq.s32.totalorder %s36, 1
      %p365 = por %p363, %p364
      %p366 = scmp.ne.s32.totalorder %s357, %s358
      %p367 = scmp.eq.s32.totalorder %s36, 0
      %p368 = por %p366, %p367
      %p369 = scmp.ne.s32.totalorder %s357, %s358
      %p370 = scmp.eq.s32.totalorder %s37, 1
      %p371 = por %p369, %p370
      %p373 = scmp.ne.s32.totalorder %s358, %s372
      %p374 = scmp.eq.s32.totalorder %s37, 0
      %p375 = por %p373, %p374
      %s377 = sadd.s32 %s376, 1
      %p380 = scmp.eq.s32.totalorder %s31, 1
      %p381 = scmp.ne.s32.totalorder %s376, %s378
      %p382 = scmp.eq.s32.totalorder %s31, 0
      %p383 = por %p381, %p382
      %p384 = scmp.ne.s32.totalorder %s376, %s378
      %p385 = scmp.eq.s32.totalorder %s36, 1
      %p386 = por %p384, %p385
      %p387 = scmp.ne.s32.totalorder %s378, %s379
      %p388 = scmp.eq.s32.totalorder %s36, 0
      %p389 = por %p387, %p388
      %p390 = scmp.ne.s32.totalorder %s378, %s379
      %p391 = scmp.eq.s32.totalorder %s37, 1
      %p392 = por %p390, %p391
      %p394 = scmp.ne.s32.totalorder %s379, %s393
      %p395 = scmp.eq.s32.totalorder %s37, 0
      %p396 = por %p394, %p395
      %s398 = sadd.s32 %s397, 1
      %p401 = scmp.eq.s32.totalorder %s31, 1
      %p402 = scmp.ne.s32.totalorder %s397, %s399
      %p403 = scmp.eq.s32.totalorder %s31, 0
      %p404 = por %p402, %p403
      %p405 = scmp.ne.s32.totalorder %s397, %s399
      %p406 = scmp.eq.s32.totalorder %s36, 1
      %p407 = por %p405, %p406
      %p408 = scmp.ne.s32.totalorder %s399, %s400
      %p409 = scmp.eq.s32.totalorder %s36, 0
      %p410 = por %p408, %p409
      %p411 = scmp.ne.s32.totalorder %s399, %s400
      %p412 = scmp.eq.s32.totalorder %s37, 1
      %p413 = por %p411, %p412
      %p415 = scmp.ne.s32.totalorder %s400, %s414
      %p416 = scmp.eq.s32.totalorder %s37, 0
      %p417 = por %p415, %p416
      %s419 = sadd.s32 %s418, 1
      %p422 = scmp.eq.s32.totalorder %s31, 1
      %p423 = scmp.ne.s32.totalorder %s418, %s420
      %p424 = scmp.eq.s32.totalorder %s31, 0
      %p425 = por %p423, %p424
      %p426 = scmp.ne.s32.totalorder %s418, %s420
      %p427 = scmp.eq.s32.totalorder %s36, 1
      %p428 = por %p426, %p427
      %p429 = scmp.ne.s32.totalorder %s420, %s421
      %p430 = scmp.eq.s32.totalorder %s36, 0
      %p431 = por %p429, %p430
      %p432 = scmp.ne.s32.totalorder %s420, %s421
      %p433 = scmp.eq.s32.totalorder %s37, 1
      %p434 = por %p432, %p433
      %p436 = scmp.ne.s32.totalorder %s421, %s435
      %p437 = scmp.eq.s32.totalorder %s37, 0
      %p438 = por %p436, %p437
      %s439 = ssub.s32 %s38, %s50
      %s440 = ssub.s32 %s39, %s46
      %s441 = sor.u32 %s439, %s440
      %p442 = scmp.eq.s32.totalorder %s441, 0
      %s444 = sadd.s32 %s443, 1
      %s445 = scalar_select %p442, %s443, %s444
      %p448 = pneg %p442
      %p449 = scmp.eq.s32.totalorder %s31, 1
      %p450 = por %p448, %p449
      %p451 = scmp.ne.s32.totalorder %s443, %s446
      %p452 = scmp.eq.s32.totalorder %s31, 0
      %p453 = por %p451, %p452
      %p454 = scmp.ne.s32.totalorder %s443, %s446
      %p455 = scmp.eq.s32.totalorder %s36, 1
      %p456 = por %p454, %p455
      %p457 = scmp.ne.s32.totalorder %s446, %s447
      %p458 = scmp.eq.s32.totalorder %s36, 0
      %p459 = por %p457, %p458
      %p460 = scmp.ne.s32.totalorder %s446, %s447
      %p461 = scmp.eq.s32.totalorder %s37, 1
      %p462 = por %p460, %p461
      %p464 = scmp.ne.s32.totalorder %s447, %s463
      %p465 = scmp.eq.s32.totalorder %s37, 0
      %p466 = por %p464, %p465
      %p467 = scmp.le.s32.totalorder 1, %s31
      %p468 = scmp.lt.s32.totalorder %s31, 3
      %p469 = pnand %p467, %p468
      %p470 = pneg %p469
      // Predicated region
      $region9: #{tpu_custom_call.1} parent=5 // pred_check
        _
      $region10: #{tpu_custom_call.1} parent=5 // pred_check_branch
        %472 = sbr.rel (%p469) target = $region12
      $region11: #{tpu_custom_call.1} parent=5 // pred_region
        %s473 = ssub.s32 %s31, 1
        // Predicated region
        $region13: #{tpu_custom_call.1} parent=11 // pred_check
          %p474 = pneg %p116
        $region14: #{tpu_custom_call.1} parent=11 // pred_check_branch
          %476 = sbr.rel (%p474) target = $region16
        $region15: #{tpu_custom_call.1} parent=11 // pred_region
          _
        $region16: #{tpu_custom_call.1} parent=11 // pred_fallthru
          _
        // Predicated region
        $region17: #{tpu_custom_call.1} parent=11 // pred_check
          %p477 = pneg %p137
        $region18: #{tpu_custom_call.1} parent=11 // pred_check_branch
          %479 = sbr.rel (%p477) target = $region20
        $region19: #{tpu_custom_call.1} parent=11 // pred_region
          _
        $region20: #{tpu_custom_call.1} parent=11 // pred_fallthru
          _
        // Predicated region
        $region21: #{tpu_custom_call.1} parent=11 // pred_check
          %p480 = pneg %p158
        $region22: #{tpu_custom_call.1} parent=11 // pred_check_branch
          %482 = sbr.rel (%p480) target = $region24
        $region23: #{tpu_custom_call.1} parent=11 // pred_region
          _
        $region24: #{tpu_custom_call.1} parent=11 // pred_fallthru
          _
        // Predicated region
        $region25: #{tpu_custom_call.1} parent=11 // pred_check
          %p483 = pneg %p179
        $region26: #{tpu_custom_call.1} parent=11 // pred_check_branch
          %485 = sbr.rel (%p483) target = $region28
        $region27: #{tpu_custom_call.1} parent=11 // pred_region
          _
        $region28: #{tpu_custom_call.1} parent=11 // pred_fallthru
          _
        // Predicated region
        $region29: #{tpu_custom_call.1} parent=11 // pred_check
          %p486 = pneg %p200
        $region30: #{tpu_custom_call.1} parent=11 // pred_check_branch
          %488 = sbr.rel (%p486) target = $region32
        $region31: #{tpu_custom_call.1} parent=11 // pred_region
          _
        $region32: #{tpu_custom_call.1} parent=11 // pred_fallthru
          _
        // Predicated region
        $region33: #{tpu_custom_call.1} parent=11 // pred_check
          %p489 = pneg %p221
        $region34: #{tpu_custom_call.1} parent=11 // pred_check_branch
          %491 = sbr.rel (%p489) target = $region36
        $region35: #{tpu_custom_call.1} parent=11 // pred_region
          _
        $region36: #{tpu_custom_call.1} parent=11 // pred_fallthru
          _
        // Predicated region
        $region37: #{tpu_custom_call.1} parent=11 // pred_check
          %p492 = pneg %p242
        $region38: #{tpu_custom_call.1} parent=11 // pred_check_branch
          %494 = sbr.rel (%p492) target = $region40
        $region39: #{tpu_custom_call.1} parent=11 // pred_region
          %s496 = ssub.s32 512, 512
          %497 = vsyncadd [#allocation8], %s496
          %s498 = sshll.u32 [#allocation7], 4
          %s499 = int_to_ptr.vmem [resolvable:$true] %s498
          %504 = dma.hbm_to_vmem [thread:$0]  %s8, 512, %s499, [#allocation8], 128, 128, 8
        $region40: #{tpu_custom_call.1} parent=11 // pred_fallthru
          _
        // Predicated region
        $region41: #{tpu_custom_call.1} parent=11 // pred_check
          %p505 = pneg %p263
        $region42: #{tpu_custom_call.1} parent=11 // pred_check_branch
          %507 = sbr.rel (%p505) target = $region44
        $region43: #{tpu_custom_call.1} parent=11 // pred_region
          _
        $region44: #{tpu_custom_call.1} parent=11 // pred_fallthru
          _
        // Predicated region
        $region45: #{tpu_custom_call.1} parent=11 // pred_check
          %p508 = pneg %p284
        $region46: #{tpu_custom_call.1} parent=11 // pred_check_branch
          %510 = sbr.rel (%p508) target = $region48
        $region47: #{tpu_custom_call.1} parent=11 // pred_region
          _
        $region48: #{tpu_custom_call.1} parent=11 // pred_fallthru
          _
        // Predicated region
        $region49: #{tpu_custom_call.1} parent=11 // pred_check
          %p511 = pneg %p305
        $region50: #{tpu_custom_call.1} parent=11 // pred_check_branch
          %513 = sbr.rel (%p511) target = $region52
        $region51: #{tpu_custom_call.1} parent=11 // pred_region
          _
        $region52: #{tpu_custom_call.1} parent=11 // pred_fallthru
          _
        // Predicated region
        $region53: #{tpu_custom_call.1} parent=11 // pred_check
          %p514 = pneg %p326
        $region54: #{tpu_custom_call.1} parent=11 // pred_check_branch
          %516 = sbr.rel (%p514) target = $region56
        $region55: #{tpu_custom_call.1} parent=11 // pred_region
          %s518 = ssub.s32 512, 512
          %519 = vsyncadd [#allocation8], %s518
          %s520 = sshll.u32 [#allocation9], 4
          %s521 = int_to_ptr.vmem [resolvable:$true] %s520
          %526 = dma.hbm_to_vmem [thread:$0]  %s12, 512, %s521, [#allocation8], 128, 128, 8
        $region56: #{tpu_custom_call.1} parent=11 // pred_fallthru
          _
        // Predicated region
        $region57: #{tpu_custom_call.1} parent=11 // pred_check
          %p527 = pneg %p347
        $region58: #{tpu_custom_call.1} parent=11 // pred_check_branch
          %529 = sbr.rel (%p527) target = $region60
        $region59: #{tpu_custom_call.1} parent=11 // pred_region
          _
        $region60: #{tpu_custom_call.1} parent=11 // pred_fallthru
          _
        // Predicated region
        $region61: #{tpu_custom_call.1} parent=11 // pred_check
          %p530 = pneg %p368
        $region62: #{tpu_custom_call.1} parent=11 // pred_check_branch
          %532 = sbr.rel (%p530) target = $region64
        $region63: #{tpu_custom_call.1} parent=11 // pred_region
          _
        $region64: #{tpu_custom_call.1} parent=11 // pred_fallthru
          _
        // Predicated region
        $region65: #{tpu_custom_call.1} parent=11 // pred_check
          %p533 = pneg %p389
        $region66: #{tpu_custom_call.1} parent=11 // pred_check_branch
          %535 = sbr.rel (%p533) target = $region68
        $region67: #{tpu_custom_call.1} parent=11 // pred_region
          _
        $region68: #{tpu_custom_call.1} parent=11 // pred_fallthru
          _
        // Predicated region
        $region69: #{tpu_custom_call.1} parent=11 // pred_check
          %p536 = pneg %p410
        $region70: #{tpu_custom_call.1} parent=11 // pred_check_branch
          %538 = sbr.rel (%p536) target = $region72
        $region71: #{tpu_custom_call.1} parent=11 // pred_region
          _
        $region72: #{tpu_custom_call.1} parent=11 // pred_fallthru
          _
        // Predicated region
        $region73: #{tpu_custom_call.1} parent=11 // pred_check
          %p539 = pneg %p431
        $region74: #{tpu_custom_call.1} parent=11 // pred_check_branch
          %541 = sbr.rel (%p539) target = $region76
        $region75: #{tpu_custom_call.1} parent=11 // pred_region
          _
        $region76: #{tpu_custom_call.1} parent=11 // pred_fallthru
          _
      $region12: #{tpu_custom_call.1} parent=5 // pred_fallthru
        _
      %p542 = scmp.lt.s32.totalorder %s31, 2
      // Predicated region
      $region77: #{tpu_custom_call.1} parent=5 // pred_check
        %p543 = pneg %p542
      $region78: #{tpu_custom_call.1} parent=5 // pred_check_branch
        %545 = sbr.rel (%p543) target = $region80
      $region79: #{tpu_custom_call.1} parent=5 // pred_region
        // Predicated region
        $region81: #{tpu_custom_call.1} parent=79 // pred_check
          %p546 = pneg %p63
        $region82: #{tpu_custom_call.1} parent=79 // pred_check_branch
          %548 = sbr.rel (%p546) target = $region84
        $region83: #{tpu_custom_call.1} parent=79 // pred_region
          %s549 = sand.u32 %s53, 1
          %s550 = scalar_lea.sflag [#allocation5], %s549
          %s551 = sand.u32 %s53, 1
          %s552 = smul.addr %s551, 8
          %s553 = scalar_lea.vmem [#allocation4], %s552
          %s555 = ssub.s32 128, 128
          %556 = vsyncadd %s550, %s555
          %s557 = smul.addr %s38, 128
          %s558 = scalar_lea.hbm %s0, %s557
          %s560 = sshll.u32 %s553, 4
          %s561 = int_to_ptr.vmem [resolvable:$true] %s560
          %563 = dma.hbm_to_vmem [thread:$0]  %s558, 128, %s561, %s550
        $region84: #{tpu_custom_call.1} parent=79 // pred_fallthru
          _
        // Predicated region
        $region85: #{tpu_custom_call.1} parent=79 // pred_check
          %p564 = pneg %p89
        $region86: #{tpu_custom_call.1} parent=79 // pred_check_branch
          %566 = sbr.rel (%p564) target = $region88
        $region87: #{tpu_custom_call.1} parent=79 // pred_region
          %p567 = scmp.lt.s32.totalorder %s38, 1
          %s568 = scalar_select %p567, %s38, 1
          %s569 = scalar_lea.vmem %s1, %s568
        $region88: #{tpu_custom_call.1} parent=79 // pred_fallthru
          _
      $region80: #{tpu_custom_call.1} parent=5 // pred_fallthru
        _
      %p570 = scmp.le.s32.totalorder 1, %s31
      %p571 = scmp.lt.s32.totalorder %s31, 3
      %p572 = pnand %p570, %p571
      %p573 = pneg %p572
      // Predicated region
      $region89: #{tpu_custom_call.1} parent=5 // pred_check
        _
      $region90: #{tpu_custom_call.1} parent=5 // pred_check_branch
        %575 = sbr.rel (%p572) target = $region92
      $region91: #{tpu_custom_call.1} parent=5 // pred_region
        %s576 = ssub.s32 %s31, 1
        %s577 = sand.u32 %s56, 1
        %s578 = scalar_lea.sflag [#allocation5], %s577
        %s579 = sand.u32 %s56, 1
        %s580 = smul.addr %s579, 8
        %s581 = scalar_lea.vmem [#allocation4], %s580
        // Predicated region
        $region93: #{tpu_custom_call.1} parent=91 // pred_check
          %p582 = pneg %p69
        $region94: #{tpu_custom_call.1} parent=91 // pred_check_branch
          %584 = sbr.rel (%p582) target = $region96
        $region95: #{tpu_custom_call.1} parent=91 // pred_region
          %585 = dma.done %s578, 128
        $region96: #{tpu_custom_call.1} parent=91 // pred_fallthru
          _
        // Predicated region
        $region97: #{tpu_custom_call.1} parent=91 // pred_check
          %p586 = pneg %p242
        $region98: #{tpu_custom_call.1} parent=91 // pred_check_branch
          %588 = sbr.rel (%p586) target = $region100
        $region99: #{tpu_custom_call.1} parent=91 // pred_region
          %589 = dma.done [#allocation8], 512
        $region100: #{tpu_custom_call.1} parent=91 // pred_fallthru
          _
        // Predicated region
        $region101: #{tpu_custom_call.1} parent=91 // pred_check
          %p590 = pneg %p326
        $region102: #{tpu_custom_call.1} parent=91 // pred_check_branch
          %592 = sbr.rel (%p590) target = $region104
        $region103: #{tpu_custom_call.1} parent=91 // pred_region
          %593 = dma.done [#allocation8], 512
        $region104: #{tpu_custom_call.1} parent=91 // pred_fallthru
          _
        %s594 = sand.u32 %s56, 1
        %s595 = scalar_lea.sflag [#allocation5], %s594
        %s596 = sand.u32 %s56, 1
        %s597 = smul.addr %s596, 8
        %s598 = scalar_lea.vmem [#allocation4], %s597
        %p599 = pneg %p69
        %p600 = pneg %p66
        %p601 = scmp.lt.s32.totalorder %s40, 1
        %s602 = scalar_select %p601, %s40, 1
        %s603 = scalar_lea.vmem %s1, %s602
        %p604 = pneg %p95
        %p605 = pneg %p92
        %p606 = pneg %p116
        %p607 = pneg %p113
        %p608 = pneg %p137
        %p609 = pneg %p134
        %p610 = pneg %p158
        %p611 = pneg %p155
        %p612 = pneg %p179
        %p613 = pneg %p176
        %p614 = pneg %p200
        %p615 = pneg %p197
        %p616 = pneg %p221
        %p617 = pneg %p218
        %p618 = pneg %p242
        %p619 = pneg %p239
        %p620 = pneg %p263
        %p621 = pneg %p260
        %p622 = pneg %p284
        %p623 = pneg %p281
        %p624 = pneg %p305
        %p625 = pneg %p302
        %p626 = pneg %p326
        %p627 = pneg %p323
        %p628 = pneg %p347
        %p629 = pneg %p344
        %p630 = pneg %p368
        %p631 = pneg %p365
        %p632 = pneg %p389
        %p633 = pneg %p386
        %p634 = pneg %p410
        %p635 = pneg %p407
        %p636 = pneg %p431
        %p637 = pneg %p428
        %p638 = pneg %p459
        %p639 = pneg %p456
        %s640 = sand.u32 %s446, 1
        %s641 = scalar_lea.sflag [#allocation6], %s640
        %s642 = sand.u32 %s446, 1
        %s643 = smul.addr %s642, 8
        %s644 = scalar_lea.vmem [#allocation10], %s643
        %p645 = scmp.lt.s32.totalorder %s40, 1
        %s646 = scalar_select %p645, %s40, 1
        %s647 = scalar_lea.vmem %s1, %s646
        %p648 = scmp.eq.s32.totalorder %s41, 0
        // Predicated region
        $region105: #{tpu_custom_call.1} parent=91 // pred_check
          %p649 = pneg %p648
        $region106: #{tpu_custom_call.1} parent=91 // pred_check_branch
          %651 = sbr.rel (%p649) target = $region108
        $region107: #{tpu_custom_call.1} parent=91 // pred_region
          %v652 = vld [vmem:[%s581] sm:$0xff]
          %v653 = vld [vmem:[%s4] sm:$0xff]
          %v654 = vld [vmem:[%s4 + $0x8] sm:$0xff]
          %v655 = vld [vmem:[%s4 + $0x10] sm:$0xff]
          %v656 = vld [vmem:[%s4 + $0x18] sm:$0xff]
          %v657 = vld [vmem:[%s5] sm:$0x1]
          %v659 = vlaneseq
          %v660 = vshrl.u32 %v659, 7
          %v661 = vsub.s32 0, %v660
          %v662 = vrot.slane %v657, %v661
          %vm664 = vcmask 261120
          %v666 = vsel %vm664, %v652, 0
          %668 = vmatprep.subr.mxu0 0.0
          %669 = vmatpush1.msra.mxu0 %v653
          %670 = vmatprep.subr.mxu0 0.0
          %671 = vmatpush1.msra.mxu0 %v654
          %672 = vmatprep.subr.mxu0 0.0
          %673 = vmatpush1.msra.mxu0 %v655
          %674 = vmatprep.subr.mxu0 0.0
          %675 = vmatpush1.msra.mxu0 %v656
          %676 = vmatprep.subr.mxu0 0.0
          %677 = vmatpush1.msra.mxu0 0.0
          %678 = vmatprep.subr.mxu0 0.0
          %679 = vmatpush1.msra.mxu0 0.0
          %680 = vmatprep.subr.mxu0 0.0
          %681 = vmatpush1.msra.mxu0 0.0
          %682 = vmatprep.subr.mxu0 0.0
          %683 = vmatpush1.msra.mxu0 0.0
          %684 = vmatprep.subr.mxu0 0.0
          %685 = vmatpush1.msra.mxu0 0.0
          %686 = vmatprep.subr.mxu0 0.0
          %687 = vmatpush1.msra.mxu0 0.0
          %688 = vmatprep.subr.mxu0 0.0
          %689 = vmatpush1.msra.mxu0 0.0
          %690 = vmatprep.subr.mxu0 0.0
          %691 = vmatpush1.msra.mxu0 0.0
          %692 = vmatprep.subr.mxu0 0.0
          %693 = vmatpush1.msra.mxu0 0.0
          %694 = vmatprep.subr.mxu0 0.0
          %695 = vmatpush1.msra.mxu0 0.0
          %696 = vmatprep.subr.mxu0 0.0
          %697 = vmatpush1.msra.mxu0 0.0
          %698 = vmatprep.subr.mxu0 0.0
          %699 = vmatpush1.msra.mxu0 0.0
          %700 = vmatprep.subr.mxu0 0.0
          %701 = vmatpush1.msra.mxu0 0.0
          %702 = vmatprep.subr.mxu0 0.0
          %703 = vmatpush1.msra.mxu0 0.0
          %704 = vmatprep.subr.mxu0 0.0
          %705 = vmatpush1.msra.mxu0 0.0
          %706 = vmatprep.subr.mxu0 0.0
          %707 = vmatpush1.msra.mxu0 0.0
          %708 = vmatprep.subr.mxu0 0.0
          %709 = vmatpush1.msra.mxu0 0.0
          %710 = vmatprep.subr.mxu0 0.0
          %711 = vmatpush1.msra.mxu0 0.0
          %712 = vmatprep.subr.mxu0 0.0
          %713 = vmatpush1.msra.mxu0 0.0
          %714 = vmatprep.subr.mxu0 0.0
          %715 = vmatpush1.msra.mxu0 0.0
          %716 = vmatprep.subr.mxu0 0.0
          %717 = vmatpush1.msra.mxu0 0.0
          %718 = vmatprep.subr.mxu0 0.0
          %719 = vmatpush1.msra.mxu0 0.0
          %720 = vmatprep.subr.mxu0 0.0
          %721 = vmatpush1.msra.mxu0 0.0
          %722 = vmatprep.subr.mxu0 0.0
          %723 = vmatpush1.msra.mxu0 0.0
          %724 = vmatprep.subr.mxu0 0.0
          %725 = vmatpush1.msra.mxu0 0.0
          %726 = vmatprep.subr.mxu0 0.0
          %727 = vmatpush1.msra.mxu0 0.0
          %728 = vmatprep.subr.mxu0 0.0
          %729 = vmatpush1.msra.mxu0 0.0
          %730 = vmatprep.subr.mxu0 0.0
          %731 = vmatpush1.msra.mxu0 0.0
          %732 = vmatprep.mubr.f32.mxu0 0.0
          %733 = vmatmul.mubr.f32.gmra.mrb[0].mxu0 %v666
          %v734 = vpop.f32.mrb[0].mxu0
          %v735 = vadd.f32 %v662, %v734
          %v736 = vpop.f32.mrb[0].mxu0
          %737 = vdwg.mxu0
          %v738 = vld [vmem:[%s6] sm:$0xff]
          %v739 = vld [vmem:[%s6 + $0x8] sm:$0xff]
          %v740 = vld [vmem:[%s6 + $0x10] sm:$0xff]
          %v741 = vld [vmem:[%s6 + $0x18] sm:$0xff]
          %v742 = vld [vmem:[%s7] sm:$0x1]
          %v744 = vlaneseq
          %v745 = vshrl.u32 %v744, 7
          %v746 = vsub.s32 0, %v745
          %v747 = vrot.slane %v742, %v746
          %749 = vmatprep.subr.mxu0 0.0
          %750 = vmatpush1.msra.mxu0 %v738
          %751 = vmatprep.subr.mxu0 0.0
          %752 = vmatpush1.msra.mxu0 %v739
          %753 = vmatprep.subr.mxu0 0.0
          %754 = vmatpush1.msra.mxu0 %v740
          %755 = vmatprep.subr.mxu0 0.0
          %756 = vmatpush1.msra.mxu0 %v741
          %757 = vmatprep.subr.mxu0 0.0
          %758 = vmatpush1.msra.mxu0 0.0
          %759 = vmatprep.subr.mxu0 0.0
          %760 = vmatpush1.msra.mxu0 0.0
          %761 = vmatprep.subr.mxu0 0.0
          %762 = vmatpush1.msra.mxu0 0.0
          %763 = vmatprep.subr.mxu0 0.0
          %764 = vmatpush1.msra.mxu0 0.0
          %765 = vmatprep.subr.mxu0 0.0
          %766 = vmatpush1.msra.mxu0 0.0
          %767 = vmatprep.subr.mxu0 0.0
          %768 = vmatpush1.msra.mxu0 0.0
          %769 = vmatprep.subr.mxu0 0.0
          %770 = vmatpush1.msra.mxu0 0.0
          %771 = vmatprep.subr.mxu0 0.0
          %772 = vmatpush1.msra.mxu0 0.0
          %773 = vmatprep.subr.mxu0 0.0
          %774 = vmatpush1.msra.mxu0 0.0
          %775 = vmatprep.subr.mxu0 0.0
          %776 = vmatpush1.msra.mxu0 0.0
          %777 = vmatprep.subr.mxu0 0.0
          %778 = vmatpush1.msra.mxu0 0.0
          %779 = vmatprep.subr.mxu0 0.0
          %780 = vmatpush1.msra.mxu0 0.0
          %781 = vmatprep.subr.mxu0 0.0
          %782 = vmatpush1.msra.mxu0 0.0
          %783 = vmatprep.subr.mxu0 0.0
          %784 = vmatpush1.msra.mxu0 0.0
          %785 = vmatprep.subr.mxu0 0.0
          %786 = vmatpush1.msra.mxu0 0.0
          %787 = vmatprep.subr.mxu0 0.0
          %788 = vmatpush1.msra.mxu0 0.0
          %789 = vmatprep.subr.mxu0 0.0
          %790 = vmatpush1.msra.mxu0 0.0
          %791 = vmatprep.subr.mxu0 0.0
          %792 = vmatpush1.msra.mxu0 0.0
          %793 = vmatprep.subr.mxu0 0.0
          %794 = vmatpush1.msra.mxu0 0.0
          %795 = vmatprep.subr.mxu0 0.0
          %796 = vmatpush1.msra.mxu0 0.0
          %797 = vmatprep.subr.mxu0 0.0
          %798 = vmatpush1.msra.mxu0 0.0
          %799 = vmatprep.subr.mxu0 0.0
          %800 = vmatpush1.msra.mxu0 0.0
          %801 = vmatprep.subr.mxu0 0.0
          %802 = vmatpush1.msra.mxu0 0.0
          %803 = vmatprep.subr.mxu0 0.0
          %804 = vmatpush1.msra.mxu0 0.0
          %805 = vmatprep.subr.mxu0 0.0
          %806 = vmatpush1.msra.mxu0 0.0
          %807 = vmatprep.subr.mxu0 0.0
          %808 = vmatpush1.msra.mxu0 0.0
          %809 = vmatprep.subr.mxu0 0.0
          %810 = vmatpush1.msra.mxu0 0.0
          %811 = vmatprep.subr.mxu0 0.0
          %812 = vmatpush1.msra.mxu0 0.0
          %813 = vmatprep.mubr.f32.mxu0 0.0
          %814 = vmatmul.mubr.f32.gmra.mrb[0].mxu0 %v666
          %v815 = vpop.f32.mrb[0].mxu0
          %v816 = vadd.f32 %v747, %v815
          %v817 = vpop.f32.mrb[0].mxu0
          %818 = vdwg.mxu0
          %820 = vrot.lane.b32.xlu0 %v735, 120
          %v821 = vpop.permute.xlu0 %820
          %823 = vrot.lane.b32.xlu0 %v735, 112
          %v824 = vpop.permute.xlu0 %823
          %826 = vrot.lane.b32.xlu0 %v735, 104
          %v827 = vpop.permute.xlu0 %826
          %v829 = vcombine.low %v735, %v824
          %v830 = vcombine.high %v735, %v824
          %v832 = vunpack.c.l.s4 1983009808
          %v833 = vunpack.c.0.s8 %v832
          %v834 = vlaneseq
          %v835 = vshrl.u32 %v834, 7
          %v836 = vsub.s32 %v833, %v835
          %v837 = vrot.slane %v829, %v836
          %v839 = vunpack.c.l.s4 1983009808
          %v840 = vunpack.c.0.s8 %v839
          %v841 = vlaneseq
          %v842 = vshrl.u32 %v841, 7
          %v843 = vsub.s32 %v840, %v842
          %v844 = vrot.slane %v830, %v843
          %v845 = vcombine.low %v821, %v827
          %v846 = vcombine.high %v821, %v827
          %v848 = vunpack.c.l.s4 1983009808
          %v849 = vunpack.c.0.s8 %v848
          %v850 = vlaneseq
          %v851 = vshrl.u32 %v850, 7
          %v852 = vsub.s32 %v849, %v851
          %v853 = vrot.slane %v845, %v852
          %v855 = vunpack.c.l.s4 1983009808
          %v856 = vunpack.c.0.s8 %v855
          %v857 = vlaneseq
          %v858 = vshrl.u32 %v857, 7
          %v859 = vsub.s32 %v856, %v858
          %v860 = vrot.slane %v846, %v859
          %v861 = vcombine.low %v837, %v853
          %v862 = vcombine.high %v837, %v853
          %v864 = vunpack.c.l.s4 1934713408
          %v865 = vunpack.c.0.s8 %v864
          %v866 = vlaneseq
          %v867 = vshrl.u32 %v866, 7
          %v868 = vsub.s32 %v865, %v867
          %v869 = vrot.slane %v861, %v868
          %v871 = vunpack.c.l.s4 1934713408
          %v872 = vunpack.c.0.s8 %v871
          %v873 = vlaneseq
          %v874 = vshrl.u32 %v873, 7
          %v875 = vsub.s32 %v872, %v874
          %v876 = vrot.slane %v862, %v875
          %v877 = vcombine.low %v844, %v860
          %v878 = vcombine.high %v844, %v860
          %v880 = vunpack.c.l.s4 1934713408
          %v881 = vunpack.c.0.s8 %v880
          %v882 = vlaneseq
          %v883 = vshrl.u32 %v882, 7
          %v884 = vsub.s32 %v881, %v883
          %v885 = vrot.slane %v877, %v884
          %v887 = vunpack.c.l.s4 1934713408
          %v888 = vunpack.c.0.s8 %v887
          %v889 = vlaneseq
          %v890 = vshrl.u32 %v889, 7
          %v891 = vsub.s32 %v888, %v890
          %v892 = vrot.slane %v878, %v891
          %v893 = vcombine.high %v869, 0.0
          %v894 = vcombine.high %v876, 0.0
          %v895 = vcombine.high %v885, 0.0
          %v896 = vcombine.high %v892, 0.0
          %v897 = vcombine.low %v869, %v876
          %v899 = vunpack.c.l.s4 1983009808
          %v900 = vunpack.c.0.s8 %v899
          %v901 = vlaneseq
          %v902 = vshrl.u32 %v901, 7
          %v903 = vsub.s32 %v900, %v902
          %v904 = vrot.slane %v897, %v903
          %v905 = vcombine.low %v893, %v894
          %v907 = vunpack.c.l.s4 1983009808
          %v908 = vunpack.c.0.s8 %v907
          %v909 = vlaneseq
          %v910 = vshrl.u32 %v909, 7
          %v911 = vsub.s32 %v908, %v910
          %v912 = vrot.slane %v905, %v911
          %v913 = vcombine.low %v885, %v892
          %v915 = vunpack.c.l.s4 1983009808
          %v916 = vunpack.c.0.s8 %v915
          %v917 = vlaneseq
          %v918 = vshrl.u32 %v917, 7
          %v919 = vsub.s32 %v916, %v918
          %v920 = vrot.slane %v913, %v919
          %v921 = vcombine.low %v895, %v896
          %v923 = vunpack.c.l.s4 1983009808
          %v924 = vunpack.c.0.s8 %v923
          %v925 = vlaneseq
          %v926 = vshrl.u32 %v925, 7
          %v927 = vsub.s32 %v924, %v926
          %v928 = vrot.slane %v921, %v927
          %v929 = vcombine.low %v904, %v912
          %v930 = vcombine.high %v904, %v912
          %v932 = vunpack.c.l.s4 1934713408
          %v933 = vunpack.c.0.s8 %v932
          %v934 = vlaneseq
          %v935 = vshrl.u32 %v934, 7
          %v936 = vsub.s32 %v933, %v935
          %v937 = vrot.slane %v929, %v936
          %v939 = vunpack.c.l.s4 1934713408
          %v940 = vunpack.c.0.s8 %v939
          %v941 = vlaneseq
          %v942 = vshrl.u32 %v941, 7
          %v943 = vsub.s32 %v940, %v942
          %v944 = vrot.slane %v930, %v943
          %v945 = vcombine.low %v920, %v928
          %v946 = vcombine.high %v920, %v928
          %v948 = vunpack.c.l.s4 1934713408
          %v949 = vunpack.c.0.s8 %v948
          %v950 = vlaneseq
          %v951 = vshrl.u32 %v950, 7
          %v952 = vsub.s32 %v949, %v951
          %v953 = vrot.slane %v945, %v952
          %v955 = vunpack.c.l.s4 1934713408
          %v956 = vunpack.c.0.s8 %v955
          %v957 = vlaneseq
          %v958 = vshrl.u32 %v957, 7
          %v959 = vsub.s32 %v956, %v958
          %v960 = vrot.slane %v946, %v959
          %v961 = vcombine.low %v937, %v953
          %v962 = vcombine.high %v937, %v953
          %v963 = vcombine.low %v944, %v960
          %v964 = vcombine.high %v944, %v960
          %vm965 = vcmask 64512
          %966 = vst.msk [vmem:[#allocation2] sm:$0xff] %vm965, %v961
          %967 = vst.msk [vmem:[#allocation2 + $0x8] sm:$0xff] %vm965, %v962
          %968 = vst.msk [vmem:[#allocation2 + $0x10] sm:$0xff] %vm965, %v963
          %969 = vst.msk [vmem:[#allocation2 + $0x18] sm:$0xff] %vm965, %v964
          %971 = vrot.lane.b32.xlu0 %v816, 120
          %v972 = vpop.permute.xlu0 %971
          %974 = vrot.lane.b32.xlu0 %v816, 112
          %v975 = vpop.permute.xlu0 %974
          %977 = vrot.lane.b32.xlu0 %v816, 104
          %v978 = vpop.permute.xlu0 %977
          %v980 = vcombine.low %v816, %v975
          %v981 = vcombine.high %v816, %v975
          %v983 = vunpack.c.l.s4 1983009808
          %v984 = vunpack.c.0.s8 %v983
          %v985 = vlaneseq
          %v986 = vshrl.u32 %v985, 7
          %v987 = vsub.s32 %v984, %v986
          %v988 = vrot.slane %v980, %v987
          %v990 = vunpack.c.l.s4 1983009808
          %v991 = vunpack.c.0.s8 %v990
          %v992 = vlaneseq
          %v993 = vshrl.u32 %v992, 7
          %v994 = vsub.s32 %v991, %v993
          %v995 = vrot.slane %v981, %v994
          %v996 = vcombine.low %v972, %v978
          %v997 = vcombine.high %v972, %v978
          %v999 = vunpack.c.l.s4 1983009808
          %v1000 = vunpack.c.0.s8 %v999
          %v1001 = vlaneseq
          %v1002 = vshrl.u32 %v1001, 7
          %v1003 = vsub.s32 %v1000, %v1002
          %v1004 = vrot.slane %v996, %v1003
          %v1006 = vunpack.c.l.s4 1983009808
          %v1007 = vunpack.c.0.s8 %v1006
          %v1008 = vlaneseq
          %v1009 = vshrl.u32 %v1008, 7
          %v1010 = vsub.s32 %v1007, %v1009
          %v1011 = vrot.slane %v997, %v1010
          %v1012 = vcombine.low %v988, %v1004
          %v1013 = vcombine.high %v988, %v1004
          %v1015 = vunpack.c.l.s4 1934713408
          %v1016 = vunpack.c.0.s8 %v1015
          %v1017 = vlaneseq
          %v1018 = vshrl.u32 %v1017, 7
          %v1019 = vsub.s32 %v1016, %v1018
          %v1020 = vrot.slane %v1012, %v1019
          %v1022 = vunpack.c.l.s4 1934713408
          %v1023 = vunpack.c.0.s8 %v1022
          %v1024 = vlaneseq
          %v1025 = vshrl.u32 %v1024, 7
          %v1026 = vsub.s32 %v1023, %v1025
          %v1027 = vrot.slane %v1013, %v1026
          %v1028 = vcombine.low %v995, %v1011
          %v1029 = vcombine.high %v995, %v1011
          %v1031 = vunpack.c.l.s4 1934713408
          %v1032 = vunpack.c.0.s8 %v1031
          %v1033 = vlaneseq
          %v1034 = vshrl.u32 %v1033, 7
          %v1035 = vsub.s32 %v1032, %v1034
          %v1036 = vrot.slane %v1028, %v1035
          %v1038 = vunpack.c.l.s4 1934713408
          %v1039 = vunpack.c.0.s8 %v1038
          %v1040 = vlaneseq
          %v1041 = vshrl.u32 %v1040, 7
          %v1042 = vsub.s32 %v1039, %v1041
          %v1043 = vrot.slane %v1029, %v1042
          %v1044 = vcombine.high %v1020, 0.0
          %v1045 = vcombine.high %v1027, 0.0
          %v1046 = vcombine.high %v1036, 0.0
          %v1047 = vcombine.high %v1043, 0.0
          %v1048 = vcombine.low %v1020, %v1027
          %v1050 = vunpack.c.l.s4 1983009808
          %v1051 = vunpack.c.0.s8 %v1050
          %v1052 = vlaneseq
          %v1053 = vshrl.u32 %v1052, 7
          %v1054 = vsub.s32 %v1051, %v1053
          %v1055 = vrot.slane %v1048, %v1054
          %v1056 = vcombine.low %v1044, %v1045
          %v1058 = vunpack.c.l.s4 1983009808
          %v1059 = vunpack.c.0.s8 %v1058
          %v1060 = vlaneseq
          %v1061 = vshrl.u32 %v1060, 7
          %v1062 = vsub.s32 %v1059, %v1061
          %v1063 = vrot.slane %v1056, %v1062
          %v1064 = vcombine.low %v1036, %v1043
          %v1066 = vunpack.c.l.s4 1983009808
          %v1067 = vunpack.c.0.s8 %v1066
          %v1068 = vlaneseq
          %v1069 = vshrl.u32 %v1068, 7
          %v1070 = vsub.s32 %v1067, %v1069
          %v1071 = vrot.slane %v1064, %v1070
          %v1072 = vcombine.low %v1046, %v1047
          %v1074 = vunpack.c.l.s4 1983009808
          %v1075 = vunpack.c.0.s8 %v1074
          %v1076 = vlaneseq
          %v1077 = vshrl.u32 %v1076, 7
          %v1078 = vsub.s32 %v1075, %v1077
          %v1079 = vrot.slane %v1072, %v1078
          %v1080 = vcombine.low %v1055, %v1063
          %v1081 = vcombine.high %v1055, %v1063
          %v1083 = vunpack.c.l.s4 1934713408
          %v1084 = vunpack.c.0.s8 %v1083
          %v1085 = vlaneseq
          %v1086 = vshrl.u32 %v1085, 7
          %v1087 = vsub.s32 %v1084, %v1086
          %v1088 = vrot.slane %v1080, %v1087
          %v1090 = vunpack.c.l.s4 1934713408
          %v1091 = vunpack.c.0.s8 %v1090
          %v1092 = vlaneseq
          %v1093 = vshrl.u32 %v1092, 7
          %v1094 = vsub.s32 %v1091, %v1093
          %v1095 = vrot.slane %v1081, %v1094
          %v1096 = vcombine.low %v1071, %v1079
          %v1097 = vcombine.high %v1071, %v1079
          %v1099 = vunpack.c.l.s4 1934713408
          %v1100 = vunpack.c.0.s8 %v1099
          %v1101 = vlaneseq
          %v1102 = vshrl.u32 %v1101, 7
          %v1103 = vsub.s32 %v1100, %v1102
          %v1104 = vrot.slane %v1096, %v1103
          %v1106 = vunpack.c.l.s4 1934713408
          %v1107 = vunpack.c.0.s8 %v1106
          %v1108 = vlaneseq
          %v1109 = vshrl.u32 %v1108, 7
          %v1110 = vsub.s32 %v1107, %v1109
          %v1111 = vrot.slane %v1097, %v1110
          %v1112 = vcombine.low %v1088, %v1104
          %v1113 = vcombine.high %v1088, %v1104
          %v1114 = vcombine.low %v1095, %v1111
          %v1115 = vcombine.high %v1095, %v1111
          %1116 = vst.msk [vmem:[#allocation3] sm:$0xff] %vm965, %v1112
          %1117 = vst.msk [vmem:[#allocation3 + $0x8] sm:$0xff] %vm965, %v1113
          %1118 = vst.msk [vmem:[#allocation3 + $0x10] sm:$0xff] %vm965, %v1114
          %1119 = vst.msk [vmem:[#allocation3 + $0x18] sm:$0xff] %vm965, %v1115
        $region108: #{tpu_custom_call.1} parent=91 // pred_fallthru
          _
        %s1120 = smul.u32 %s41, 8
        %s1121 = scalar_lea.vmem %s581, %s1120 [#allocation4]
        %v1122 = vld [vmem:[%s1121] sm:$0xff]
        %v1123 = vld [vmem:[%s647] sm:$0x1]
        %v1124 = vld [vmem:[%s2] sm:$0xff]
        %v1125 = vld [vmem:[%s2 + $0x8] sm:$0xff]
        %v1126 = vld [vmem:[%s2 + $0x10] sm:$0xff]
        %v1127 = vld [vmem:[%s2 + $0x18] sm:$0xff]
        %v1128 = vld [vmem:[%s3] sm:$0x1]
        %v1130 = vlaneseq
        %v1131 = vshrl.u32 %v1130, 7
        %v1132 = vsub.s32 0, %v1131
        %v1133 = vrot.slane %v1128, %v1132
        %vm1135 = vcmask 261120
        %v1137 = vsel %vm1135, %v1122, 0
        %1139 = vmatprep.subr.mxu0 0.0
        %1140 = vmatpush1.msra.mxu0 %v1124
        %1141 = vmatprep.subr.mxu0 0.0
        %1142 = vmatpush1.msra.mxu0 %v1125
        %1143 = vmatprep.subr.mxu0 0.0
        %1144 = vmatpush1.msra.mxu0 %v1126
        %1145 = vmatprep.subr.mxu0 0.0
        %1146 = vmatpush1.msra.mxu0 %v1127
        %1147 = vmatprep.subr.mxu0 0.0
        %1148 = vmatpush1.msra.mxu0 0.0
        %1149 = vmatprep.subr.mxu0 0.0
        %1150 = vmatpush1.msra.mxu0 0.0
        %1151 = vmatprep.subr.mxu0 0.0
        %1152 = vmatpush1.msra.mxu0 0.0
        %1153 = vmatprep.subr.mxu0 0.0
        %1154 = vmatpush1.msra.mxu0 0.0
        %1155 = vmatprep.subr.mxu0 0.0
        %1156 = vmatpush1.msra.mxu0 0.0
        %1157 = vmatprep.subr.mxu0 0.0
        %1158 = vmatpush1.msra.mxu0 0.0
        %1159 = vmatprep.subr.mxu0 0.0
        %1160 = vmatpush1.msra.mxu0 0.0
        %1161 = vmatprep.subr.mxu0 0.0
        %1162 = vmatpush1.msra.mxu0 0.0
        %1163 = vmatprep.subr.mxu0 0.0
        %1164 = vmatpush1.msra.mxu0 0.0
        %1165 = vmatprep.subr.mxu0 0.0
        %1166 = vmatpush1.msra.mxu0 0.0
        %1167 = vmatprep.subr.mxu0 0.0
        %1168 = vmatpush1.msra.mxu0 0.0
        %1169 = vmatprep.subr.mxu0 0.0
        %1170 = vmatpush1.msra.mxu0 0.0
        %1171 = vmatprep.subr.mxu0 0.0
        %1172 = vmatpush1.msra.mxu0 0.0
        %1173 = vmatprep.subr.mxu0 0.0
        %1174 = vmatpush1.msra.mxu0 0.0
        %1175 = vmatprep.subr.mxu0 0.0
        %1176 = vmatpush1.msra.mxu0 0.0
        %1177 = vmatprep.subr.mxu0 0.0
        %1178 = vmatpush1.msra.mxu0 0.0
        %1179 = vmatprep.subr.mxu0 0.0
        %1180 = vmatpush1.msra.mxu0 0.0
        %1181 = vmatprep.subr.mxu0 0.0
        %1182 = vmatpush1.msra.mxu0 0.0
        %1183 = vmatprep.subr.mxu0 0.0
        %1184 = vmatpush1.msra.mxu0 0.0
        %1185 = vmatprep.subr.mxu0 0.0
        %1186 = vmatpush1.msra.mxu0 0.0
        %1187 = vmatprep.subr.mxu0 0.0
        %1188 = vmatpush1.msra.mxu0 0.0
        %1189 = vmatprep.subr.mxu0 0.0
        %1190 = vmatpush1.msra.mxu0 0.0
        %1191 = vmatprep.subr.mxu0 0.0
        %1192 = vmatpush1.msra.mxu0 0.0
        %1193 = vmatprep.subr.mxu0 0.0
        %1194 = vmatpush1.msra.mxu0 0.0
        %1195 = vmatprep.subr.mxu0 0.0
        %1196 = vmatpush1.msra.mxu0 0.0
        %1197 = vmatprep.subr.mxu0 0.0
        %1198 = vmatpush1.msra.mxu0 0.0
        %1199 = vmatprep.subr.mxu0 0.0
        %1200 = vmatpush1.msra.mxu0 0.0
        %1201 = vmatprep.subr.mxu0 0.0
        %1202 = vmatpush1.msra.mxu0 0.0
        %1203 = vmatprep.mubr.f32.mxu0 0.0
        %1204 = vmatmul.mubr.f32.gmra.mrb[0].mxu0 %v1137
        %v1205 = vpop.f32.mrb[0].mxu0
        %v1206 = vadd.f32 %v1133, %v1205
        %v1207 = vpop.f32.mrb[0].mxu0
        %1208 = vdwg.mxu0
        %v1209 = vmul.f32 %v1206, 0.35355338
        %1211 = vrot.lane.b32.xlu0 %v1209, 120
        %v1212 = vpop.permute.xlu0 %1211
        %1214 = vrot.lane.b32.xlu0 %v1209, 112
        %v1215 = vpop.permute.xlu0 %1214
        %1217 = vrot.lane.b32.xlu0 %v1209, 104
        %v1218 = vpop.permute.xlu0 %1217
        %v1220 = vcombine.low %v1209, %v1215
        %v1221 = vcombine.high %v1209, %v1215
        %v1223 = vunpack.c.l.s4 1983009808
        %v1224 = vunpack.c.0.s8 %v1223
        %v1225 = vlaneseq
        %v1226 = vshrl.u32 %v1225, 7
        %v1227 = vsub.s32 %v1224, %v1226
        %v1228 = vrot.slane %v1220, %v1227
        %v1230 = vunpack.c.l.s4 1983009808
        %v1231 = vunpack.c.0.s8 %v1230
        %v1232 = vlaneseq
        %v1233 = vshrl.u32 %v1232, 7
        %v1234 = vsub.s32 %v1231, %v1233
        %v1235 = vrot.slane %v1221, %v1234
        %v1236 = vcombine.low %v1212, %v1218
        %v1237 = vcombine.high %v1212, %v1218
        %v1239 = vunpack.c.l.s4 1983009808
        %v1240 = vunpack.c.0.s8 %v1239
        %v1241 = vlaneseq
        %v1242 = vshrl.u32 %v1241, 7
        %v1243 = vsub.s32 %v1240, %v1242
        %v1244 = vrot.slane %v1236, %v1243
        %v1246 = vunpack.c.l.s4 1983009808
        %v1247 = vunpack.c.0.s8 %v1246
        %v1248 = vlaneseq
        %v1249 = vshrl.u32 %v1248, 7
        %v1250 = vsub.s32 %v1247, %v1249
        %v1251 = vrot.slane %v1237, %v1250
        %v1252 = vcombine.low %v1228, %v1244
        %v1253 = vcombine.high %v1228, %v1244
        %v1255 = vunpack.c.l.s4 1934713408
        %v1256 = vunpack.c.0.s8 %v1255
        %v1257 = vlaneseq
        %v1258 = vshrl.u32 %v1257, 7
        %v1259 = vsub.s32 %v1256, %v1258
        %v1260 = vrot.slane %v1252, %v1259
        %v1262 = vunpack.c.l.s4 1934713408
        %v1263 = vunpack.c.0.s8 %v1262
        %v1264 = vlaneseq
        %v1265 = vshrl.u32 %v1264, 7
        %v1266 = vsub.s32 %v1263, %v1265
        %v1267 = vrot.slane %v1253, %v1266
        %v1268 = vcombine.low %v1235, %v1251
        %v1269 = vcombine.high %v1235, %v1251
        %v1271 = vunpack.c.l.s4 1934713408
        %v1272 = vunpack.c.0.s8 %v1271
        %v1273 = vlaneseq
        %v1274 = vshrl.u32 %v1273, 7
        %v1275 = vsub.s32 %v1272, %v1274
        %v1276 = vrot.slane %v1268, %v1275
        %v1278 = vunpack.c.l.s4 1934713408
        %v1279 = vunpack.c.0.s8 %v1278
        %v1280 = vlaneseq
        %v1281 = vshrl.u32 %v1280, 7
        %v1282 = vsub.s32 %v1279, %v1281
        %v1283 = vrot.slane %v1269, %v1282
        %v1284 = vcombine.high %v1260, 0.0
        %v1285 = vcombine.high %v1267, 0.0
        %v1286 = vcombine.high %v1276, 0.0
        %v1287 = vcombine.high %v1283, 0.0
        %v1288 = vcombine.low %v1260, %v1267
        %v1290 = vunpack.c.l.s4 1983009808
        %v1291 = vunpack.c.0.s8 %v1290
        %v1292 = vlaneseq
        %v1293 = vshrl.u32 %v1292, 7
        %v1294 = vsub.s32 %v1291, %v1293
        %v1295 = vrot.slane %v1288, %v1294
        %v1296 = vcombine.low %v1284, %v1285
        %v1298 = vunpack.c.l.s4 1983009808
        %v1299 = vunpack.c.0.s8 %v1298
        %v1300 = vlaneseq
        %v1301 = vshrl.u32 %v1300, 7
        %v1302 = vsub.s32 %v1299, %v1301
        %v1303 = vrot.slane %v1296, %v1302
        %v1304 = vcombine.low %v1276, %v1283
        %v1306 = vunpack.c.l.s4 1983009808
        %v1307 = vunpack.c.0.s8 %v1306
        %v1308 = vlaneseq
        %v1309 = vshrl.u32 %v1308, 7
        %v1310 = vsub.s32 %v1307, %v1309
        %v1311 = vrot.slane %v1304, %v1310
        %v1312 = vcombine.low %v1286, %v1287
        %v1314 = vunpack.c.l.s4 1983009808
        %v1315 = vunpack.c.0.s8 %v1314
        %v1316 = vlaneseq
        %v1317 = vshrl.u32 %v1316, 7
        %v1318 = vsub.s32 %v1315, %v1317
        %v1319 = vrot.slane %v1312, %v1318
        %v1320 = vcombine.low %v1295, %v1303
        %v1321 = vcombine.high %v1295, %v1303
        %v1323 = vunpack.c.l.s4 1934713408
        %v1324 = vunpack.c.0.s8 %v1323
        %v1325 = vlaneseq
        %v1326 = vshrl.u32 %v1325, 7
        %v1327 = vsub.s32 %v1324, %v1326
        %v1328 = vrot.slane %v1320, %v1327
        %v1330 = vunpack.c.l.s4 1934713408
        %v1331 = vunpack.c.0.s8 %v1330
        %v1332 = vlaneseq
        %v1333 = vshrl.u32 %v1332, 7
        %v1334 = vsub.s32 %v1331, %v1333
        %v1335 = vrot.slane %v1321, %v1334
        %v1336 = vcombine.low %v1311, %v1319
        %v1337 = vcombine.high %v1311, %v1319
        %v1339 = vunpack.c.l.s4 1934713408
        %v1340 = vunpack.c.0.s8 %v1339
        %v1341 = vlaneseq
        %v1342 = vshrl.u32 %v1341, 7
        %v1343 = vsub.s32 %v1340, %v1342
        %v1344 = vrot.slane %v1336, %v1343
        %v1346 = vunpack.c.l.s4 1934713408
        %v1347 = vunpack.c.0.s8 %v1346
        %v1348 = vlaneseq
        %v1349 = vshrl.u32 %v1348, 7
        %v1350 = vsub.s32 %v1347, %v1349
        %v1351 = vrot.slane %v1337, %v1350
        %v1352 = vcombine.low %v1328, %v1344
        %v1353 = vcombine.high %v1328, %v1344
        %v1354 = vcombine.low %v1335, %v1351
        %v1355 = vcombine.high %v1335, %v1351
        %v1356 = vld [vmem:[#allocation2] sm:$0xff]
        %v1357 = vld [vmem:[#allocation2 + $0x8] sm:$0xff]
        %v1358 = vld [vmem:[#allocation2 + $0x10] sm:$0xff]
        %v1359 = vld [vmem:[#allocation2 + $0x18] sm:$0xff]
        %v1361 = vlaneseq
        %v1362 = vshrl.u32 %v1361, 7
        %v1363 = vsub.s32 0, %v1362
        %v1364 = vrot.slane %v1123, %v1363
        %vm1366 = vcmask 64512
        %v1368 = vsel %vm1366, %v1352, 0
        %v1371 = vsel %vm1366, %v1356, 0
        %1373 = vmatprep.subr.mxu0 0.0
        %1374 = vmatpush1.xpose.msra.mxu0 %v1371
        %1375 = vmatprep.subr.mxu0 0.0
        %1376 = vmatpush1.xpose.msra.mxu0 0.0
        %1377 = vmatprep.subr.mxu0 0.0
        %1378 = vmatpush1.xpose.msra.mxu0 0.0
        %1379 = vmatprep.subr.mxu0 0.0
        %1380 = vmatpush1.xpose.msra.mxu0 0.0
        %1381 = vmatprep.subr.mxu0 0.0
        %1382 = vmatpush1.xpose.msra.mxu0 0.0
        %1383 = vmatprep.subr.mxu0 0.0
        %1384 = vmatpush1.xpose.msra.mxu0 0.0
        %1385 = vmatprep.subr.mxu0 0.0
        %1386 = vmatpush1.xpose.msra.mxu0 0.0
        %1387 = vmatprep.subr.mxu0 0.0
        %1388 = vmatpush1.xpose.msra.mxu0 0.0
        %1389 = vmatprep.subr.mxu0 0.0
        %1390 = vmatpush1.xpose.msra.mxu0 0.0
        %1391 = vmatprep.subr.mxu0 0.0
        %1392 = vmatpush1.xpose.msra.mxu0 0.0
        %1393 = vmatprep.subr.mxu0 0.0
        %1394 = vmatpush1.xpose.msra.mxu0 0.0
        %1395 = vmatprep.subr.mxu0 0.0
        %1396 = vmatpush1.xpose.msra.mxu0 0.0
        %1397 = vmatprep.subr.mxu0 0.0
        %1398 = vmatpush1.xpose.msra.mxu0 0.0
        %1399 = vmatprep.subr.mxu0 0.0
        %1400 = vmatpush1.xpose.msra.mxu0 0.0
        %1401 = vmatprep.subr.mxu0 0.0
        %1402 = vmatpush1.xpose.msra.mxu0 0.0
        %1403 = vmatprep.subr.mxu0 0.0
        %1404 = vmatpush1.xpose.msra.mxu0 0.0
        %1405 = vmatprep.subr.mxu0 0.0
        %1406 = vmatpush1.xpose.msra.mxu0 0.0
        %1407 = vmatprep.subr.mxu0 0.0
        %1408 = vmatpush1.xpose.msra.mxu0 0.0
        %1409 = vmatprep.subr.mxu0 0.0
        %1410 = vmatpush1.xpose.msra.mxu0 0.0
        %1411 = vmatprep.subr.mxu0 0.0
        %1412 = vmatpush1.xpose.msra.mxu0 0.0
        %1413 = vmatprep.subr.mxu0 0.0
        %1414 = vmatpush1.xpose.msra.mxu0 0.0
        %1415 = vmatprep.subr.mxu0 0.0
        %1416 = vmatpush1.xpose.msra.mxu0 0.0
        %1417 = vmatprep.subr.mxu0 0.0
        %1418 = vmatpush1.xpose.msra.mxu0 0.0
        %1419 = vmatprep.subr.mxu0 0.0
        %1420 = vmatpush1.xpose.msra.mxu0 0.0
        %1421 = vmatprep.subr.mxu0 0.0
        %1422 = vmatpush1.xpose.msra.mxu0 0.0
        %1423 = vmatprep.subr.mxu0 0.0
        %1424 = vmatpush1.xpose.msra.mxu0 0.0
        %1425 = vmatprep.subr.mxu0 0.0
        %1426 = vmatpush1.xpose.msra.mxu0 0.0
        %1427 = vmatprep.subr.mxu0 0.0
        %1428 = vmatpush1.xpose.msra.mxu0 0.0
        %1429 = vmatprep.subr.mxu0 0.0
        %1430 = vmatpush1.xpose.msra.mxu0 0.0
        %1431 = vmatprep.subr.mxu0 0.0
        %1432 = vmatpush1.xpose.msra.mxu0 0.0
        %1433 = vmatprep.subr.mxu0 0.0
        %1434 = vmatpush1.xpose.msra.mxu0 0.0
        %1435 = vmatprep.subr.mxu0 0.0
        %1436 = vmatpush1.xpose.msra.mxu0 0.0
        %1437 = vmatprep.mubr.f32.mxu0 0.0
        %1438 = vmatmul.mubr.f32.gmra.mrb[0].mxu0 %v1368
        %v1439 = vpop.f32.mrb[0].mxu0
        %v1440 = vadd.f32 %v1364, %v1439
        %v1441 = vpop.f32.mrb[0].mxu0
        %1442 = vdwg.mxu0
        %v1444 = vsel %vm1366, %v1353, 0
        %v1447 = vsel %vm1366, %v1357, 0
        %1449 = vmatprep.subr.mxu0 0.0
        %1450 = vmatpush1.xpose.msra.mxu0 %v1447
        %1451 = vmatprep.subr.mxu0 0.0
        %1452 = vmatpush1.xpose.msra.mxu0 0.0
        %1453 = vmatprep.subr.mxu0 0.0
        %1454 = vmatpush1.xpose.msra.mxu0 0.0
        %1455 = vmatprep.subr.mxu0 0.0
        %1456 = vmatpush1.xpose.msra.mxu0 0.0
        %1457 = vmatprep.subr.mxu0 0.0
        %1458 = vmatpush1.xpose.msra.mxu0 0.0
        %1459 = vmatprep.subr.mxu0 0.0
        %1460 = vmatpush1.xpose.msra.mxu0 0.0
        %1461 = vmatprep.subr.mxu0 0.0
        %1462 = vmatpush1.xpose.msra.mxu0 0.0
        %1463 = vmatprep.subr.mxu0 0.0
        %1464 = vmatpush1.xpose.msra.mxu0 0.0
        %1465 = vmatprep.subr.mxu0 0.0
        %1466 = vmatpush1.xpose.msra.mxu0 0.0
        %1467 = vmatprep.subr.mxu0 0.0
        %1468 = vmatpush1.xpose.msra.mxu0 0.0
        %1469 = vmatprep.subr.mxu0 0.0
        %1470 = vmatpush1.xpose.msra.mxu0 0.0
        %1471 = vmatprep.subr.mxu0 0.0
        %1472 = vmatpush1.xpose.msra.mxu0 0.0
        %1473 = vmatprep.subr.mxu0 0.0
        %1474 = vmatpush1.xpose.msra.mxu0 0.0
        %1475 = vmatprep.subr.mxu0 0.0
        %1476 = vmatpush1.xpose.msra.mxu0 0.0
        %1477 = vmatprep.subr.mxu0 0.0
        %1478 = vmatpush1.xpose.msra.mxu0 0.0
        %1479 = vmatprep.subr.mxu0 0.0
        %1480 = vmatpush1.xpose.msra.mxu0 0.0
        %1481 = vmatprep.subr.mxu0 0.0
        %1482 = vmatpush1.xpose.msra.mxu0 0.0
        %1483 = vmatprep.subr.mxu0 0.0
        %1484 = vmatpush1.xpose.msra.mxu0 0.0
        %1485 = vmatprep.subr.mxu0 0.0
        %1486 = vmatpush1.xpose.msra.mxu0 0.0
        %1487 = vmatprep.subr.mxu0 0.0
        %1488 = vmatpush1.xpose.msra.mxu0 0.0
        %1489 = vmatprep.subr.mxu0 0.0
        %1490 = vmatpush1.xpose.msra.mxu0 0.0
        %1491 = vmatprep.subr.mxu0 0.0
        %1492 = vmatpush1.xpose.msra.mxu0 0.0
        %1493 = vmatprep.subr.mxu0 0.0
        %1494 = vmatpush1.xpose.msra.mxu0 0.0
        %1495 = vmatprep.subr.mxu0 0.0
        %1496 = vmatpush1.xpose.msra.mxu0 0.0
        %1497 = vmatprep.subr.mxu0 0.0
        %1498 = vmatpush1.xpose.msra.mxu0 0.0
        %1499 = vmatprep.subr.mxu0 0.0
        %1500 = vmatpush1.xpose.msra.mxu0 0.0
        %1501 = vmatprep.subr.mxu0 0.0
        %1502 = vmatpush1.xpose.msra.mxu0 0.0
        %1503 = vmatprep.subr.mxu0 0.0
        %1504 = vmatpush1.xpose.msra.mxu0 0.0
        %1505 = vmatprep.subr.mxu0 0.0
        %1506 = vmatpush1.xpose.msra.mxu0 0.0
        %1507 = vmatprep.subr.mxu0 0.0
        %1508 = vmatpush1.xpose.msra.mxu0 0.0
        %1509 = vmatprep.subr.mxu0 0.0
        %1510 = vmatpush1.xpose.msra.mxu0 0.0
        %1511 = vmatprep.subr.mxu0 0.0
        %1512 = vmatpush1.xpose.msra.mxu0 0.0
        %1513 = vmatprep.mubr.f32.mxu0 0.0
        %1514 = vmatmul.mubr.f32.gmra.mrb[0].mxu0 %v1444
        %v1515 = vpop.f32.mrb[0].mxu0
        %v1516 = vadd.f32 %v1364, %v1515
        %v1517 = vpop.f32.mrb[0].mxu0
        %1518 = vdwg.mxu0
        %v1520 = vsel %vm1366, %v1354, 0
        %v1523 = vsel %vm1366, %v1358, 0
        %1525 = vmatprep.subr.mxu0 0.0
        %1526 = vmatpush1.xpose.msra.mxu0 %v1523
        %1527 = vmatprep.subr.mxu0 0.0
        %1528 = vmatpush1.xpose.msra.mxu0 0.0
        %1529 = vmatprep.subr.mxu0 0.0
        %1530 = vmatpush1.xpose.msra.mxu0 0.0
        %1531 = vmatprep.subr.mxu0 0.0
        %1532 = vmatpush1.xpose.msra.mxu0 0.0
        %1533 = vmatprep.subr.mxu0 0.0
        %1534 = vmatpush1.xpose.msra.mxu0 0.0
        %1535 = vmatprep.subr.mxu0 0.0
        %1536 = vmatpush1.xpose.msra.mxu0 0.0
        %1537 = vmatprep.subr.mxu0 0.0
        %1538 = vmatpush1.xpose.msra.mxu0 0.0
        %1539 = vmatprep.subr.mxu0 0.0
        %1540 = vmatpush1.xpose.msra.mxu0 0.0
        %1541 = vmatprep.subr.mxu0 0.0
        %1542 = vmatpush1.xpose.msra.mxu0 0.0
        %1543 = vmatprep.subr.mxu0 0.0
        %1544 = vmatpush1.xpose.msra.mxu0 0.0
        %1545 = vmatprep.subr.mxu0 0.0
        %1546 = vmatpush1.xpose.msra.mxu0 0.0
        %1547 = vmatprep.subr.mxu0 0.0
        %1548 = vmatpush1.xpose.msra.mxu0 0.0
        %1549 = vmatprep.subr.mxu0 0.0
        %1550 = vmatpush1.xpose.msra.mxu0 0.0
        %1551 = vmatprep.subr.mxu0 0.0
        %1552 = vmatpush1.xpose.msra.mxu0 0.0
        %1553 = vmatprep.subr.mxu0 0.0
        %1554 = vmatpush1.xpose.msra.mxu0 0.0
        %1555 = vmatprep.subr.mxu0 0.0
        %1556 = vmatpush1.xpose.msra.mxu0 0.0
        %1557 = vmatprep.subr.mxu0 0.0
        %1558 = vmatpush1.xpose.msra.mxu0 0.0
        %1559 = vmatprep.subr.mxu0 0.0
        %1560 = vmatpush1.xpose.msra.mxu0 0.0
        %1561 = vmatprep.subr.mxu0 0.0
        %1562 = vmatpush1.xpose.msra.mxu0 0.0
        %1563 = vmatprep.subr.mxu0 0.0
        %1564 = vmatpush1.xpose.msra.mxu0 0.0
        %1565 = vmatprep.subr.mxu0 0.0
        %1566 = vmatpush1.xpose.msra.mxu0 0.0
        %1567 = vmatprep.subr.mxu0 0.0
        %1568 = vmatpush1.xpose.msra.mxu0 0.0
        %1569 = vmatprep.subr.mxu0 0.0
        %1570 = vmatpush1.xpose.msra.mxu0 0.0
        %1571 = vmatprep.subr.mxu0 0.0
        %1572 = vmatpush1.xpose.msra.mxu0 0.0
        %1573 = vmatprep.subr.mxu0 0.0
        %1574 = vmatpush1.xpose.msra.mxu0 0.0
        %1575 = vmatprep.subr.mxu0 0.0
        %1576 = vmatpush1.xpose.msra.mxu0 0.0
        %1577 = vmatprep.subr.mxu0 0.0
        %1578 = vmatpush1.xpose.msra.mxu0 0.0
        %1579 = vmatprep.subr.mxu0 0.0
        %1580 = vmatpush1.xpose.msra.mxu0 0.0
        %1581 = vmatprep.subr.mxu0 0.0
        %1582 = vmatpush1.xpose.msra.mxu0 0.0
        %1583 = vmatprep.subr.mxu0 0.0
        %1584 = vmatpush1.xpose.msra.mxu0 0.0
        %1585 = vmatprep.subr.mxu0 0.0
        %1586 = vmatpush1.xpose.msra.mxu0 0.0
        %1587 = vmatprep.subr.mxu0 0.0
        %1588 = vmatpush1.xpose.msra.mxu0 0.0
        %1589 = vmatprep.mubr.f32.mxu0 0.0
        %1590 = vmatmul.mubr.f32.gmra.mrb[0].mxu0 %v1520
        %v1591 = vpop.f32.mrb[0].mxu0
        %v1592 = vadd.f32 %v1364, %v1591
        %v1593 = vpop.f32.mrb[0].mxu0
        %1594 = vdwg.mxu0
        %v1596 = vsel %vm1366, %v1355, 0
        %v1599 = vsel %vm1366, %v1359, 0
        %1601 = vmatprep.subr.mxu0 0.0
        %1602 = vmatpush1.xpose.msra.mxu0 %v1599
        %1603 = vmatprep.subr.mxu0 0.0
        %1604 = vmatpush1.xpose.msra.mxu0 0.0
        %1605 = vmatprep.subr.mxu0 0.0
        %1606 = vmatpush1.xpose.msra.mxu0 0.0
        %1607 = vmatprep.subr.mxu0 0.0
        %1608 = vmatpush1.xpose.msra.mxu0 0.0
        %1609 = vmatprep.subr.mxu0 0.0
        %1610 = vmatpush1.xpose.msra.mxu0 0.0
        %1611 = vmatprep.subr.mxu0 0.0
        %1612 = vmatpush1.xpose.msra.mxu0 0.0
        %1613 = vmatprep.subr.mxu0 0.0
        %1614 = vmatpush1.xpose.msra.mxu0 0.0
        %1615 = vmatprep.subr.mxu0 0.0
        %1616 = vmatpush1.xpose.msra.mxu0 0.0
        %1617 = vmatprep.subr.mxu0 0.0
        %1618 = vmatpush1.xpose.msra.mxu0 0.0
        %1619 = vmatprep.subr.mxu0 0.0
        %1620 = vmatpush1.xpose.msra.mxu0 0.0
        %1621 = vmatprep.subr.mxu0 0.0
        %1622 = vmatpush1.xpose.msra.mxu0 0.0
        %1623 = vmatprep.subr.mxu0 0.0
        %1624 = vmatpush1.xpose.msra.mxu0 0.0
        %1625 = vmatprep.subr.mxu0 0.0
        %1626 = vmatpush1.xpose.msra.mxu0 0.0
        %1627 = vmatprep.subr.mxu0 0.0
        %1628 = vmatpush1.xpose.msra.mxu0 0.0
        %1629 = vmatprep.subr.mxu0 0.0
        %1630 = vmatpush1.xpose.msra.mxu0 0.0
        %1631 = vmatprep.subr.mxu0 0.0
        %1632 = vmatpush1.xpose.msra.mxu0 0.0
        %1633 = vmatprep.subr.mxu0 0.0
        %1634 = vmatpush1.xpose.msra.mxu0 0.0
        %1635 = vmatprep.subr.mxu0 0.0
        %1636 = vmatpush1.xpose.msra.mxu0 0.0
        %1637 = vmatprep.subr.mxu0 0.0
        %1638 = vmatpush1.xpose.msra.mxu0 0.0
        %1639 = vmatprep.subr.mxu0 0.0
        %1640 = vmatpush1.xpose.msra.mxu0 0.0
        %1641 = vmatprep.subr.mxu0 0.0
        %1642 = vmatpush1.xpose.msra.mxu0 0.0
        %1643 = vmatprep.subr.mxu0 0.0
        %1644 = vmatpush1.xpose.msra.mxu0 0.0
        %1645 = vmatprep.subr.mxu0 0.0
        %1646 = vmatpush1.xpose.msra.mxu0 0.0
        %1647 = vmatprep.subr.mxu0 0.0
        %1648 = vmatpush1.xpose.msra.mxu0 0.0
        %1649 = vmatprep.subr.mxu0 0.0
        %1650 = vmatpush1.xpose.msra.mxu0 0.0
        %1651 = vmatprep.subr.mxu0 0.0
        %1652 = vmatpush1.xpose.msra.mxu0 0.0
        %1653 = vmatprep.subr.mxu0 0.0
        %1654 = vmatpush1.xpose.msra.mxu0 0.0
        %1655 = vmatprep.subr.mxu0 0.0
        %1656 = vmatpush1.xpose.msra.mxu0 0.0
        %1657 = vmatprep.subr.mxu0 0.0
        %1658 = vmatpush1.xpose.msra.mxu0 0.0
        %1659 = vmatprep.subr.mxu0 0.0
        %1660 = vmatpush1.xpose.msra.mxu0 0.0
        %1661 = vmatprep.subr.mxu0 0.0
        %1662 = vmatpush1.xpose.msra.mxu0 0.0
        %1663 = vmatprep.subr.mxu0 0.0
        %1664 = vmatpush1.xpose.msra.mxu0 0.0
        %1665 = vmatprep.mubr.f32.mxu0 0.0
        %1666 = vmatmul.mubr.f32.gmra.mrb[0].mxu0 %v1596
        %v1667 = vpop.f32.mrb[0].mxu0
        %v1668 = vadd.f32 %v1364, %v1667
        %v1669 = vpop.f32.mrb[0].mxu0
        %1670 = vdwg.mxu0
        %v1671 = vsel %vm1366, %v1440, -inf
        %1672 = vmax.xlane.f32.xlu0 %v1671
        %v1673 = vpop.xlane.xlu0 %1672
        %v1674 = vsel %vm1366, %v1516, -inf
        %1675 = vmax.xlane.f32.xlu0 %v1674
        %v1676 = vpop.xlane.xlu0 %1675
        %v1677 = vsel %vm1366, %v1592, -inf
        %1678 = vmax.xlane.f32.xlu0 %v1677
        %v1679 = vpop.xlane.xlu0 %1678
        %v1680 = vsel %vm1366, %v1668, -inf
        %1681 = vmax.xlane.f32.xlu0 %v1680
        %v1682 = vpop.xlane.xlu0 %1681
        %v1683 = vsub.f32 %v1440, %v1673
        %v1684 = vsub.f32 %v1516, %v1676
        %v1685 = vsub.f32 %v1592, %v1679
        %v1686 = vsub.f32 %v1668, %v1682
        %v1687 = vmul.f32 %v1683, 1.442695
        %v1688 = vpow.pop %v1687
        %v1689 = vmul.f32 %v1684, 1.442695
        %v1690 = vpow.pop %v1689
        %v1691 = vmul.f32 %v1685, 1.442695
        %v1692 = vpow.pop %v1691
        %v1693 = vmul.f32 %v1686, 1.442695
        %v1694 = vpow.pop %v1693
        %v1695 = vsel %vm1366, %v1688, 0.0
        %1696 = vadd.xlane.f32.xlu0 %v1695
        %v1697 = vpop.xlane.xlu0 %1696
        %v1698 = vsel %vm1366, %v1690, 0.0
        %1699 = vadd.xlane.f32.xlu0 %v1698
        %v1700 = vpop.xlane.xlu0 %1699
        %v1701 = vsel %vm1366, %v1692, 0.0
        %1702 = vadd.xlane.f32.xlu0 %v1701
        %v1703 = vpop.xlane.xlu0 %1702
        %v1704 = vsel %vm1366, %v1694, 0.0
        %1705 = vadd.xlane.f32.xlu0 %v1704
        %v1706 = vpop.xlane.xlu0 %1705
        %v1707 = vrcp.pop %v1697
        %v1708 = vrcp.pop %v1700
        %v1709 = vrcp.pop %v1703
        %v1710 = vrcp.pop %v1706
        %v1711 = vmul.f32 %v1688, %v1707
        %v1712 = vmul.f32 %v1690, %v1708
        %v1713 = vmul.f32 %v1692, %v1709
        %v1714 = vmul.f32 %v1694, %v1710
        %v1715 = vld [vmem:[#allocation3] sm:$0xff]
        %v1716 = vld [vmem:[#allocation3 + $0x8] sm:$0xff]
        %v1717 = vld [vmem:[#allocation3 + $0x10] sm:$0xff]
        %v1718 = vld [vmem:[#allocation3 + $0x18] sm:$0xff]
        %v1720 = vsel %vm1366, %v1711, 0
        %1722 = vmatprep.subr.mxu0 0.0
        %1723 = vmatpush1.msra.mxu0 %v1715
        %1724 = vmatprep.subr.mxu0 0.0
        %1725 = vmatpush1.msra.mxu0 0.0
        %1726 = vmatprep.subr.mxu0 0.0
        %1727 = vmatpush1.msra.mxu0 0.0
        %1728 = vmatprep.subr.mxu0 0.0
        %1729 = vmatpush1.msra.mxu0 0.0
        %1730 = vmatprep.subr.mxu0 0.0
        %1731 = vmatpush1.msra.mxu0 0.0
        %1732 = vmatprep.subr.mxu0 0.0
        %1733 = vmatpush1.msra.mxu0 0.0
        %1734 = vmatprep.subr.mxu0 0.0
        %1735 = vmatpush1.msra.mxu0 0.0
        %1736 = vmatprep.subr.mxu0 0.0
        %1737 = vmatpush1.msra.mxu0 0.0
        %1738 = vmatprep.subr.mxu0 0.0
        %1739 = vmatpush1.msra.mxu0 0.0
        %1740 = vmatprep.subr.mxu0 0.0
        %1741 = vmatpush1.msra.mxu0 0.0
        %1742 = vmatprep.subr.mxu0 0.0
        %1743 = vmatpush1.msra.mxu0 0.0
        %1744 = vmatprep.subr.mxu0 0.0
        %1745 = vmatpush1.msra.mxu0 0.0
        %1746 = vmatprep.subr.mxu0 0.0
        %1747 = vmatpush1.msra.mxu0 0.0
        %1748 = vmatprep.subr.mxu0 0.0
        %1749 = vmatpush1.msra.mxu0 0.0
        %1750 = vmatprep.subr.mxu0 0.0
        %1751 = vmatpush1.msra.mxu0 0.0
        %1752 = vmatprep.subr.mxu0 0.0
        %1753 = vmatpush1.msra.mxu0 0.0
        %1754 = vmatprep.subr.mxu0 0.0
        %1755 = vmatpush1.msra.mxu0 0.0
        %1756 = vmatprep.subr.mxu0 0.0
        %1757 = vmatpush1.msra.mxu0 0.0
        %1758 = vmatprep.subr.mxu0 0.0
        %1759 = vmatpush1.msra.mxu0 0.0
        %1760 = vmatprep.subr.mxu0 0.0
        %1761 = vmatpush1.msra.mxu0 0.0
        %1762 = vmatprep.subr.mxu0 0.0
        %1763 = vmatpush1.msra.mxu0 0.0
        %1764 = vmatprep.subr.mxu0 0.0
        %1765 = vmatpush1.msra.mxu0 0.0
        %1766 = vmatprep.subr.mxu0 0.0
        %1767 = vmatpush1.msra.mxu0 0.0
        %1768 = vmatprep.subr.mxu0 0.0
        %1769 = vmatpush1.msra.mxu0 0.0
        %1770 = vmatprep.subr.mxu0 0.0
        %1771 = vmatpush1.msra.mxu0 0.0
        %1772 = vmatprep.subr.mxu0 0.0
        %1773 = vmatpush1.msra.mxu0 0.0
        %1774 = vmatprep.subr.mxu0 0.0
        %1775 = vmatpush1.msra.mxu0 0.0
        %1776 = vmatprep.subr.mxu0 0.0
        %1777 = vmatpush1.msra.mxu0 0.0
        %1778 = vmatprep.subr.mxu0 0.0
        %1779 = vmatpush1.msra.mxu0 0.0
        %1780 = vmatprep.subr.mxu0 0.0
        %1781 = vmatpush1.msra.mxu0 0.0
        %1782 = vmatprep.subr.mxu0 0.0
        %1783 = vmatpush1.msra.mxu0 0.0
        %1784 = vmatprep.subr.mxu0 0.0
        %1785 = vmatpush1.msra.mxu0 0.0
        %1786 = vmatprep.mubr.f32.mxu0 0.0
        %1787 = vmatmul.mubr.f32.gmra.mrb[0].mxu0 %v1720
        %v1788 = vpop.f32.mrb[0].mxu0
        %v1789 = vadd.f32 0.0, %v1788
        %v1790 = vpop.f32.mrb[0].mxu0
        %1791 = vdwg.mxu0
        %v1793 = vsel %vm1366, %v1712, 0
        %1795 = vmatprep.subr.mxu0 0.0
        %1796 = vmatpush1.msra.mxu0 %v1716
        %1797 = vmatprep.subr.mxu0 0.0
        %1798 = vmatpush1.msra.mxu0 0.0
        %1799 = vmatprep.subr.mxu0 0.0
        %1800 = vmatpush1.msra.mxu0 0.0
        %1801 = vmatprep.subr.mxu0 0.0
        %1802 = vmatpush1.msra.mxu0 0.0
        %1803 = vmatprep.subr.mxu0 0.0
        %1804 = vmatpush1.msra.mxu0 0.0
        %1805 = vmatprep.subr.mxu0 0.0
        %1806 = vmatpush1.msra.mxu0 0.0
        %1807 = vmatprep.subr.mxu0 0.0
        %1808 = vmatpush1.msra.mxu0 0.0
        %1809 = vmatprep.subr.mxu0 0.0
        %1810 = vmatpush1.msra.mxu0 0.0
        %1811 = vmatprep.subr.mxu0 0.0
        %1812 = vmatpush1.msra.mxu0 0.0
        %1813 = vmatprep.subr.mxu0 0.0
        %1814 = vmatpush1.msra.mxu0 0.0
        %1815 = vmatprep.subr.mxu0 0.0
        %1816 = vmatpush1.msra.mxu0 0.0
        %1817 = vmatprep.subr.mxu0 0.0
        %1818 = vmatpush1.msra.mxu0 0.0
        %1819 = vmatprep.subr.mxu0 0.0
        %1820 = vmatpush1.msra.mxu0 0.0
        %1821 = vmatprep.subr.mxu0 0.0
        %1822 = vmatpush1.msra.mxu0 0.0
        %1823 = vmatprep.subr.mxu0 0.0
        %1824 = vmatpush1.msra.mxu0 0.0
        %1825 = vmatprep.subr.mxu0 0.0
        %1826 = vmatpush1.msra.mxu0 0.0
        %1827 = vmatprep.subr.mxu0 0.0
        %1828 = vmatpush1.msra.mxu0 0.0
        %1829 = vmatprep.subr.mxu0 0.0
        %1830 = vmatpush1.msra.mxu0 0.0
        %1831 = vmatprep.subr.mxu0 0.0
        %1832 = vmatpush1.msra.mxu0 0.0
        %1833 = vmatprep.subr.mxu0 0.0
        %1834 = vmatpush1.msra.mxu0 0.0
        %1835 = vmatprep.subr.mxu0 0.0
        %1836 = vmatpush1.msra.mxu0 0.0
        %1837 = vmatprep.subr.mxu0 0.0
        %1838 = vmatpush1.msra.mxu0 0.0
        %1839 = vmatprep.subr.mxu0 0.0
        %1840 = vmatpush1.msra.mxu0 0.0
        %1841 = vmatprep.subr.mxu0 0.0
        %1842 = vmatpush1.msra.mxu0 0.0
        %1843 = vmatprep.subr.mxu0 0.0
        %1844 = vmatpush1.msra.mxu0 0.0
        %1845 = vmatprep.subr.mxu0 0.0
        %1846 = vmatpush1.msra.mxu0 0.0
        %1847 = vmatprep.subr.mxu0 0.0
        %1848 = vmatpush1.msra.mxu0 0.0
        %1849 = vmatprep.subr.mxu0 0.0
        %1850 = vmatpush1.msra.mxu0 0.0
        %1851 = vmatprep.subr.mxu0 0.0
        %1852 = vmatpush1.msra.mxu0 0.0
        %1853 = vmatprep.subr.mxu0 0.0
        %1854 = vmatpush1.msra.mxu0 0.0
        %1855 = vmatprep.subr.mxu0 0.0
        %1856 = vmatpush1.msra.mxu0 0.0
        %1857 = vmatprep.subr.mxu0 0.0
        %1858 = vmatpush1.msra.mxu0 0.0
        %1859 = vmatprep.mubr.f32.mxu0 0.0
        %1860 = vmatmul.mubr.f32.gmra.mrb[0].mxu0 %v1793
        %v1861 = vpop.f32.mrb[0].mxu0
        %v1862 = vadd.f32 0.0, %v1861
        %v1863 = vpop.f32.mrb[0].mxu0
        %1864 = vdwg.mxu0
        %v1866 = vsel %vm1366, %v1713, 0
        %1868 = vmatprep.subr.mxu0 0.0
        %1869 = vmatpush1.msra.mxu0 %v1717
        %1870 = vmatprep.subr.mxu0 0.0
        %1871 = vmatpush1.msra.mxu0 0.0
        %1872 = vmatprep.subr.mxu0 0.0
        %1873 = vmatpush1.msra.mxu0 0.0
        %1874 = vmatprep.subr.mxu0 0.0
        %1875 = vmatpush1.msra.mxu0 0.0
        %1876 = vmatprep.subr.mxu0 0.0
        %1877 = vmatpush1.msra.mxu0 0.0
        %1878 = vmatprep.subr.mxu0 0.0
        %1879 = vmatpush1.msra.mxu0 0.0
        %1880 = vmatprep.subr.mxu0 0.0
        %1881 = vmatpush1.msra.mxu0 0.0
        %1882 = vmatprep.subr.mxu0 0.0
        %1883 = vmatpush1.msra.mxu0 0.0
        %1884 = vmatprep.subr.mxu0 0.0
        %1885 = vmatpush1.msra.mxu0 0.0
        %1886 = vmatprep.subr.mxu0 0.0
        %1887 = vmatpush1.msra.mxu0 0.0
        %1888 = vmatprep.subr.mxu0 0.0
        %1889 = vmatpush1.msra.mxu0 0.0
        %1890 = vmatprep.subr.mxu0 0.0
        %1891 = vmatpush1.msra.mxu0 0.0
        %1892 = vmatprep.subr.mxu0 0.0
        %1893 = vmatpush1.msra.mxu0 0.0
        %1894 = vmatprep.subr.mxu0 0.0
        %1895 = vmatpush1.msra.mxu0 0.0
        %1896 = vmatprep.subr.mxu0 0.0
        %1897 = vmatpush1.msra.mxu0 0.0
        %1898 = vmatprep.subr.mxu0 0.0
        %1899 = vmatpush1.msra.mxu0 0.0
        %1900 = vmatprep.subr.mxu0 0.0
        %1901 = vmatpush1.msra.mxu0 0.0
        %1902 = vmatprep.subr.mxu0 0.0
        %1903 = vmatpush1.msra.mxu0 0.0
        %1904 = vmatprep.subr.mxu0 0.0
        %1905 = vmatpush1.msra.mxu0 0.0
        %1906 = vmatprep.subr.mxu0 0.0
        %1907 = vmatpush1.msra.mxu0 0.0
        %1908 = vmatprep.subr.mxu0 0.0
        %1909 = vmatpush1.msra.mxu0 0.0
        %1910 = vmatprep.subr.mxu0 0.0
        %1911 = vmatpush1.msra.mxu0 0.0
        %1912 = vmatprep.subr.mxu0 0.0
        %1913 = vmatpush1.msra.mxu0 0.0
        %1914 = vmatprep.subr.mxu0 0.0
        %1915 = vmatpush1.msra.mxu0 0.0
        %1916 = vmatprep.subr.mxu0 0.0
        %1917 = vmatpush1.msra.mxu0 0.0
        %1918 = vmatprep.subr.mxu0 0.0
        %1919 = vmatpush1.msra.mxu0 0.0
        %1920 = vmatprep.subr.mxu0 0.0
        %1921 = vmatpush1.msra.mxu0 0.0
        %1922 = vmatprep.subr.mxu0 0.0
        %1923 = vmatpush1.msra.mxu0 0.0
        %1924 = vmatprep.subr.mxu0 0.0
        %1925 = vmatpush1.msra.mxu0 0.0
        %1926 = vmatprep.subr.mxu0 0.0
        %1927 = vmatpush1.msra.mxu0 0.0
        %1928 = vmatprep.subr.mxu0 0.0
        %1929 = vmatpush1.msra.mxu0 0.0
        %1930 = vmatprep.subr.mxu0 0.0
        %1931 = vmatpush1.msra.mxu0 0.0
        %1932 = vmatprep.mubr.f32.mxu0 0.0
        %1933 = vmatmul.mubr.f32.gmra.mrb[0].mxu0 %v1866
        %v1934 = vpop.f32.mrb[0].mxu0
        %v1935 = vadd.f32 0.0, %v1934
        %v1936 = vpop.f32.mrb[0].mxu0
        %1937 = vdwg.mxu0
        %v1939 = vsel %vm1366, %v1714, 0
        %1941 = vmatprep.subr.mxu0 0.0
        %1942 = vmatpush1.msra.mxu0 %v1718
        %1943 = vmatprep.subr.mxu0 0.0
        %1944 = vmatpush1.msra.mxu0 0.0
        %1945 = vmatprep.subr.mxu0 0.0
        %1946 = vmatpush1.msra.mxu0 0.0
        %1947 = vmatprep.subr.mxu0 0.0
        %1948 = vmatpush1.msra.mxu0 0.0
        %1949 = vmatprep.subr.mxu0 0.0
        %1950 = vmatpush1.msra.mxu0 0.0
        %1951 = vmatprep.subr.mxu0 0.0
        %1952 = vmatpush1.msra.mxu0 0.0
        %1953 = vmatprep.subr.mxu0 0.0
        %1954 = vmatpush1.msra.mxu0 0.0
        %1955 = vmatprep.subr.mxu0 0.0
        %1956 = vmatpush1.msra.mxu0 0.0
        %1957 = vmatprep.subr.mxu0 0.0
        %1958 = vmatpush1.msra.mxu0 0.0
        %1959 = vmatprep.subr.mxu0 0.0
        %1960 = vmatpush1.msra.mxu0 0.0
        %1961 = vmatprep.subr.mxu0 0.0
        %1962 = vmatpush1.msra.mxu0 0.0
        %1963 = vmatprep.subr.mxu0 0.0
        %1964 = vmatpush1.msra.mxu0 0.0
        %1965 = vmatprep.subr.mxu0 0.0
        %1966 = vmatpush1.msra.mxu0 0.0
        %1967 = vmatprep.subr.mxu0 0.0
        %1968 = vmatpush1.msra.mxu0 0.0
        %1969 = vmatprep.subr.mxu0 0.0
        %1970 = vmatpush1.msra.mxu0 0.0
        %1971 = vmatprep.subr.mxu0 0.0
        %1972 = vmatpush1.msra.mxu0 0.0
        %1973 = vmatprep.subr.mxu0 0.0
        %1974 = vmatpush1.msra.mxu0 0.0
        %1975 = vmatprep.subr.mxu0 0.0
        %1976 = vmatpush1.msra.mxu0 0.0
        %1977 = vmatprep.subr.mxu0 0.0
        %1978 = vmatpush1.msra.mxu0 0.0
        %1979 = vmatprep.subr.mxu0 0.0
        %1980 = vmatpush1.msra.mxu0 0.0
        %1981 = vmatprep.subr.mxu0 0.0
        %1982 = vmatpush1.msra.mxu0 0.0
        %1983 = vmatprep.subr.mxu0 0.0
        %1984 = vmatpush1.msra.mxu0 0.0
        %1985 = vmatprep.subr.mxu0 0.0
        %1986 = vmatpush1.msra.mxu0 0.0
        %1987 = vmatprep.subr.mxu0 0.0
        %1988 = vmatpush1.msra.mxu0 0.0
        %1989 = vmatprep.subr.mxu0 0.0
        %1990 = vmatpush1.msra.mxu0 0.0
        %1991 = vmatprep.subr.mxu0 0.0
        %1992 = vmatpush1.msra.mxu0 0.0
        %1993 = vmatprep.subr.mxu0 0.0
        %1994 = vmatpush1.msra.mxu0 0.0
        %1995 = vmatprep.subr.mxu0 0.0
        %1996 = vmatpush1.msra.mxu0 0.0
        %1997 = vmatprep.subr.mxu0 0.0
        %1998 = vmatpush1.msra.mxu0 0.0
        %1999 = vmatprep.subr.mxu0 0.0
        %2000 = vmatpush1.msra.mxu0 0.0
        %2001 = vmatprep.subr.mxu0 0.0
        %2002 = vmatpush1.msra.mxu0 0.0
        %2003 = vmatprep.subr.mxu0 0.0
        %2004 = vmatpush1.msra.mxu0 0.0
        %2005 = vmatprep.mubr.f32.mxu0 0.0
        %2006 = vmatmul.mubr.f32.gmra.mrb[0].mxu0 %v1939
        %v2007 = vpop.f32.mrb[0].mxu0
        %v2008 = vadd.f32 0.0, %v2007
        %v2009 = vpop.f32.mrb[0].mxu0
        %2010 = vdwg.mxu0
        %v2011 = vld [vmem:[#allocation7] sm:$0xff]
        %v2012 = vld [vmem:[#allocation7 + $0x8] sm:$0xff]
        %v2013 = vld [vmem:[#allocation7 + $0x10] sm:$0xff]
        %v2014 = vld [vmem:[#allocation7 + $0x18] sm:$0xff]
        %v2016 = vsel %vm1366, %v1789, 0
        %2018 = vmatprep.subr.mxu0 0.0
        %2019 = vmatpush1.msra.mxu0 %v2011
        %2020 = vmatprep.subr.mxu0 0.0
        %2021 = vmatpush1.msra.mxu0 0.0
        %2022 = vmatprep.subr.mxu0 0.0
        %2023 = vmatpush1.msra.mxu0 0.0
        %2024 = vmatprep.subr.mxu0 0.0
        %2025 = vmatpush1.msra.mxu0 0.0
        %2026 = vmatprep.subr.mxu0 0.0
        %2027 = vmatpush1.msra.mxu0 0.0
        %2028 = vmatprep.subr.mxu0 0.0
        %2029 = vmatpush1.msra.mxu0 0.0
        %2030 = vmatprep.subr.mxu0 0.0
        %2031 = vmatpush1.msra.mxu0 0.0
        %2032 = vmatprep.subr.mxu0 0.0
        %2033 = vmatpush1.msra.mxu0 0.0
        %2034 = vmatprep.subr.mxu0 0.0
        %2035 = vmatpush1.msra.mxu0 0.0
        %2036 = vmatprep.subr.mxu0 0.0
        %2037 = vmatpush1.msra.mxu0 0.0
        %2038 = vmatprep.subr.mxu0 0.0
        %2039 = vmatpush1.msra.mxu0 0.0
        %2040 = vmatprep.subr.mxu0 0.0
        %2041 = vmatpush1.msra.mxu0 0.0
        %2042 = vmatprep.subr.mxu0 0.0
        %2043 = vmatpush1.msra.mxu0 0.0
        %2044 = vmatprep.subr.mxu0 0.0
        %2045 = vmatpush1.msra.mxu0 0.0
        %2046 = vmatprep.subr.mxu0 0.0
        %2047 = vmatpush1.msra.mxu0 0.0
        %2048 = vmatprep.subr.mxu0 0.0
        %2049 = vmatpush1.msra.mxu0 0.0
        %2050 = vmatprep.subr.mxu0 0.0
        %2051 = vmatpush1.msra.mxu0 0.0
        %2052 = vmatprep.subr.mxu0 0.0
        %2053 = vmatpush1.msra.mxu0 0.0
        %2054 = vmatprep.subr.mxu0 0.0
        %2055 = vmatpush1.msra.mxu0 0.0
        %2056 = vmatprep.subr.mxu0 0.0
        %2057 = vmatpush1.msra.mxu0 0.0
        %2058 = vmatprep.subr.mxu0 0.0
        %2059 = vmatpush1.msra.mxu0 0.0
        %2060 = vmatprep.subr.mxu0 0.0
        %2061 = vmatpush1.msra.mxu0 0.0
        %2062 = vmatprep.subr.mxu0 0.0
        %2063 = vmatpush1.msra.mxu0 0.0
        %2064 = vmatprep.subr.mxu0 0.0
        %2065 = vmatpush1.msra.mxu0 0.0
        %2066 = vmatprep.subr.mxu0 0.0
        %2067 = vmatpush1.msra.mxu0 0.0
        %2068 = vmatprep.subr.mxu0 0.0
        %2069 = vmatpush1.msra.mxu0 0.0
        %2070 = vmatprep.subr.mxu0 0.0
        %2071 = vmatpush1.msra.mxu0 0.0
        %2072 = vmatprep.subr.mxu0 0.0
        %2073 = vmatpush1.msra.mxu0 0.0
        %2074 = vmatprep.subr.mxu0 0.0
        %2075 = vmatpush1.msra.mxu0 0.0
        %2076 = vmatprep.subr.mxu0 0.0
        %2077 = vmatpush1.msra.mxu0 0.0
        %2078 = vmatprep.subr.mxu0 0.0
        %2079 = vmatpush1.msra.mxu0 0.0
        %2080 = vmatprep.subr.mxu0 0.0
        %2081 = vmatpush1.msra.mxu0 0.0
        %2082 = vmatprep.mubr.f32.mxu0 0.0
        %2083 = vmatmul.mubr.f32.gmra.mrb[0].mxu0 %v2016
        %v2084 = vpop.f32.mrb[0].mxu0
        %v2085 = vadd.f32 0.0, %v2084
        %v2086 = vpop.f32.mrb[0].mxu0
        %2087 = vdwg.mxu0
        %v2089 = vsel %vm1366, %v1862, 0
        %2091 = vmatprep.subr.mxu0 0.0
        %2092 = vmatpush1.msra.mxu0 %v2012
        %2093 = vmatprep.subr.mxu0 0.0
        %2094 = vmatpush1.msra.mxu0 0.0
        %2095 = vmatprep.subr.mxu0 0.0
        %2096 = vmatpush1.msra.mxu0 0.0
        %2097 = vmatprep.subr.mxu0 0.0
        %2098 = vmatpush1.msra.mxu0 0.0
        %2099 = vmatprep.subr.mxu0 0.0
        %2100 = vmatpush1.msra.mxu0 0.0
        %2101 = vmatprep.subr.mxu0 0.0
        %2102 = vmatpush1.msra.mxu0 0.0
        %2103 = vmatprep.subr.mxu0 0.0
        %2104 = vmatpush1.msra.mxu0 0.0
        %2105 = vmatprep.subr.mxu0 0.0
        %2106 = vmatpush1.msra.mxu0 0.0
        %2107 = vmatprep.subr.mxu0 0.0
        %2108 = vmatpush1.msra.mxu0 0.0
        %2109 = vmatprep.subr.mxu0 0.0
        %2110 = vmatpush1.msra.mxu0 0.0
        %2111 = vmatprep.subr.mxu0 0.0
        %2112 = vmatpush1.msra.mxu0 0.0
        %2113 = vmatprep.subr.mxu0 0.0
        %2114 = vmatpush1.msra.mxu0 0.0
        %2115 = vmatprep.subr.mxu0 0.0
        %2116 = vmatpush1.msra.mxu0 0.0
        %2117 = vmatprep.subr.mxu0 0.0
        %2118 = vmatpush1.msra.mxu0 0.0
        %2119 = vmatprep.subr.mxu0 0.0
        %2120 = vmatpush1.msra.mxu0 0.0
        %2121 = vmatprep.subr.mxu0 0.0
        %2122 = vmatpush1.msra.mxu0 0.0
        %2123 = vmatprep.subr.mxu0 0.0
        %2124 = vmatpush1.msra.mxu0 0.0
        %2125 = vmatprep.subr.mxu0 0.0
        %2126 = vmatpush1.msra.mxu0 0.0
        %2127 = vmatprep.subr.mxu0 0.0
        %2128 = vmatpush1.msra.mxu0 0.0
        %2129 = vmatprep.subr.mxu0 0.0
        %2130 = vmatpush1.msra.mxu0 0.0
        %2131 = vmatprep.subr.mxu0 0.0
        %2132 = vmatpush1.msra.mxu0 0.0
        %2133 = vmatprep.subr.mxu0 0.0
        %2134 = vmatpush1.msra.mxu0 0.0
        %2135 = vmatprep.subr.mxu0 0.0
        %2136 = vmatpush1.msra.mxu0 0.0
        %2137 = vmatprep.subr.mxu0 0.0
        %2138 = vmatpush1.msra.mxu0 0.0
        %2139 = vmatprep.subr.mxu0 0.0
        %2140 = vmatpush1.msra.mxu0 0.0
        %2141 = vmatprep.subr.mxu0 0.0
        %2142 = vmatpush1.msra.mxu0 0.0
        %2143 = vmatprep.subr.mxu0 0.0
        %2144 = vmatpush1.msra.mxu0 0.0
        %2145 = vmatprep.subr.mxu0 0.0
        %2146 = vmatpush1.msra.mxu0 0.0
        %2147 = vmatprep.subr.mxu0 0.0
        %2148 = vmatpush1.msra.mxu0 0.0
        %2149 = vmatprep.subr.mxu0 0.0
        %2150 = vmatpush1.msra.mxu0 0.0
        %2151 = vmatprep.subr.mxu0 0.0
        %2152 = vmatpush1.msra.mxu0 0.0
        %2153 = vmatprep.subr.mxu0 0.0
        %2154 = vmatpush1.msra.mxu0 0.0
        %2155 = vmatprep.mubr.f32.mxu0 0.0
        %2156 = vmatmul.mubr.f32.gmra.mrb[0].mxu0 %v2089
        %v2157 = vpop.f32.mrb[0].mxu0
        %v2158 = vadd.f32 0.0, %v2157
        %v2159 = vpop.f32.mrb[0].mxu0
        %2160 = vdwg.mxu0
        %v2162 = vsel %vm1366, %v1935, 0
        %2164 = vmatprep.subr.mxu0 0.0
        %2165 = vmatpush1.msra.mxu0 %v2013
        %2166 = vmatprep.subr.mxu0 0.0
        %2167 = vmatpush1.msra.mxu0 0.0
        %2168 = vmatprep.subr.mxu0 0.0
        %2169 = vmatpush1.msra.mxu0 0.0
        %2170 = vmatprep.subr.mxu0 0.0
        %2171 = vmatpush1.msra.mxu0 0.0
        %2172 = vmatprep.subr.mxu0 0.0
        %2173 = vmatpush1.msra.mxu0 0.0
        %2174 = vmatprep.subr.mxu0 0.0
        %2175 = vmatpush1.msra.mxu0 0.0
        %2176 = vmatprep.subr.mxu0 0.0
        %2177 = vmatpush1.msra.mxu0 0.0
        %2178 = vmatprep.subr.mxu0 0.0
        %2179 = vmatpush1.msra.mxu0 0.0
        %2180 = vmatprep.subr.mxu0 0.0
        %2181 = vmatpush1.msra.mxu0 0.0
        %2182 = vmatprep.subr.mxu0 0.0
        %2183 = vmatpush1.msra.mxu0 0.0
        %2184 = vmatprep.subr.mxu0 0.0
        %2185 = vmatpush1.msra.mxu0 0.0
        %2186 = vmatprep.subr.mxu0 0.0
        %2187 = vmatpush1.msra.mxu0 0.0
        %2188 = vmatprep.subr.mxu0 0.0
        %2189 = vmatpush1.msra.mxu0 0.0
        %2190 = vmatprep.subr.mxu0 0.0
        %2191 = vmatpush1.msra.mxu0 0.0
        %2192 = vmatprep.subr.mxu0 0.0
        %2193 = vmatpush1.msra.mxu0 0.0
        %2194 = vmatprep.subr.mxu0 0.0
        %2195 = vmatpush1.msra.mxu0 0.0
        %2196 = vmatprep.subr.mxu0 0.0
        %2197 = vmatpush1.msra.mxu0 0.0
        %2198 = vmatprep.subr.mxu0 0.0
        %2199 = vmatpush1.msra.mxu0 0.0
        %2200 = vmatprep.subr.mxu0 0.0
        %2201 = vmatpush1.msra.mxu0 0.0
        %2202 = vmatprep.subr.mxu0 0.0
        %2203 = vmatpush1.msra.mxu0 0.0
        %2204 = vmatprep.subr.mxu0 0.0
        %2205 = vmatpush1.msra.mxu0 0.0
        %2206 = vmatprep.subr.mxu0 0.0
        %2207 = vmatpush1.msra.mxu0 0.0
        %2208 = vmatprep.subr.mxu0 0.0
        %2209 = vmatpush1.msra.mxu0 0.0
        %2210 = vmatprep.subr.mxu0 0.0
        %2211 = vmatpush1.msra.mxu0 0.0
        %2212 = vmatprep.subr.mxu0 0.0
        %2213 = vmatpush1.msra.mxu0 0.0
        %2214 = vmatprep.subr.mxu0 0.0
        %2215 = vmatpush1.msra.mxu0 0.0
        %2216 = vmatprep.subr.mxu0 0.0
        %2217 = vmatpush1.msra.mxu0 0.0
        %2218 = vmatprep.subr.mxu0 0.0
        %2219 = vmatpush1.msra.mxu0 0.0
        %2220 = vmatprep.subr.mxu0 0.0
        %2221 = vmatpush1.msra.mxu0 0.0
        %2222 = vmatprep.subr.mxu0 0.0
        %2223 = vmatpush1.msra.mxu0 0.0
        %2224 = vmatprep.subr.mxu0 0.0
        %2225 = vmatpush1.msra.mxu0 0.0
        %2226 = vmatprep.subr.mxu0 0.0
        %2227 = vmatpush1.msra.mxu0 0.0
        %2228 = vmatprep.mubr.f32.mxu0 0.0
        %2229 = vmatmul.mubr.f32.gmra.mrb[0].mxu0 %v2162
        %v2230 = vpop.f32.mrb[0].mxu0
        %v2231 = vadd.f32 0.0, %v2230
        %v2232 = vpop.f32.mrb[0].mxu0
        %2233 = vdwg.mxu0
        %v2235 = vsel %vm1366, %v2008, 0
        %2237 = vmatprep.subr.mxu0 0.0
        %2238 = vmatpush1.msra.mxu0 %v2014
        %2239 = vmatprep.subr.mxu0 0.0
        %2240 = vmatpush1.msra.mxu0 0.0
        %2241 = vmatprep.subr.mxu0 0.0
        %2242 = vmatpush1.msra.mxu0 0.0
        %2243 = vmatprep.subr.mxu0 0.0
        %2244 = vmatpush1.msra.mxu0 0.0
        %2245 = vmatprep.subr.mxu0 0.0
        %2246 = vmatpush1.msra.mxu0 0.0
        %2247 = vmatprep.subr.mxu0 0.0
        %2248 = vmatpush1.msra.mxu0 0.0
        %2249 = vmatprep.subr.mxu0 0.0
        %2250 = vmatpush1.msra.mxu0 0.0
        %2251 = vmatprep.subr.mxu0 0.0
        %2252 = vmatpush1.msra.mxu0 0.0
        %2253 = vmatprep.subr.mxu0 0.0
        %2254 = vmatpush1.msra.mxu0 0.0
        %2255 = vmatprep.subr.mxu0 0.0
        %2256 = vmatpush1.msra.mxu0 0.0
        %2257 = vmatprep.subr.mxu0 0.0
        %2258 = vmatpush1.msra.mxu0 0.0
        %2259 = vmatprep.subr.mxu0 0.0
        %2260 = vmatpush1.msra.mxu0 0.0
        %2261 = vmatprep.subr.mxu0 0.0
        %2262 = vmatpush1.msra.mxu0 0.0
        %2263 = vmatprep.subr.mxu0 0.0
        %2264 = vmatpush1.msra.mxu0 0.0
        %2265 = vmatprep.subr.mxu0 0.0
        %2266 = vmatpush1.msra.mxu0 0.0
        %2267 = vmatprep.subr.mxu0 0.0
        %2268 = vmatpush1.msra.mxu0 0.0
        %2269 = vmatprep.subr.mxu0 0.0
        %2270 = vmatpush1.msra.mxu0 0.0
        %2271 = vmatprep.subr.mxu0 0.0
        %2272 = vmatpush1.msra.mxu0 0.0
        %2273 = vmatprep.subr.mxu0 0.0
        %2274 = vmatpush1.msra.mxu0 0.0
        %2275 = vmatprep.subr.mxu0 0.0
        %2276 = vmatpush1.msra.mxu0 0.0
        %2277 = vmatprep.subr.mxu0 0.0
        %2278 = vmatpush1.msra.mxu0 0.0
        %2279 = vmatprep.subr.mxu0 0.0
        %2280 = vmatpush1.msra.mxu0 0.0
        %2281 = vmatprep.subr.mxu0 0.0
        %2282 = vmatpush1.msra.mxu0 0.0
        %2283 = vmatprep.subr.mxu0 0.0
        %2284 = vmatpush1.msra.mxu0 0.0
        %2285 = vmatprep.subr.mxu0 0.0
        %2286 = vmatpush1.msra.mxu0 0.0
        %2287 = vmatprep.subr.mxu0 0.0
        %2288 = vmatpush1.msra.mxu0 0.0
        %2289 = vmatprep.subr.mxu0 0.0
        %2290 = vmatpush1.msra.mxu0 0.0
        %2291 = vmatprep.subr.mxu0 0.0
        %2292 = vmatpush1.msra.mxu0 0.0
        %2293 = vmatprep.subr.mxu0 0.0
        %2294 = vmatpush1.msra.mxu0 0.0
        %2295 = vmatprep.subr.mxu0 0.0
        %2296 = vmatpush1.msra.mxu0 0.0
        %2297 = vmatprep.subr.mxu0 0.0
        %2298 = vmatpush1.msra.mxu0 0.0
        %2299 = vmatprep.subr.mxu0 0.0
        %2300 = vmatpush1.msra.mxu0 0.0
        %2301 = vmatprep.mubr.f32.mxu0 0.0
        %2302 = vmatmul.mubr.f32.gmra.mrb[0].mxu0 %v2235
        %v2303 = vpop.f32.mrb[0].mxu0
        %v2304 = vadd.f32 0.0, %v2303
        %v2305 = vpop.f32.mrb[0].mxu0
        %2306 = vdwg.mxu0
        %v2307 = vadd.f32 %v2085, %v2158
        %v2308 = vadd.f32 %v2307, %v2231
        %v2309 = vadd.f32 %v2308, %v2304
        %v2310 = vld [vmem:[%s9] sm:$0x1]
        %v2312 = vlaneseq
        %v2313 = vshrl.u32 %v2312, 7
        %v2314 = vsub.s32 0, %v2313
        %v2315 = vrot.slane %v2310, %v2314
        %v2317 = vadd.f32 %v2309, %v2315
        %v2318 = vadd.f32 %v2317, %v1122
        %v2319 = vsel %vm1135, %v2318, 0.0
        %2320 = vadd.xlane.f32.xlu0 %v2319
        %v2321 = vpop.xlane.xlu0 %2320
        %v2322 = vrcp.pop 32.0
        %v2323 = vmul.f32 %v2321, %v2322
        %v2324 = vsub.f32 %v2318, %v2323
        %v2325 = vmul.f32 %v2324, %v2324
        %v2326 = vsel %vm1135, %v2325, 0.0
        %2327 = vadd.xlane.f32.xlu0 %v2326
        %v2328 = vpop.xlane.xlu0 %2327
        %v2329 = vmul.f32 %v2328, %v2322
        %v2330 = vadd.f32 %v2329, 1e-12
        %v2331 = vrsqrt.pop %v2330
        %v2332 = vmul.f32 %v2324, %v2331
        %v2333 = vld [vmem:[%s10] sm:$0x1]
        %v2335 = vlaneseq
        %v2336 = vshrl.u32 %v2335, 7
        %v2337 = vsub.s32 0, %v2336
        %v2338 = vrot.slane %v2333, %v2337
        %v2340 = vmul.f32 %v2338, %v2332
        %v2341 = vld [vmem:[%s11] sm:$0x1]
        %v2343 = vlaneseq
        %v2344 = vshrl.u32 %v2343, 7
        %v2345 = vsub.s32 0, %v2344
        %v2346 = vrot.slane %v2341, %v2345
        %v2348 = vadd.f32 %v2340, %v2346
        %v2349 = vld [vmem:[#allocation9] sm:$0xff]
        %v2350 = vld [vmem:[#allocation9 + $0x8] sm:$0xff]
        %v2351 = vld [vmem:[#allocation9 + $0x10] sm:$0xff]
        %v2352 = vld [vmem:[#allocation9 + $0x18] sm:$0xff]
        %v2353 = vld [vmem:[%s13] sm:$0x1]
        %v2355 = vlaneseq
        %v2356 = vshrl.u32 %v2355, 7
        %v2357 = vsub.s32 0, %v2356
        %v2358 = vrot.slane %v2353, %v2357
        %v2361 = vsel %vm1135, %v2348, 0
        %2363 = vmatprep.subr.mxu0 0.0
        %2364 = vmatpush1.msra.mxu0 %v2349
        %2365 = vmatprep.subr.mxu0 0.0
        %2366 = vmatpush1.msra.mxu0 %v2350
        %2367 = vmatprep.subr.mxu0 0.0
        %2368 = vmatpush1.msra.mxu0 %v2351
        %2369 = vmatprep.subr.mxu0 0.0
        %2370 = vmatpush1.msra.mxu0 %v2352
        %2371 = vmatprep.subr.mxu0 0.0
        %2372 = vmatpush1.msra.mxu0 0.0
        %2373 = vmatprep.subr.mxu0 0.0
        %2374 = vmatpush1.msra.mxu0 0.0
        %2375 = vmatprep.subr.mxu0 0.0
        %2376 = vmatpush1.msra.mxu0 0.0
        %2377 = vmatprep.subr.mxu0 0.0
        %2378 = vmatpush1.msra.mxu0 0.0
        %2379 = vmatprep.subr.mxu0 0.0
        %2380 = vmatpush1.msra.mxu0 0.0
        %2381 = vmatprep.subr.mxu0 0.0
        %2382 = vmatpush1.msra.mxu0 0.0
        %2383 = vmatprep.subr.mxu0 0.0
        %2384 = vmatpush1.msra.mxu0 0.0
        %2385 = vmatprep.subr.mxu0 0.0
        %2386 = vmatpush1.msra.mxu0 0.0
        %2387 = vmatprep.subr.mxu0 0.0
        %2388 = vmatpush1.msra.mxu0 0.0
        %2389 = vmatprep.subr.mxu0 0.0
        %2390 = vmatpush1.msra.mxu0 0.0
        %2391 = vmatprep.subr.mxu0 0.0
        %2392 = vmatpush1.msra.mxu0 0.0
        %2393 = vmatprep.subr.mxu0 0.0
        %2394 = vmatpush1.msra.mxu0 0.0
        %2395 = vmatprep.subr.mxu0 0.0
        %2396 = vmatpush1.msra.mxu0 0.0
        %2397 = vmatprep.subr.mxu0 0.0
        %2398 = vmatpush1.msra.mxu0 0.0
        %2399 = vmatprep.subr.mxu0 0.0
        %2400 = vmatpush1.msra.mxu0 0.0
        %2401 = vmatprep.subr.mxu0 0.0
        %2402 = vmatpush1.msra.mxu0 0.0
        %2403 = vmatprep.subr.mxu0 0.0
        %2404 = vmatpush1.msra.mxu0 0.0
        %2405 = vmatprep.subr.mxu0 0.0
        %2406 = vmatpush1.msra.mxu0 0.0
        %2407 = vmatprep.subr.mxu0 0.0
        %2408 = vmatpush1.msra.mxu0 0.0
        %2409 = vmatprep.subr.mxu0 0.0
        %2410 = vmatpush1.msra.mxu0 0.0
        %2411 = vmatprep.subr.mxu0 0.0
        %2412 = vmatpush1.msra.mxu0 0.0
        %2413 = vmatprep.subr.mxu0 0.0
        %2414 = vmatpush1.msra.mxu0 0.0
        %2415 = vmatprep.subr.mxu0 0.0
        %2416 = vmatpush1.msra.mxu0 0.0
        %2417 = vmatprep.subr.mxu0 0.0
        %2418 = vmatpush1.msra.mxu0 0.0
        %2419 = vmatprep.subr.mxu0 0.0
        %2420 = vmatpush1.msra.mxu0 0.0
        %2421 = vmatprep.subr.mxu0 0.0
        %2422 = vmatpush1.msra.mxu0 0.0
        %2423 = vmatprep.subr.mxu0 0.0
        %2424 = vmatpush1.msra.mxu0 0.0
        %2425 = vmatprep.subr.mxu0 0.0
        %2426 = vmatpush1.msra.mxu0 0.0
        %2427 = vmatprep.mubr.f32.mxu0 0.0
        %2428 = vmatmul.mubr.f32.gmra.mrb[0].mxu0 %v2361
        %v2429 = vpop.f32.mrb[0].mxu0
        %v2430 = vadd.f32 %v2358, %v2429
        %v2431 = vpop.f32.mrb[0].mxu0
        %2432 = vdwg.mxu0
        %v2433 = vmul.f32 %v2430, 0.5
        %v2434 = vmul.f32 %v2430, 0.70710677
        %v2435 = verf.f32.pop %v2434
        %v2436 = vadd.f32 %v2435, 1.0
        %v2437 = vmul.f32 %v2433, %v2436
        %v2438 = vld [vmem:[%s14] sm:$0xff]
        %v2439 = vld [vmem:[%s14 + $0x8] sm:$0xff]
        %v2440 = vld [vmem:[%s14 + $0x10] sm:$0xff]
        %v2441 = vld [vmem:[%s14 + $0x18] sm:$0xff]
        %v2442 = vld [vmem:[%s14 + $0x20] sm:$0xff]
        %v2443 = vld [vmem:[%s14 + $0x28] sm:$0xff]
        %v2444 = vld [vmem:[%s14 + $0x30] sm:$0xff]
        %v2445 = vld [vmem:[%s14 + $0x38] sm:$0xff]
        %v2446 = vld [vmem:[%s15] sm:$0x1]
        %v2448 = vlaneseq
        %v2449 = vshrl.u32 %v2448, 7
        %v2450 = vsub.s32 0, %v2449
        %v2451 = vrot.slane %v2446, %v2450
        %vm2453 = vcmask 523264
        %v2455 = vsel %vm2453, %v2437, 0
        %2457 = vmatprep.subr.mxu0 0.0
        %2458 = vmatpush1.msra.mxu0 %v2438
        %2459 = vmatprep.subr.mxu0 0.0
        %2460 = vmatpush1.msra.mxu0 %v2439
        %2461 = vmatprep.subr.mxu0 0.0
        %2462 = vmatpush1.msra.mxu0 %v2440
        %2463 = vmatprep.subr.mxu0 0.0
        %2464 = vmatpush1.msra.mxu0 %v2441
        %2465 = vmatprep.subr.mxu0 0.0
        %2466 = vmatpush1.msra.mxu0 %v2442
        %2467 = vmatprep.subr.mxu0 0.0
        %2468 = vmatpush1.msra.mxu0 %v2443
        %2469 = vmatprep.subr.mxu0 0.0
        %2470 = vmatpush1.msra.mxu0 %v2444
        %2471 = vmatprep.subr.mxu0 0.0
        %2472 = vmatpush1.msra.mxu0 %v2445
        %2473 = vmatprep.subr.mxu0 0.0
        %2474 = vmatpush1.msra.mxu0 0.0
        %2475 = vmatprep.subr.mxu0 0.0
        %2476 = vmatpush1.msra.mxu0 0.0
        %2477 = vmatprep.subr.mxu0 0.0
        %2478 = vmatpush1.msra.mxu0 0.0
        %2479 = vmatprep.subr.mxu0 0.0
        %2480 = vmatpush1.msra.mxu0 0.0
        %2481 = vmatprep.subr.mxu0 0.0
        %2482 = vmatpush1.msra.mxu0 0.0
        %2483 = vmatprep.subr.mxu0 0.0
        %2484 = vmatpush1.msra.mxu0 0.0
        %2485 = vmatprep.subr.mxu0 0.0
        %2486 = vmatpush1.msra.mxu0 0.0
        %2487 = vmatprep.subr.mxu0 0.0
        %2488 = vmatpush1.msra.mxu0 0.0
        %2489 = vmatprep.subr.mxu0 0.0
        %2490 = vmatpush1.msra.mxu0 0.0
        %2491 = vmatprep.subr.mxu0 0.0
        %2492 = vmatpush1.msra.mxu0 0.0
        %2493 = vmatprep.subr.mxu0 0.0
        %2494 = vmatpush1.msra.mxu0 0.0
        %2495 = vmatprep.subr.mxu0 0.0
        %2496 = vmatpush1.msra.mxu0 0.0
        %2497 = vmatprep.subr.mxu0 0.0
        %2498 = vmatpush1.msra.mxu0 0.0
        %2499 = vmatprep.subr.mxu0 0.0
        %2500 = vmatpush1.msra.mxu0 0.0
        %2501 = vmatprep.subr.mxu0 0.0
        %2502 = vmatpush1.msra.mxu0 0.0
        %2503 = vmatprep.subr.mxu0 0.0
        %2504 = vmatpush1.msra.mxu0 0.0
        %2505 = vmatprep.subr.mxu0 0.0
        %2506 = vmatpush1.msra.mxu0 0.0
        %2507 = vmatprep.subr.mxu0 0.0
        %2508 = vmatpush1.msra.mxu0 0.0
        %2509 = vmatprep.subr.mxu0 0.0
        %2510 = vmatpush1.msra.mxu0 0.0
        %2511 = vmatprep.subr.mxu0 0.0
        %2512 = vmatpush1.msra.mxu0 0.0
        %2513 = vmatprep.subr.mxu0 0.0
        %2514 = vmatpush1.msra.mxu0 0.0
        %2515 = vmatprep.subr.mxu0 0.0
        %2516 = vmatpush1.msra.mxu0 0.0
        %2517 = vmatprep.subr.mxu0 0.0
        %2518 = vmatpush1.msra.mxu0 0.0
        %2519 = vmatprep.subr.mxu0 0.0
        %2520 = vmatpush1.msra.mxu0 0.0
        %2521 = vmatprep.mubr.f32.mxu0 0.0
        %2522 = vmatmul.mubr.f32.gmra.mrb[0].mxu0 %v2455
        %v2523 = vpop.f32.mrb[0].mxu0
        %v2524 = vadd.f32 %v2451, %v2523
        %v2525 = vpop.f32.mrb[0].mxu0
        %2526 = vdwg.mxu0
        %v2527 = vadd.f32 %v2524, %v2348
        %v2528 = vsel %vm1135, %v2527, 0.0
        %2529 = vadd.xlane.f32.xlu0 %v2528
        %v2530 = vpop.xlane.xlu0 %2529
        %v2531 = vmul.f32 %v2530, %v2322
        %v2532 = vsub.f32 %v2527, %v2531
        %v2533 = vmul.f32 %v2532, %v2532
        %v2534 = vsel %vm1135, %v2533, 0.0
        %2535 = vadd.xlane.f32.xlu0 %v2534
        %v2536 = vpop.xlane.xlu0 %2535
        %v2537 = vmul.f32 %v2536, %v2322
        %v2538 = vadd.f32 %v2537, 1e-12
        %v2539 = vrsqrt.pop %v2538
        %v2540 = vmul.f32 %v2532, %v2539
        %v2541 = vld [vmem:[%s16] sm:$0x1]
        %v2543 = vlaneseq
        %v2544 = vshrl.u32 %v2543, 7
        %v2545 = vsub.s32 0, %v2544
        %v2546 = vrot.slane %v2541, %v2545
        %v2548 = vmul.f32 %v2546, %v2540
        %v2549 = vld [vmem:[%s17] sm:$0x1]
        %v2551 = vlaneseq
        %v2552 = vshrl.u32 %v2551, 7
        %v2553 = vsub.s32 0, %v2552
        %v2554 = vrot.slane %v2549, %v2553
        %v2556 = vadd.f32 %v2548, %v2554
        %2557 = vst.msk [vmem:[%s644] sm:$0xff] %vm1135, %v2556
        %s2558 = sand.u32 %s446, 1
        %s2559 = scalar_lea.sflag [#allocation6], %s2558
        %s2560 = sand.u32 %s446, 1
        %s2561 = smul.addr %s2560, 8
        %s2562 = scalar_lea.vmem [#allocation10], %s2561
        // Predicated region
        $region109: #{tpu_custom_call.1} parent=91 // pred_check
          %p2563 = pneg %p456
        $region110: #{tpu_custom_call.1} parent=91 // pred_check_branch
          %2565 = sbr.rel (%p2563) target = $region112
        $region111: #{tpu_custom_call.1} parent=91 // pred_region
          %s2567 = ssub.s32 128, 128
          %2568 = vsyncadd %s2559, %s2567
          %s2569 = sadd.s32 %s41, %s40
          %s2570 = smul.addr %s2569, 128
          %s2571 = scalar_lea.hbm %s18, %s2570
          %s2573 = sshll.u32 %s2562, 4
          %s2574 = int_to_ptr.vmem [resolvable:$true] %s2573
          %2576 = dma.vmem_to_hbm [thread:$0]  %s2574, 128, %s2571, %s2559
        $region112: #{tpu_custom_call.1} parent=91 // pred_fallthru
          _
      $region92: #{tpu_custom_call.1} parent=5 // pred_fallthru
        _
      %p2577 = scmp.le.s32.totalorder 2, %s31
      // Predicated region
      $region113: #{tpu_custom_call.1} parent=5 // pred_check
        %p2578 = pneg %p2577
      $region114: #{tpu_custom_call.1} parent=5 // pred_check_branch
        %2580 = sbr.rel (%p2578) target = $region116
      $region115: #{tpu_custom_call.1} parent=5 // pred_region
        %s2581 = ssub.s32 %s31, 2
        // Predicated region
        $region117: #{tpu_custom_call.1} parent=115 // pred_check
          %p2582 = pneg %p462
        $region118: #{tpu_custom_call.1} parent=115 // pred_check_branch
          %2584 = sbr.rel (%p2582) target = $region120
        $region119: #{tpu_custom_call.1} parent=115 // pred_region
          %s2585 = sand.u32 %s447, 1
          %s2586 = scalar_lea.sflag [#allocation6], %s2585
          %s2587 = sand.u32 %s447, 1
          %s2588 = smul.addr %s2587, 8
          %s2589 = scalar_lea.vmem [#allocation10], %s2588
          %2590 = dma.done %s2586, 128
        $region120: #{tpu_custom_call.1} parent=115 // pred_fallthru
          _
      $region116: #{tpu_custom_call.1} parent=5 // pred_fallthru
        _
    $region6: #{tpu_custom_call.1} parent=1 // loop_footer
      %s35 = sadd.s32 1, %s31
    $region7: #{tpu_custom_call.1} parent=1 // loop_footer_branch
      %30 = sbr.rel target = $region3
    $region8: #{tpu_custom_call.1} parent=1 // loop_exit
      _
    %2591 = vsyncpa [#allocation5], 1
    %s2592 = scalar_lea.sflag [#allocation5], 1
    %2593 = vsyncpa %s2592, 1
    %2594 = vsyncpa [#allocation8], 1
    %2595 = vsyncpa [#allocation6], 1
    %s2596 = scalar_lea.sflag [#allocation6], 1
    %2597 = vsyncpa %s2596, 1

// kernel: tpu_custom_call.1
$region0: #{tpu_custom_call.1}
  #allocation0 [shape = 'u32[]', space=smem, size = 0x4, offset = 0x4, fixed_abs, tag = 'smem constant byte address 0x4 - core index']
  #allocation1 [shape = 'u32[144,128]{1,0:T(1,128)}', space=vmem, size = 0x12000, scoped, tag = 'internal scratch']
  #allocation2 [shape = 'f32[4,8,8]{2,1,0:T(8,128)}', space=vmem, size = 0x4000, scoped, tag = 'scratch operand']
  #allocation3 [shape = 'f32[4,8,8]{2,1,0:T(8,128)}', space=vmem, size = 0x4000, scoped, tag = 'scratch operand']
  %s0 = inlined_call_operand.hbm [shape: f32[2,8,32], index: 0, kind: input, shape index: {}]
  %s1 = inlined_call_operand.vmem [shape: f32[2,1,8], index: 1, kind: input, shape index: {}]
  %s2 = inlined_call_operand.vmem [shape: f32[32,32], index: 2, kind: input, shape index: {}]
  %s3 = inlined_call_operand.vmem [shape: f32[1,32], index: 3, kind: input, shape index: {}]
  %s4 = inlined_call_operand.vmem [shape: f32[32,32], index: 4, kind: input, shape index: {}]
  %s5 = inlined_call_operand.vmem [shape: f32[1,32], index: 5, kind: input, shape index: {}]
  %s6 = inlined_call_operand.vmem [shape: f32[32,32], index: 6, kind: input, shape index: {}]
  %s7 = inlined_call_operand.vmem [shape: f32[1,32], index: 7, kind: input, shape index: {}]
  %s8 = inlined_call_operand.hbm [shape: f32[32,32], index: 8, kind: input, shape index: {}]
  %s9 = inlined_call_operand.vmem [shape: f32[1,32], index: 9, kind: input, shape index: {}]
  %s10 = inlined_call_operand.vmem [shape: f32[1,32], index: 10, kind: input, shape index: {}]
  %s11 = inlined_call_operand.vmem [shape: f32[1,32], index: 11, kind: input, shape index: {}]
  %s12 = inlined_call_operand.hbm [shape: f32[32,64], index: 12, kind: input, shape index: {}]
  %s13 = inlined_call_operand.vmem [shape: f32[1,64], index: 13, kind: input, shape index: {}]
  %s14 = inlined_call_operand.vmem [shape: f32[64,32], index: 14, kind: input, shape index: {}]
  %s15 = inlined_call_operand.vmem [shape: f32[1,32], index: 15, kind: input, shape index: {}]
  %s16 = inlined_call_operand.vmem [shape: f32[1,32], index: 16, kind: input, shape index: {}]
  %s17 = inlined_call_operand.vmem [shape: f32[1,32], index: 17, kind: input, shape index: {}]
  %s18 = inlined_call_operand.hbm [shape: f32[2,8,32], index: 18, kind: output, shape index: {}]
  %s19 = sld [smem:[#allocation0]]
  $region121: #{tpu_custom_call.1} parent=0
    _
  %s21 = ssub.s32 1, %s19
  %s22 = scalar_select 0, %s21, %s19
  $region1: #{tpu_custom_call.1} parent=0
    #allocation4 [shape = 'u8[8192]{0}', space=vmem, size = 0x2000, scoped, tag = 'input window, operand 0']
    #allocation5 [shape = 's32[2]{0}', space=sflag, size = 0x8, scoped, tag = 'scoped memory for tpu_custom_call.1']
    #allocation6 [shape = 's32[2]{0}', space=sflag, size = 0x8, scoped, tag = 'scoped memory for tpu_custom_call.1']
    #allocation7 [shape = 'u8[16384]{0}', space=vmem, size = 0x4000, scoped, tag = 'input window, operand 8, single buffered']
    #allocation8 [shape = 's32[1]{0}', space=sflag, size = 0x4, scoped, tag = 'scoped memory for tpu_custom_call.1']
    #allocation9 [shape = 'u8[16384]{0}', space=vmem, size = 0x4000, scoped, tag = 'input window, operand 12, single buffered']
    #allocation10 [shape = 'u8[8192]{0}', space=vmem, size = 0x2000, scoped, tag = 'output window, operand 0']
    %23 = vsyncpa [#allocation5], 0
    %s24 = scalar_lea.sflag [#allocation5], 1
    %25 = vsyncpa %s24, 0
    %26 = vsyncpa [#allocation8], 0
    %27 = vsyncpa [#allocation6], 0
    %s28 = scalar_lea.sflag [#allocation6], 1
    %29 = vsyncpa %s28, 0
    loop: start=0, step=1, limit=4
    $region2: #{tpu_custom_call.1} parent=1 // loop_pre_header
      _
    $region3: #{tpu_custom_call.1} parent=1 // loop_header
      %s31 = sphi 0, %s35
      %p32 = scmp.ge.s32.totalorder %s31, 4
      %s38 = sphi 0, %s50
      %s39 = sphi 0, %s46
      %s40 = sphi 0, %s38
      %s41 = sphi 0, %s39
      %s42 = sphi 0, %s40
      %s43 = sphi 0, %s41
      %s53 = sphi 0, %s55
      %s56 = sphi 0, %s53
      %s57 = sphi 0, %s56
      %s73 = sphi 0, %s57
      %s79 = sphi 0, %s81
      %s82 = sphi 0, %s79
      %s83 = sphi 0, %s82
      %s99 = sphi 0, %s83
      %s103 = sphi 0, %s103
      %s105 = sphi 0, %s103
      %s106 = sphi 0, %s105
      %s120 = sphi 0, %s106
      %s124 = sphi 0, %s124
      %s126 = sphi 0, %s124
      %s127 = sphi 0, %s126
      %s141 = sphi 0, %s127
      %s145 = sphi 0, %s145
      %s147 = sphi 0, %s145
      %s148 = sphi 0, %s147
      %s162 = sphi 0, %s148
      %s166 = sphi 0, %s166
      %s168 = sphi 0, %s166
      %s169 = sphi 0, %s168
      %s183 = sphi 0, %s169
      %s187 = sphi 0, %s187
      %s189 = sphi 0, %s187
      %s190 = sphi 0, %s189
      %s204 = sphi 0, %s190
      %s208 = sphi 0, %s208
      %s210 = sphi 0, %s208
      %s211 = sphi 0, %s210
      %s225 = sphi 0, %s211
      %s229 = sphi 0, %s229
      %s231 = sphi 0, %s229
      %s232 = sphi 0, %s231
      %s246 = sphi 0, %s232
      %s250 = sphi 0, %s250
      %s252 = sphi 0, %s250
      %s253 = sphi 0, %s252
      %s267 = sphi 0, %s253
      %s271 = sphi 0, %s271
      %s273 = sphi 0, %s271
      %s274 = sphi 0, %s273
      %s288 = sphi 0, %s274
      %s292 = sphi 0, %s292
      %s294 = sphi 0, %s292
      %s295 = sphi 0, %s294
      %s309 = sphi 0, %s295
      %s313 = sphi 0, %s313
      %s315 = sphi 0, %s313
      %s316 = sphi 0, %s315
      %s330 = sphi 0, %s316
      %s334 = sphi 0, %s334
      %s336 = sphi 0, %s334
      %s337 = sphi 0, %s336
      %s351 = sphi 0, %s337
      %s355 = sphi 0, %s355
      %s357 = sphi 0, %s355
      %s358 = sphi 0, %s357
      %s372 = sphi 0, %s358
      %s376 = sphi 0, %s376
      %s378 = sphi 0, %s376
      %s379 = sphi 0, %s378
      %s393 = sphi 0, %s379
      %s397 = sphi 0, %s397
      %s399 = sphi 0, %s397
      %s400 = sphi 0, %s399
      %s414 = sphi 0, %s400
      %s418 = sphi 0, %s418
      %s420 = sphi 0, %s418
      %s421 = sphi 0, %s420
      %s435 = sphi 0, %s421
      %s443 = sphi 0, %s445
      %s446 = sphi 0, %s443
      %s447 = sphi 0, %s446
      %s463 = sphi 0, %s447
    $region4: #{tpu_custom_call.1} parent=1 // loop_header_branch
      %34 = sbr.rel (%p32) target = $region8
    $region5: #{tpu_custom_call.1} parent=1 // loop_body
      %s36 = ssub.s32 %s31, 1
      %s37 = ssub.s32 %s31, 2
      %s44 = sadd.s32 1, %s39
      %p45 = scmp.ge.s32.totalorder %s44, 1
      %s46 = scalar_select %p45, 0, %s44
      %s47 = sadd.s32 1, %s38
      %s48 = scalar_select %p45, %s47, %s38
      %p49 = scmp.ge.s32.totalorder %s48, 2
      %s50 = scalar_select %p49, 0, %s48
      %s51 = ssub.s32 %s38, %s50
      %p52 = scmp.eq.s32.totalorder %s51, 0
      %s54 = sadd.s32 %s53, 1
      %s55 = scalar_select %p52, %s53, %s54
      %p58 = pneg %p52
      %p59 = scmp.eq.s32.totalorder %s31, 1
      %p60 = por %p58, %p59
      %p61 = scmp.ne.s32.totalorder %s53, %s56
      %p62 = scmp.eq.s32.totalorder %s31, 0
      %p63 = por %p61, %p62
      %p64 = scmp.ne.s32.totalorder %s53, %s56
      %p65 = scmp.eq.s32.totalorder %s36, 1
      %p66 = por %p64, %p65
      %p67 = scmp.ne.s32.totalorder %s56, %s57
      %p68 = scmp.eq.s32.totalorder %s36, 0
      %p69 = por %p67, %p68
      %p70 = scmp.ne.s32.totalorder %s56, %s57
      %p71 = scmp.eq.s32.totalorder %s37, 1
      %p72 = por %p70, %p71
      %p74 = scmp.ne.s32.totalorder %s57, %s73
      %p75 = scmp.eq.s32.totalorder %s37, 0
      %p76 = por %p74, %p75
      %s77 = ssub.s32 %s38, %s50
      %p78 = scmp.eq.s32.totalorder %s77, 0
      %s80 = sadd.s32 %s79, 1
      %s81 = scalar_select %p78, %s79, %s80
      %p84 = pneg %p78
      %p85 = scmp.eq.s32.totalorder %s31, 1
      %p86 = por %p84, %p85
      %p87 = scmp.ne.s32.totalorder %s79, %s82
      %p88 = scmp.eq.s32.totalorder %s31, 0
      %p89 = por %p87, %p88
      %p90 = scmp.ne.s32.totalorder %s79, %s82
      %p91 = scmp.eq.s32.totalorder %s36, 1
      %p92 = por %p90, %p91
      %p93 = scmp.ne.s32.totalorder %s82, %s83
      %p94 = scmp.eq.s32.totalorder %s36, 0
      %p95 = por %p93, %p94
      %p96 = scmp.ne.s32.totalorder %s82, %s83
      %p97 = scmp.eq.s32.totalorder %s37, 1
      %p98 = por %p96, %p97
      %p100 = scmp.ne.s32.totalorder %s83, %s99
      %p101 = scmp.eq.s32.totalorder %s37, 0
      %p102 = por %p100, %p101
      %s104 = sadd.s32 %s103, 1
      %p107 = scmp.eq.s32.totalorder %s31, 1
      %p108 = scmp.ne.s32.totalorder %s103, %s105
      %p109 = scmp.eq.s32.totalorder %s31, 0
      %p110 = por %p108, %p109
      %p111 = scmp.ne.s32.totalorder %s103, %s105
      %p112 = scmp.eq.s32.totalorder %s36, 1
      %p113 = por %p111, %p112
      %p114 = scmp.ne.s32.totalorder %s105, %s106
      %p115 = scmp.eq.s32.totalorder %s36, 0
      %p116 = por %p114, %p115
      %p117 = scmp.ne.s32.totalorder %s105, %s106
      %p118 = scmp.eq.s32.totalorder %s37, 1
      %p119 = por %p117, %p118
      %p121 = scmp.ne.s32.totalorder %s106, %s120
      %p122 = scmp.eq.s32.totalorder %s37, 0
      %p123 = por %p121, %p122
      %s125 = sadd.s32 %s124, 1
      %p128 = scmp.eq.s32.totalorder %s31, 1
      %p129 = scmp.ne.s32.totalorder %s124, %s126
      %p130 = scmp.eq.s32.totalorder %s31, 0
      %p131 = por %p129, %p130
      %p132 = scmp.ne.s32.totalorder %s124, %s126
      %p133 = scmp.eq.s32.totalorder %s36, 1
      %p134 = por %p132, %p133
      %p135 = scmp.ne.s32.totalorder %s126, %s127
      %p136 = scmp.eq.s32.totalorder %s36, 0
      %p137 = por %p135, %p136
      %p138 = scmp.ne.s32.totalorder %s126, %s127
      %p139 = scmp.eq.s32.totalorder %s37, 1
      %p140 = por %p138, %p139
      %p142 = scmp.ne.s32.totalorder %s127, %s141
      %p143 = scmp.eq.s32.totalorder %s37, 0
      %p144 = por %p142, %p143
      %s146 = sadd.s32 %s145, 1
      %p149 = scmp.eq.s32.totalorder %s31, 1
      %p150 = scmp.ne.s32.totalorder %s145, %s147
      %p151 = scmp.eq.s32.totalorder %s31, 0
      %p152 = por %p150, %p151
      %p153 = scmp.ne.s32.totalorder %s145, %s147
      %p154 = scmp.eq.s32.totalorder %s36, 1
      %p155 = por %p153, %p154
      %p156 = scmp.ne.s32.totalorder %s147, %s148
      %p157 = scmp.eq.s32.totalorder %s36, 0
      %p158 = por %p156, %p157
      %p159 = scmp.ne.s32.totalorder %s147, %s148
      %p160 = scmp.eq.s32.totalorder %s37, 1
      %p161 = por %p159, %p160
      %p163 = scmp.ne.s32.totalorder %s148, %s162
      %p164 = scmp.eq.s32.totalorder %s37, 0
      %p165 = por %p163, %p164
      %s167 = sadd.s32 %s166, 1
      %p170 = scmp.eq.s32.totalorder %s31, 1
      %p171 = scmp.ne.s32.totalorder %s166, %s168
      %p172 = scmp.eq.s32.totalorder %s31, 0
      %p173 = por %p171, %p172
      %p174 = scmp.ne.s32.totalorder %s166, %s168
      %p175 = scmp.eq.s32.totalorder %s36, 1
      %p176 = por %p174, %p175
      %p177 = scmp.ne.s32.totalorder %s168, %s169
      %p178 = scmp.eq.s32.totalorder %s36, 0
      %p179 = por %p177, %p178
      %p180 = scmp.ne.s32.totalorder %s168, %s169
      %p181 = scmp.eq.s32.totalorder %s37, 1
      %p182 = por %p180, %p181
      %p184 = scmp.ne.s32.totalorder %s169, %s183
      %p185 = scmp.eq.s32.totalorder %s37, 0
      %p186 = por %p184, %p185
      %s188 = sadd.s32 %s187, 1
      %p191 = scmp.eq.s32.totalorder %s31, 1
      %p192 = scmp.ne.s32.totalorder %s187, %s189
      %p193 = scmp.eq.s32.totalorder %s31, 0
      %p194 = por %p192, %p193
      %p195 = scmp.ne.s32.totalorder %s187, %s189
      %p196 = scmp.eq.s32.totalorder %s36, 1
      %p197 = por %p195, %p196
      %p198 = scmp.ne.s32.totalorder %s189, %s190
      %p199 = scmp.eq.s32.totalorder %s36, 0
      %p200 = por %p198, %p199
      %p201 = scmp.ne.s32.totalorder %s189, %s190
      %p202 = scmp.eq.s32.totalorder %s37, 1
      %p203 = por %p201, %p202
      %p205 = scmp.ne.s32.totalorder %s190, %s204
      %p206 = scmp.eq.s32.totalorder %s37, 0
      %p207 = por %p205, %p206
      %s209 = sadd.s32 %s208, 1
      %p212 = scmp.eq.s32.totalorder %s31, 1
      %p213 = scmp.ne.s32.totalorder %s208, %s210
      %p214 = scmp.eq.s32.totalorder %s31, 0
      %p215 = por %p213, %p214
      %p216 = scmp.ne.s32.totalorder %s208, %s210
      %p217 = scmp.eq.s32.totalorder %s36, 1
      %p218 = por %p216, %p217
      %p219 = scmp.ne.s32.totalorder %s210, %s211
      %p220 = scmp.eq.s32.totalorder %s36, 0
      %p221 = por %p219, %p220
      %p222 = scmp.ne.s32.totalorder %s210, %s211
      %p223 = scmp.eq.s32.totalorder %s37, 1
      %p224 = por %p222, %p223
      %p226 = scmp.ne.s32.totalorder %s211, %s225
      %p227 = scmp.eq.s32.totalorder %s37, 0
      %p228 = por %p226, %p227
      %s230 = sadd.s32 %s229, 1
      %p233 = scmp.eq.s32.totalorder %s31, 1
      %p234 = scmp.ne.s32.totalorder %s229, %s231
      %p235 = scmp.eq.s32.totalorder %s31, 0
      %p236 = por %p234, %p235
      %p237 = scmp.ne.s32.totalorder %s229, %s231
      %p238 = scmp.eq.s32.totalorder %s36, 1
      %p239 = por %p237, %p238
      %p240 = scmp.ne.s32.totalorder %s231, %s232
      %p241 = scmp.eq.s32.totalorder %s36, 0
      %p242 = por %p240, %p241
      %p243 = scmp.ne.s32.totalorder %s231, %s232
      %p244 = scmp.eq.s32.totalorder %s37, 1
      %p245 = por %p243, %p244
      %p247 = scmp.ne.s32.totalorder %s232, %s246
      %p248 = scmp.eq.s32.totalorder %s37, 0
      %p249 = por %p247, %p248
      %s251 = sadd.s32 %s250, 1
      %p254 = scmp.eq.s32.totalorder %s31, 1
      %p255 = scmp.ne.s32.totalorder %s250, %s252
      %p256 = scmp.eq.s32.totalorder %s31, 0
      %p257 = por %p255, %p256
      %p258 = scmp.ne.s32.totalorder %s250, %s252
      %p259 = scmp.eq.s32.totalorder %s36, 1
      %p260 = por %p258, %p259
      %p261 = scmp.ne.s32.totalorder %s252, %s253
      %p262 = scmp.eq.s32.totalorder %s36, 0
      %p263 = por %p261, %p262
      %p264 = scmp.ne.s32.totalorder %s252, %s253
      %p265 = scmp.eq.s32.totalorder %s37, 1
      %p266 = por %p264, %p265
      %p268 = scmp.ne.s32.totalorder %s253, %s267
      %p269 = scmp.eq.s32.totalorder %s37, 0
      %p270 = por %p268, %p269
      %s272 = sadd.s32 %s271, 1
      %p275 = scmp.eq.s32.totalorder %s31, 1
      %p276 = scmp.ne.s32.totalorder %s271, %s273
      %p277 = scmp.eq.s32.totalorder %s31, 0
      %p278 = por %p276, %p277
      %p279 = scmp.ne.s32.totalorder %s271, %s273
      %p280 = scmp.eq.s32.totalorder %s36, 1
      %p281 = por %p279, %p280
      %p282 = scmp.ne.s32.totalorder %s273, %s274
      %p283 = scmp.eq.s32.totalorder %s36, 0
      %p284 = por %p282, %p283
      %p285 = scmp.ne.s32.totalorder %s273, %s274
      %p286 = scmp.eq.s32.totalorder %s37, 1
      %p287 = por %p285, %p286
      %p289 = scmp.ne.s32.totalorder %s274, %s288
      %p290 = scmp.eq.s32.totalorder %s37, 0
      %p291 = por %p289, %p290
      %s293 = sadd.s32 %s292, 1
      %p296 = scmp.eq.s32.totalorder %s31, 1
      %p297 = scmp.ne.s32.totalorder %s292, %s294
      %p298 = scmp.eq.s32.totalorder %s31, 0
      %p299 = por %p297, %p298
      %p300 = scmp.ne.s32.totalorder %s292, %s294
      %p301 = scmp.eq.s32.totalorder %s36, 1
      %p302 = por %p300, %p301
      %p303 = scmp.ne.s32.totalorder %s294, %s295
      %p304 = scmp.eq.s32.totalorder %s36, 0
      %p305 = por %p303, %p304
      %p306 = scmp.ne.s32.totalorder %s294, %s295
      %p307 = scmp.eq.s32.totalorder %s37, 1
      %p308 = por %p306, %p307
      %p310 = scmp.ne.s32.totalorder %s295, %s309
      %p311 = scmp.eq.s32.totalorder %s37, 0
      %p312 = por %p310, %p311
      %s314 = sadd.s32 %s313, 1
      %p317 = scmp.eq.s32.totalorder %s31, 1
      %p318 = scmp.ne.s32.totalorder %s313, %s315
      %p319 = scmp.eq.s32.totalorder %s31, 0
      %p320 = por %p318, %p319
      %p321 = scmp.ne.s32.totalorder %s313, %s315
      %p322 = scmp.eq.s32.totalorder %s36, 1
      %p323 = por %p321, %p322
      %p324 = scmp.ne.s32.totalorder %s315, %s316
      %p325 = scmp.eq.s32.totalorder %s36, 0
      %p326 = por %p324, %p325
      %p327 = scmp.ne.s32.totalorder %s315, %s316
      %p328 = scmp.eq.s32.totalorder %s37, 1
      %p329 = por %p327, %p328
      %p331 = scmp.ne.s32.totalorder %s316, %s330
      %p332 = scmp.eq.s32.totalorder %s37, 0
      %p333 = por %p331, %p332
      %s335 = sadd.s32 %s334, 1
      %p338 = scmp.eq.s32.totalorder %s31, 1
      %p339 = scmp.ne.s32.totalorder %s334, %s336
      %p340 = scmp.eq.s32.totalorder %s31, 0
      %p341 = por %p339, %p340
      %p342 = scmp.ne.s32.totalorder %s334, %s336
      %p343 = scmp.eq.s32.totalorder %s36, 1
      %p344 = por %p342, %p343
      %p345 = scmp.ne.s32.totalorder %s336, %s337
      %p346 = scmp.eq.s32.totalorder %s36, 0
      %p347 = por %p345, %p346
      %p348 = scmp.ne.s32.totalorder %s336, %s337
      %p349 = scmp.eq.s32.totalorder %s37, 1
      %p350 = por %p348, %p349
      %p352 = scmp.ne.s32.totalorder %s337, %s351
      %p353 = scmp.eq.s32.totalorder %s37, 0
      %p354 = por %p352, %p353
      %s356 = sadd.s32 %s355, 1
      %p359 = scmp.eq.s32.totalorder %s31, 1
      %p360 = scmp.ne.s32.totalorder %s355, %s357
      %p361 = scmp.eq.s32.totalorder %s31, 0
      %p362 = por %p360, %p361
      %p363 = scmp.ne.s32.totalorder %s355, %s357
      %p364 = scmp.eq.s32.totalorder %s36, 1
      %p365 = por %p363, %p364
      %p366 = scmp.ne.s32.totalorder %s357, %s358
      %p367 = scmp.eq.s32.totalorder %s36, 0
      %p368 = por %p366, %p367
      %p369 = scmp.ne.s32.totalorder %s357, %s358
      %p370 = scmp.eq.s32.totalorder %s37, 1
      %p371 = por %p369, %p370
      %p373 = scmp.ne.s32.totalorder %s358, %s372
      %p374 = scmp.eq.s32.totalorder %s37, 0
      %p375 = por %p373, %p374
      %s377 = sadd.s32 %s376, 1
      %p380 = scmp.eq.s32.totalorder %s31, 1
      %p381 = scmp.ne.s32.totalorder %s376, %s378
      %p382 = scmp.eq.s32.totalorder %s31, 0
      %p383 = por %p381, %p382
      %p384 = scmp.ne.s32.totalorder %s376, %s378
      %p385 = scmp.eq.s32.totalorder %s36, 1
      %p386 = por %p384, %p385
      %p387 = scmp.ne.s32.totalorder %s378, %s379
      %p388 = scmp.eq.s32.totalorder %s36, 0
      %p389 = por %p387, %p388
      %p390 = scmp.ne.s32.totalorder %s378, %s379
      %p391 = scmp.eq.s32.totalorder %s37, 1
      %p392 = por %p390, %p391
      %p394 = scmp.ne.s32.totalorder %s379, %s393
      %p395 = scmp.eq.s32.totalorder %s37, 0
      %p396 = por %p394, %p395
      %s398 = sadd.s32 %s397, 1
      %p401 = scmp.eq.s32.totalorder %s31, 1
      %p402 = scmp.ne.s32.totalorder %s397, %s399
      %p403 = scmp.eq.s32.totalorder %s31, 0
      %p404 = por %p402, %p403
      %p405 = scmp.ne.s32.totalorder %s397, %s399
      %p406 = scmp.eq.s32.totalorder %s36, 1
      %p407 = por %p405, %p406
      %p408 = scmp.ne.s32.totalorder %s399, %s400
      %p409 = scmp.eq.s32.totalorder %s36, 0
      %p410 = por %p408, %p409
      %p411 = scmp.ne.s32.totalorder %s399, %s400
      %p412 = scmp.eq.s32.totalorder %s37, 1
      %p413 = por %p411, %p412
      %p415 = scmp.ne.s32.totalorder %s400, %s414
      %p416 = scmp.eq.s32.totalorder %s37, 0
      %p417 = por %p415, %p416
      %s419 = sadd.s32 %s418, 1
      %p422 = scmp.eq.s32.totalorder %s31, 1
      %p423 = scmp.ne.s32.totalorder %s418, %s420
      %p424 = scmp.eq.s32.totalorder %s31, 0
      %p425 = por %p423, %p424
      %p426 = scmp.ne.s32.totalorder %s418, %s420
      %p427 = scmp.eq.s32.totalorder %s36, 1
      %p428 = por %p426, %p427
      %p429 = scmp.ne.s32.totalorder %s420, %s421
      %p430 = scmp.eq.s32.totalorder %s36, 0
      %p431 = por %p429, %p430
      %p432 = scmp.ne.s32.totalorder %s420, %s421
      %p433 = scmp.eq.s32.totalorder %s37, 1
      %p434 = por %p432, %p433
      %p436 = scmp.ne.s32.totalorder %s421, %s435
      %p437 = scmp.eq.s32.totalorder %s37, 0
      %p438 = por %p436, %p437
      %s439 = ssub.s32 %s38, %s50
      %s440 = ssub.s32 %s39, %s46
      %s441 = sor.u32 %s439, %s440
      %p442 = scmp.eq.s32.totalorder %s441, 0
      %s444 = sadd.s32 %s443, 1
      %s445 = scalar_select %p442, %s443, %s444
      %p448 = pneg %p442
      %p449 = scmp.eq.s32.totalorder %s31, 1
      %p450 = por %p448, %p449
      %p451 = scmp.ne.s32.totalorder %s443, %s446
      %p452 = scmp.eq.s32.totalorder %s31, 0
      %p453 = por %p451, %p452
      %p454 = scmp.ne.s32.totalorder %s443, %s446
      %p455 = scmp.eq.s32.totalorder %s36, 1
      %p456 = por %p454, %p455
      %p457 = scmp.ne.s32.totalorder %s446, %s447
      %p458 = scmp.eq.s32.totalorder %s36, 0
      %p459 = por %p457, %p458
      %p460 = scmp.ne.s32.totalorder %s446, %s447
      %p461 = scmp.eq.s32.totalorder %s37, 1
      %p462 = por %p460, %p461
      %p464 = scmp.ne.s32.totalorder %s447, %s463
      %p465 = scmp.eq.s32.totalorder %s37, 0
      %p466 = por %p464, %p465
      %p467 = scmp.le.s32.totalorder 1, %s31
      %p468 = scmp.lt.s32.totalorder %s31, 3
      %p469 = pnand %p467, %p468
      %p470 = pneg %p469
      // Predicated region
      $region9: #{tpu_custom_call.1} parent=5 // pred_check
        _
      $region10: #{tpu_custom_call.1} parent=5 // pred_check_branch
        %472 = sbr.rel (%p469) target = $region12
      $region11: #{tpu_custom_call.1} parent=5 // pred_region
        %s473 = ssub.s32 %s31, 1
        // Predicated region
        $region13: #{tpu_custom_call.1} parent=11 // pred_check
          %p474 = pneg %p116
        $region14: #{tpu_custom_call.1} parent=11 // pred_check_branch
          %476 = sbr.rel (%p474) target = $region16
        $region15: #{tpu_custom_call.1} parent=11 // pred_region
          _
        $region16: #{tpu_custom_call.1} parent=11 // pred_fallthru
          _
        // Predicated region
        $region17: #{tpu_custom_call.1} parent=11 // pred_check
          %p477 = pneg %p137
        $region18: #{tpu_custom_call.1} parent=11 // pred_check_branch
          %479 = sbr.rel (%p477) target = $region20
        $region19: #{tpu_custom_call.1} parent=11 // pred_region
          _
        $region20: #{tpu_custom_call.1} parent=11 // pred_fallthru
          _
        // Predicated region
        $region21: #{tpu_custom_call.1} parent=11 // pred_check
          %p480 = pneg %p158
        $region22: #{tpu_custom_call.1} parent=11 // pred_check_branch
          %482 = sbr.rel (%p480) target = $region24
        $region23: #{tpu_custom_call.1} parent=11 // pred_region
          _
        $region24: #{tpu_custom_call.1} parent=11 // pred_fallthru
          _
        // Predicated region
        $region25: #{tpu_custom_call.1} parent=11 // pred_check
          %p483 = pneg %p179
        $region26: #{tpu_custom_call.1} parent=11 // pred_check_branch
          %485 = sbr.rel (%p483) target = $region28
        $region27: #{tpu_custom_call.1} parent=11 // pred_region
          _
        $region28: #{tpu_custom_call.1} parent=11 // pred_fallthru
          _
        // Predicated region
        $region29: #{tpu_custom_call.1} parent=11 // pred_check
          %p486 = pneg %p200
        $region30: #{tpu_custom_call.1} parent=11 // pred_check_branch
          %488 = sbr.rel (%p486) target = $region32
        $region31: #{tpu_custom_call.1} parent=11 // pred_region
          _
        $region32: #{tpu_custom_call.1} parent=11 // pred_fallthru
          _
        // Predicated region
        $region33: #{tpu_custom_call.1} parent=11 // pred_check
          %p489 = pneg %p221
        $region34: #{tpu_custom_call.1} parent=11 // pred_check_branch
          %491 = sbr.rel (%p489) target = $region36
        $region35: #{tpu_custom_call.1} parent=11 // pred_region
          _
        $region36: #{tpu_custom_call.1} parent=11 // pred_fallthru
          _
        // Predicated region
        $region37: #{tpu_custom_call.1} parent=11 // pred_check
          %p492 = pneg %p242
        $region38: #{tpu_custom_call.1} parent=11 // pred_check_branch
          %494 = sbr.rel (%p492) target = $region40
        $region39: #{tpu_custom_call.1} parent=11 // pred_region
          %s496 = ssub.s32 512, 512
          %497 = vsyncadd [#allocation8], %s496
          %s498 = sshll.u32 [#allocation7], 4
          %s499 = int_to_ptr.vmem [resolvable:$true] %s498
          %504 = dma.hbm_to_vmem [thread:$0]  %s8, 512, %s499, [#allocation8], 128, 128, 8
        $region40: #{tpu_custom_call.1} parent=11 // pred_fallthru
          _
        // Predicated region
        $region41: #{tpu_custom_call.1} parent=11 // pred_check
          %p505 = pneg %p263
        $region42: #{tpu_custom_call.1} parent=11 // pred_check_branch
          %507 = sbr.rel (%p505) target = $region44
        $region43: #{tpu_custom_call.1} parent=11 // pred_region
          _
        $region44: #{tpu_custom_call.1} parent=11 // pred_fallthru
          _
        // Predicated region
        $region45: #{tpu_custom_call.1} parent=11 // pred_check
          %p508 = pneg %p284
        $region46: #{tpu_custom_call.1} parent=11 // pred_check_branch
          %510 = sbr.rel (%p508) target = $region48
        $region47: #{tpu_custom_call.1} parent=11 // pred_region
          _
        $region48: #{tpu_custom_call.1} parent=11 // pred_fallthru
          _
        // Predicated region
        $region49: #{tpu_custom_call.1} parent=11 // pred_check
          %p511 = pneg %p305
        $region50: #{tpu_custom_call.1} parent=11 // pred_check_branch
          %513 = sbr.rel (%p511) target = $region52
        $region51: #{tpu_custom_call.1} parent=11 // pred_region
          _
        $region52: #{tpu_custom_call.1} parent=11 // pred_fallthru
          _
        // Predicated region
        $region53: #{tpu_custom_call.1} parent=11 // pred_check
          %p514 = pneg %p326
        $region54: #{tpu_custom_call.1} parent=11 // pred_check_branch
          %516 = sbr.rel (%p514) target = $region56
        $region55: #{tpu_custom_call.1} parent=11 // pred_region
          %s518 = ssub.s32 512, 512
          %519 = vsyncadd [#allocation8], %s518
          %s520 = sshll.u32 [#allocation9], 4
          %s521 = int_to_ptr.vmem [resolvable:$true] %s520
          %526 = dma.hbm_to_vmem [thread:$0]  %s12, 512, %s521, [#allocation8], 128, 128, 8
        $region56: #{tpu_custom_call.1} parent=11 // pred_fallthru
          _
        // Predicated region
        $region57: #{tpu_custom_call.1} parent=11 // pred_check
          %p527 = pneg %p347
        $region58: #{tpu_custom_call.1} parent=11 // pred_check_branch
          %529 = sbr.rel (%p527) target = $region60
        $region59: #{tpu_custom_call.1} parent=11 // pred_region
          _
        $region60: #{tpu_custom_call.1} parent=11 // pred_fallthru
          _
        // Predicated region
        $region61: #{tpu_custom_call.1} parent=11 // pred_check
          %p530 = pneg %p368
        $region62: #{tpu_custom_call.1} parent=11 // pred_check_branch
          %532 = sbr.rel (%p530) target = $region64
        $region63: #{tpu_custom_call.1} parent=11 // pred_region
          _
        $region64: #{tpu_custom_call.1} parent=11 // pred_fallthru
          _
        // Predicated region
        $region65: #{tpu_custom_call.1} parent=11 // pred_check
          %p533 = pneg %p389
        $region66: #{tpu_custom_call.1} parent=11 // pred_check_branch
          %535 = sbr.rel (%p533) target = $region68
        $region67: #{tpu_custom_call.1} parent=11 // pred_region
          _
        $region68: #{tpu_custom_call.1} parent=11 // pred_fallthru
          _
        // Predicated region
        $region69: #{tpu_custom_call.1} parent=11 // pred_check
          %p536 = pneg %p410
        $region70: #{tpu_custom_call.1} parent=11 // pred_check_branch
          %538 = sbr.rel (%p536) target = $region72
        $region71: #{tpu_custom_call.1} parent=11 // pred_region
          _
        $region72: #{tpu_custom_call.1} parent=11 // pred_fallthru
          _
        // Predicated region
        $region73: #{tpu_custom_call.1} parent=11 // pred_check
          %p539 = pneg %p431
        $region74: #{tpu_custom_call.1} parent=11 // pred_check_branch
          %541 = sbr.rel (%p539) target = $region76
        $region75: #{tpu_custom_call.1} parent=11 // pred_region
          _
        $region76: #{tpu_custom_call.1} parent=11 // pred_fallthru
          _
      $region12: #{tpu_custom_call.1} parent=5 // pred_fallthru
        _
      %p542 = scmp.lt.s32.totalorder %s31, 2
      // Predicated region
      $region77: #{tpu_custom_call.1} parent=5 // pred_check
        %p543 = pneg %p542
      $region78: #{tpu_custom_call.1} parent=5 // pred_check_branch
        %545 = sbr.rel (%p543) target = $region80
      $region79: #{tpu_custom_call.1} parent=5 // pred_region
        // Predicated region
        $region81: #{tpu_custom_call.1} parent=79 // pred_check
          %p546 = pneg %p63
        $region82: #{tpu_custom_call.1} parent=79 // pred_check_branch
          %548 = sbr.rel (%p546) target = $region84
        $region83: #{tpu_custom_call.1} parent=79 // pred_region
          %s549 = sand.u32 %s53, 1
          %s550 = scalar_lea.sflag [#allocation5], %s549
          %s551 = sand.u32 %s53, 1
          %s552 = smul.addr %s551, 8
          %s553 = scalar_lea.vmem [#allocation4], %s552
          %s555 = ssub.s32 128, 128
          %556 = vsyncadd %s550, %s555
          %s557 = smul.addr %s38, 128
          %s558 = scalar_lea.hbm %s0, %s557
          %s560 = sshll.u32 %s553, 4
          %s561 = int_to_ptr.vmem [resolvable:$true] %s560
          %563 = dma.hbm_to_vmem [thread:$0]  %s558, 128, %s561, %s550
        $region84: #{tpu_custom_call.1} parent=79 // pred_fallthru
          _
        // Predicated region
        $region85: #{tpu_custom_call.1} parent=79 // pred_check
          %p564 = pneg %p89
        $region86: #{tpu_custom_call.1} parent=79 // pred_check_branch
          %566 = sbr.rel (%p564) target = $region88
        $region87: #{tpu_custom_call.1} parent=79 // pred_region
          %p567 = scmp.lt.s32.totalorder %s38, 1
          %s568 = scalar_select %p567, %s38, 1
          %s569 = scalar_lea.vmem %s1, %s568
        $region88: #{tpu_custom_call.1} parent=79 // pred_fallthru
          _
      $region80: #{tpu_custom_call.1} parent=5 // pred_fallthru
        _
      %p570 = scmp.le.s32.totalorder 1, %s31
      %p571 = scmp.lt.s32.totalorder %s31, 3
      %p572 = pnand %p570, %p571
      %p573 = pneg %p572
      // Predicated region
      $region89: #{tpu_custom_call.1} parent=5 // pred_check
        _
      $region90: #{tpu_custom_call.1} parent=5 // pred_check_branch
        %575 = sbr.rel (%p572) target = $region92
      $region91: #{tpu_custom_call.1} parent=5 // pred_region
        %s576 = ssub.s32 %s31, 1
        %s577 = sand.u32 %s56, 1
        %s578 = scalar_lea.sflag [#allocation5], %s577
        %s579 = sand.u32 %s56, 1
        %s580 = smul.addr %s579, 8
        %s581 = scalar_lea.vmem [#allocation4], %s580
        // Predicated region
        $region93: #{tpu_custom_call.1} parent=91 // pred_check
          %p582 = pneg %p69
        $region94: #{tpu_custom_call.1} parent=91 // pred_check_branch
          %584 = sbr.rel (%p582) target = $region96
        $region95: #{tpu_custom_call.1} parent=91 // pred_region
          %585 = dma.done %s578, 128
        $region96: #{tpu_custom_call.1} parent=91 // pred_fallthru
          _
        // Predicated region
        $region97: #{tpu_custom_call.1} parent=91 // pred_check
          %p586 = pneg %p242
        $region98: #{tpu_custom_call.1} parent=91 // pred_check_branch
          %588 = sbr.rel (%p586) target = $region100
        $region99: #{tpu_custom_call.1} parent=91 // pred_region
          %589 = dma.done [#allocation8], 512
        $region100: #{tpu_custom_call.1} parent=91 // pred_fallthru
          _
        // Predicated region
        $region101: #{tpu_custom_call.1} parent=91 // pred_check
          %p590 = pneg %p326
        $region102: #{tpu_custom_call.1} parent=91 // pred_check_branch
          %592 = sbr.rel (%p590) target = $region104
        $region103: #{tpu_custom_call.1} parent=91 // pred_region
          %593 = dma.done [#allocation8], 512
        $region104: #{tpu_custom_call.1} parent=91 // pred_fallthru
          _
        %s594 = sand.u32 %s56, 1
        %s595 = scalar_lea.sflag [#allocation5], %s594
        %s596 = sand.u32 %s56, 1
        %s597 = smul.addr %s596, 8
        %s598 = scalar_lea.vmem [#allocation4], %s597
        %p599 = pneg %p69
        %p600 = pneg %p66
        %p601 = scmp.lt.s32.totalorder %s40, 1
        %s602 = scalar_select %p601, %s40, 1
        %s603 = scalar_lea.vmem %s1, %s602
        %p604 = pneg %p95
        %p605 = pneg %p92
        %p606 = pneg %p116
        %p607 = pneg %p113
        %p608 = pneg %p137
        %p609 = pneg %p134
        %p610 = pneg %p158
        %p611 = pneg %p155
        %p612 = pneg %p179
        %p613 = pneg %p176
        %p614 = pneg %p200
        %p615 = pneg %p197
        %p616 = pneg %p221
        %p617 = pneg %p218
        %p618 = pneg %p242
        %p619 = pneg %p239
        %p620 = pneg %p263
        %p621 = pneg %p260
        %p622 = pneg %p284
        %p623 = pneg %p281
        %p624 = pneg %p305
        %p625 = pneg %p302
        %p626 = pneg %p326
        %p627 = pneg %p323
        %p628 = pneg %p347
        %p629 = pneg %p344
        %p630 = pneg %p368
        %p631 = pneg %p365
        %p632 = pneg %p389
        %p633 = pneg %p386
        %p634 = pneg %p410
        %p635 = pneg %p407
        %p636 = pneg %p431
        %p637 = pneg %p428
        %p638 = pneg %p459
        %p639 = pneg %p456
        %s640 = sand.u32 %s446, 1
        %s641 = scalar_lea.sflag [#allocation6], %s640
        %s642 = sand.u32 %s446, 1
        %s643 = smul.addr %s642, 8
        %s644 = scalar_lea.vmem [#allocation10], %s643
        %p645 = scmp.lt.s32.totalorder %s40, 1
        %s646 = scalar_select %p645, %s40, 1
        %s647 = scalar_lea.vmem %s1, %s646
        %p648 = scmp.eq.s32.totalorder %s41, 0
        // Predicated region
        $region105: #{tpu_custom_call.1} parent=91 // pred_check
          %p649 = pneg %p648
        $region106: #{tpu_custom_call.1} parent=91 // pred_check_branch
          %651 = sbr.rel (%p649) target = $region108
        $region107: #{tpu_custom_call.1} parent=91 // pred_region
          %v652 = vld [vmem:[%s581] sm:$0xff]
          %v653 = vld [vmem:[%s4] sm:$0xff]
          %v654 = vld [vmem:[%s4 + $0x8] sm:$0xff]
          %v655 = vld [vmem:[%s4 + $0x10] sm:$0xff]
          %v656 = vld [vmem:[%s4 + $0x18] sm:$0xff]
          %v657 = vld [vmem:[%s5] sm:$0x1]
          %v659 = vlaneseq
          %v660 = vshrl.u32 %v659, 7
          %v661 = vsub.s32 0, %v660
          %v662 = vrot.slane %v657, %v661
          %vm664 = vcmask 261120
          %v666 = vsel %vm664, %v652, 0
          %668 = vmatprep.subr.mxu0 0.0
          %669 = vmatpush1.msra.mxu0 %v653
          %670 = vmatprep.subr.mxu0 0.0
          %671 = vmatpush1.msra.mxu0 %v654
          %672 = vmatprep.subr.mxu0 0.0
          %673 = vmatpush1.msra.mxu0 %v655
          %674 = vmatprep.subr.mxu0 0.0
          %675 = vmatpush1.msra.mxu0 %v656
          %676 = vmatprep.subr.mxu0 0.0
          %677 = vmatpush1.msra.mxu0 0.0
          %678 = vmatprep.subr.mxu0 0.0
          %679 = vmatpush1.msra.mxu0 0.0
          %680 = vmatprep.subr.mxu0 0.0
          %681 = vmatpush1.msra.mxu0 0.0
          %682 = vmatprep.subr.mxu0 0.0
          %683 = vmatpush1.msra.mxu0 0.0
          %684 = vmatprep.subr.mxu0 0.0
          %685 = vmatpush1.msra.mxu0 0.0
          %686 = vmatprep.subr.mxu0 0.0
          %687 = vmatpush1.msra.mxu0 0.0
          %688 = vmatprep.subr.mxu0 0.0
          %689 = vmatpush1.msra.mxu0 0.0
          %690 = vmatprep.subr.mxu0 0.0
          %691 = vmatpush1.msra.mxu0 0.0
          %692 = vmatprep.subr.mxu0 0.0
          %693 = vmatpush1.msra.mxu0 0.0
          %694 = vmatprep.subr.mxu0 0.0
          %695 = vmatpush1.msra.mxu0 0.0
          %696 = vmatprep.subr.mxu0 0.0
          %697 = vmatpush1.msra.mxu0 0.0
          %698 = vmatprep.subr.mxu0 0.0
          %699 = vmatpush1.msra.mxu0 0.0
          %700 = vmatprep.subr.mxu0 0.0
          %701 = vmatpush1.msra.mxu0 0.0
          %702 = vmatprep.subr.mxu0 0.0
          %703 = vmatpush1.msra.mxu0 0.0
          %704 = vmatprep.subr.mxu0 0.0
          %705 = vmatpush1.msra.mxu0 0.0
          %706 = vmatprep.subr.mxu0 0.0
          %707 = vmatpush1.msra.mxu0 0.0
          %708 = vmatprep.subr.mxu0 0.0
          %709 = vmatpush1.msra.mxu0 0.0
          %710 = vmatprep.subr.mxu0 0.0
          %711 = vmatpush1.msra.mxu0 0.0
          %712 = vmatprep.subr.mxu0 0.0
          %713 = vmatpush1.msra.mxu0 0.0
          %714 = vmatprep.subr.mxu0 0.0
          %715 = vmatpush1.msra.mxu0 0.0
          %716 = vmatprep.subr.mxu0 0.0
          %717 = vmatpush1.msra.mxu0 0.0
          %718 = vmatprep.subr.mxu0 0.0
          %719 = vmatpush1.msra.mxu0 0.0
          %720 = vmatprep.subr.mxu0 0.0
          %721 = vmatpush1.msra.mxu0 0.0
          %722 = vmatprep.subr.mxu0 0.0
          %723 = vmatpush1.msra.mxu0 0.0
          %724 = vmatprep.subr.mxu0 0.0
          %725 = vmatpush1.msra.mxu0 0.0
          %726 = vmatprep.subr.mxu0 0.0
          %727 = vmatpush1.msra.mxu0 0.0
          %728 = vmatprep.subr.mxu0 0.0
          %729 = vmatpush1.msra.mxu0 0.0
          %730 = vmatprep.subr.mxu0 0.0
          %731 = vmatpush1.msra.mxu0 0.0
          %732 = vmatprep.mubr.f32.mxu0 0.0
          %733 = vmatmul.mubr.f32.gmra.mrb[0].mxu0 %v666
          %v734 = vpop.f32.mrb[0].mxu0
          %v735 = vadd.f32 %v662, %v734
          %v736 = vpop.f32.mrb[0].mxu0
          %737 = vdwg.mxu0
          %v738 = vld [vmem:[%s6] sm:$0xff]
          %v739 = vld [vmem:[%s6 + $0x8] sm:$0xff]
          %v740 = vld [vmem:[%s6 + $0x10] sm:$0xff]
          %v741 = vld [vmem:[%s6 + $0x18] sm:$0xff]
          %v742 = vld [vmem:[%s7] sm:$0x1]
          %v744 = vlaneseq
          %v745 = vshrl.u32 %v744, 7
          %v746 = vsub.s32 0, %v745
          %v747 = vrot.slane %v742, %v746
          %749 = vmatprep.subr.mxu0 0.0
          %750 = vmatpush1.msra.mxu0 %v738
          %751 = vmatprep.subr.mxu0 0.0
          %752 = vmatpush1.msra.mxu0 %v739
          %753 = vmatprep.subr.mxu0 0.0
          %754 = vmatpush1.msra.mxu0 %v740
          %755 = vmatprep.subr.mxu0 0.0
          %756 = vmatpush1.msra.mxu0 %v741
          %757 = vmatprep.subr.mxu0 0.0
          %758 = vmatpush1.msra.mxu0 0.0
          %759 = vmatprep.subr.mxu0 0.0
          %760 = vmatpush1.msra.mxu0 0.0
          %761 = vmatprep.subr.mxu0 0.0
          %762 = vmatpush1.msra.mxu0 0.0
          %763 = vmatprep.subr.mxu0 0.0
          %764 = vmatpush1.msra.mxu0 0.0
          %765 = vmatprep.subr.mxu0 0.0
          %766 = vmatpush1.msra.mxu0 0.0
          %767 = vmatprep.subr.mxu0 0.0
          %768 = vmatpush1.msra.mxu0 0.0
          %769 = vmatprep.subr.mxu0 0.0
          %770 = vmatpush1.msra.mxu0 0.0
          %771 = vmatprep.subr.mxu0 0.0
          %772 = vmatpush1.msra.mxu0 0.0
          %773 = vmatprep.subr.mxu0 0.0
          %774 = vmatpush1.msra.mxu0 0.0
          %775 = vmatprep.subr.mxu0 0.0
          %776 = vmatpush1.msra.mxu0 0.0
          %777 = vmatprep.subr.mxu0 0.0
          %778 = vmatpush1.msra.mxu0 0.0
          %779 = vmatprep.subr.mxu0 0.0
          %780 = vmatpush1.msra.mxu0 0.0
          %781 = vmatprep.subr.mxu0 0.0
          %782 = vmatpush1.msra.mxu0 0.0
          %783 = vmatprep.subr.mxu0 0.0
          %784 = vmatpush1.msra.mxu0 0.0
          %785 = vmatprep.subr.mxu0 0.0
          %786 = vmatpush1.msra.mxu0 0.0
          %787 = vmatprep.subr.mxu0 0.0
          %788 = vmatpush1.msra.mxu0 0.0
          %789 = vmatprep.subr.mxu0 0.0
          %790 = vmatpush1.msra.mxu0 0.0
          %791 = vmatprep.subr.mxu0 0.0
          %792 = vmatpush1.msra.mxu0 0.0
          %793 = vmatprep.subr.mxu0 0.0
          %794 = vmatpush1.msra.mxu0 0.0
          %795 = vmatprep.subr.mxu0 0.0
          %796 = vmatpush1.msra.mxu0 0.0
          %797 = vmatprep.subr.mxu0 0.0
          %798 = vmatpush1.msra.mxu0 0.0
          %799 = vmatprep.subr.mxu0 0.0
          %800 = vmatpush1.msra.mxu0 0.0
          %801 = vmatprep.subr.mxu0 0.0
          %802 = vmatpush1.msra.mxu0 0.0
          %803 = vmatprep.subr.mxu0 0.0
          %804 = vmatpush1.msra.mxu0 0.0
          %805 = vmatprep.subr.mxu0 0.0
          %806 = vmatpush1.msra.mxu0 0.0
          %807 = vmatprep.subr.mxu0 0.0
          %808 = vmatpush1.msra.mxu0 0.0
          %809 = vmatprep.subr.mxu0 0.0
          %810 = vmatpush1.msra.mxu0 0.0
          %811 = vmatprep.subr.mxu0 0.0
          %812 = vmatpush1.msra.mxu0 0.0
          %813 = vmatprep.mubr.f32.mxu0 0.0
          %814 = vmatmul.mubr.f32.gmra.mrb[0].mxu0 %v666
          %v815 = vpop.f32.mrb[0].mxu0
          %v816 = vadd.f32 %v747, %v815
          %v817 = vpop.f32.mrb[0].mxu0
          %818 = vdwg.mxu0
          %820 = vrot.lane.b32.xlu0 %v735, 120
          %v821 = vpop.permute.xlu0 %820
          %823 = vrot.lane.b32.xlu0 %v735, 112
          %v824 = vpop.permute.xlu0 %823
          %826 = vrot.lane.b32.xlu0 %v735, 104
          %v827 = vpop.permute.xlu0 %826
          %v829 = vcombine.low %v735, %v824
          %v830 = vcombine.high %v735, %v824
          %v832 = vunpack.c.l.s4 1983009808
          %v833 = vunpack.c.0.s8 %v832
          %v834 = vlaneseq
          %v835 = vshrl.u32 %v834, 7
          %v836 = vsub.s32 %v833, %v835
          %v837 = vrot.slane %v829, %v836
          %v839 = vunpack.c.l.s4 1983009808
          %v840 = vunpack.c.0.s8 %v839
          %v841 = vlaneseq
          %v842 = vshrl.u32 %v841, 7
          %v843 = vsub.s32 %v840, %v842
          %v844 = vrot.slane %v830, %v843
          %v845 = vcombine.low %v821, %v827
          %v846 = vcombine.high %v821, %v827
          %v848 = vunpack.c.l.s4 1983009808
          %v849 = vunpack.c.0.s8 %v848
          %v850 = vlaneseq
          %v851 = vshrl.u32 %v850, 7
          %v852 = vsub.s32 %v849, %v851
          %v853 = vrot.slane %v845, %v852
          %v855 = vunpack.c.l.s4 1983009808
          %v856 = vunpack.c.0.s8 %v855
          %v857 = vlaneseq
          %v858 = vshrl.u32 %v857, 7
          %v859 = vsub.s32 %v856, %v858
          %v860 = vrot.slane %v846, %v859
          %v861 = vcombine.low %v837, %v853
          %v862 = vcombine.high %v837, %v853
          %v864 = vunpack.c.l.s4 1934713408
          %v865 = vunpack.c.0.s8 %v864
          %v866 = vlaneseq
          %v867 = vshrl.u32 %v866, 7
          %v868 = vsub.s32 %v865, %v867
          %v869 = vrot.slane %v861, %v868
          %v871 = vunpack.c.l.s4 1934713408
          %v872 = vunpack.c.0.s8 %v871
          %v873 = vlaneseq
          %v874 = vshrl.u32 %v873, 7
          %v875 = vsub.s32 %v872, %v874
          %v876 = vrot.slane %v862, %v875
          %v877 = vcombine.low %v844, %v860
          %v878 = vcombine.high %v844, %v860
          %v880 = vunpack.c.l.s4 1934713408
          %v881 = vunpack.c.0.s8 %v880
          %v882 = vlaneseq
          %v883 = vshrl.u32 %v882, 7
          %v884 = vsub.s32 %v881, %v883
          %v885 = vrot.slane %v877, %v884
          %v887 = vunpack.c.l.s4 1934713408
          %v888 = vunpack.c.0.s8 %v887
          %v889 = vlaneseq
          %v890 = vshrl.u32 %v889, 7
          %v891 = vsub.s32 %v888, %v890
          %v892 = vrot.slane %v878, %v891
          %v893 = vcombine.high %v869, 0.0
          %v894 = vcombine.high %v876, 0.0
          %v895 = vcombine.high %v885, 0.0
          %v896 = vcombine.high %v892, 0.0
          %v897 = vcombine.low %v869, %v876
          %v899 = vunpack.c.l.s4 1983009808
          %v900 = vunpack.c.0.s8 %v899
          %v901 = vlaneseq
          %v902 = vshrl.u32 %v901, 7
          %v903 = vsub.s32 %v900, %v902
          %v904 = vrot.slane %v897, %v903
          %v905 = vcombine.low %v893, %v894
          %v907 = vunpack.c.l.s4 1983009808
          %v908 = vunpack.c.0.s8 %v907
          %v909 = vlaneseq
          %v910 = vshrl.u32 %v909, 7
          %v911 = vsub.s32 %v908, %v910
          %v912 = vrot.slane %v905, %v911
          %v913 = vcombine.low %v885, %v892
          %v915 = vunpack.c.l.s4 1983009808
          %v916 = vunpack.c.0.s8 %v915
          %v917 = vlaneseq
          %v918 = vshrl.u32 %v917, 7
          %v919 = vsub.s32 %v916, %v918
          %v920 = vrot.slane %v913, %v919
          %v921 = vcombine.low %v895, %v896
          %v923 = vunpack.c.l.s4 1983009808
          %v924 = vunpack.c.0.s8 %v923
          %v925 = vlaneseq
          %v926 = vshrl.u32 %v925, 7
          %v927 = vsub.s32 %v924, %v926
          %v928 = vrot.slane %v921, %v927
          %v929 = vcombine.low %v904, %v912
          %v930 = vcombine.high %v904, %v912
          %v932 = vunpack.c.l.s4 1934713408
          %v933 = vunpack.c.0.s8 %v932
          %v934 = vlaneseq
          %v935 = vshrl.u32 %v934, 7
          %v936 = vsub.s32 %v933, %v935
          %v937 = vrot.slane %v929, %v936
          %v939 = vunpack.c.l.s4 1934713408
          %v940 = vunpack.c.0.s8 %v939
          %v941 = vlaneseq
          %v942 = vshrl.u32 %v941, 7
          %v943 = vsub.s32 %v940, %v942
          %v944 = vrot.slane %v930, %v943
          %v945 = vcombine.low %v920, %v928
          %v946 = vcombine.high %v920, %v928
          %v948 = vunpack.c.l.s4 1934713408
          %v949 = vunpack.c.0.s8 %v948
          %v950 = vlaneseq
          %v951 = vshrl.u32 %v950, 7
          %v952 = vsub.s32 %v949, %v951
          %v953 = vrot.slane %v945, %v952
          %v955 = vunpack.c.l.s4 1934713408
          %v956 = vunpack.c.0.s8 %v955
          %v957 = vlaneseq
          %v958 = vshrl.u32 %v957, 7
          %v959 = vsub.s32 %v956, %v958
          %v960 = vrot.slane %v946, %v959
          %v961 = vcombine.low %v937, %v953
          %v962 = vcombine.high %v937, %v953
          %v963 = vcombine.low %v944, %v960
          %v964 = vcombine.high %v944, %v960
          %vm965 = vcmask 64512
          %966 = vst.msk [vmem:[#allocation2] sm:$0xff] %vm965, %v961
          %967 = vst.msk [vmem:[#allocation2 + $0x8] sm:$0xff] %vm965, %v962
          %968 = vst.msk [vmem:[#allocation2 + $0x10] sm:$0xff] %vm965, %v963
          %969 = vst.msk [vmem:[#allocation2 + $0x18] sm:$0xff] %vm965, %v964
          %971 = vrot.lane.b32.xlu0 %v816, 120
          %v972 = vpop.permute.xlu0 %971
          %974 = vrot.lane.b32.xlu0 %v816, 112
          %v975 = vpop.permute.xlu0 %974
          %977 = vrot.lane.b32.xlu0 %v816, 104
          %v978 = vpop.permute.xlu0 %977
          %v980 = vcombine.low %v816, %v975
          %v981 = vcombine.high %v816, %v975
          %v983 = vunpack.c.l.s4 1983009808
          %v984 = vunpack.c.0.s8 %v983
          %v985 = vlaneseq
          %v986 = vshrl.u32 %v985, 7
          %v987 = vsub.s32 %v984, %v986
          %v988 = vrot.slane %v980, %v987
          %v990 = vunpack.c.l.s4 1983009808
          %v991 = vunpack.c.0.s8 %v990
          %v992 = vlaneseq
          %v993 = vshrl.u32 %v992, 7
          %v994 = vsub.s32 %v991, %v993
          %v995 = vrot.slane %v981, %v994
          %v996 = vcombine.low %v972, %v978
          %v997 = vcombine.high %v972, %v978
          %v999 = vunpack.c.l.s4 1983009808
          %v1000 = vunpack.c.0.s8 %v999
          %v1001 = vlaneseq
          %v1002 = vshrl.u32 %v1001, 7
          %v1003 = vsub.s32 %v1000, %v1002
          %v1004 = vrot.slane %v996, %v1003
          %v1006 = vunpack.c.l.s4 1983009808
          %v1007 = vunpack.c.0.s8 %v1006
          %v1008 = vlaneseq
          %v1009 = vshrl.u32 %v1008, 7
          %v1010 = vsub.s32 %v1007, %v1009
          %v1011 = vrot.slane %v997, %v1010
          %v1012 = vcombine.low %v988, %v1004
          %v1013 = vcombine.high %v988, %v1004
          %v1015 = vunpack.c.l.s4 1934713408
          %v1016 = vunpack.c.0.s8 %v1015
          %v1017 = vlaneseq
          %v1018 = vshrl.u32 %v1017, 7
          %v1019 = vsub.s32 %v1016, %v1018
          %v1020 = vrot.slane %v1012, %v1019
          %v1022 = vunpack.c.l.s4 1934713408
          %v1023 = vunpack.c.0.s8 %v1022
          %v1024 = vlaneseq
          %v1025 = vshrl.u32 %v1024, 7
          %v1026 = vsub.s32 %v1023, %v1025
          %v1027 = vrot.slane %v1013, %v1026
          %v1028 = vcombine.low %v995, %v1011
          %v1029 = vcombine.high %v995, %v1011
          %v1031 = vunpack.c.l.s4 1934713408
          %v1032 = vunpack.c.0.s8 %v1031
          %v1033 = vlaneseq
          %v1034 = vshrl.u32 %v1033, 7
          %v1035 = vsub.s32 %v1032, %v1034
          %v1036 = vrot.slane %v1028, %v1035
          %v1038 = vunpack.c.l.s4 1934713408
          %v1039 = vunpack.c.0.s8 %v1038
          %v1040 = vlaneseq
          %v1041 = vshrl.u32 %v1040, 7
          %v1042 = vsub.s32 %v1039, %v1041
          %v1043 = vrot.slane %v1029, %v1042
          %v1044 = vcombine.high %v1020, 0.0
          %v1045 = vcombine.high %v1027, 0.0
          %v1046 = vcombine.high %v1036, 0.0
          %v1047 = vcombine.high %v1043, 0.0
          %v1048 = vcombine.low %v1020, %v1027
          %v1050 = vunpack.c.l.s4 1983009808
          %v1051 = vunpack.c.0.s8 %v1050
          %v1052 = vlaneseq
          %v1053 = vshrl.u32 %v1052, 7
          %v1054 = vsub.s32 %v1051, %v1053
          %v1055 = vrot.slane %v1048, %v1054
          %v1056 = vcombine.low %v1044, %v1045
          %v1058 = vunpack.c.l.s4 1983009808
          %v1059 = vunpack.c.0.s8 %v1058
          %v1060 = vlaneseq
          %v1061 = vshrl.u32 %v1060, 7
          %v1062 = vsub.s32 %v1059, %v1061
          %v1063 = vrot.slane %v1056, %v1062
          %v1064 = vcombine.low %v1036, %v1043
          %v1066 = vunpack.c.l.s4 1983009808
          %v1067 = vunpack.c.0.s8 %v1066
          %v1068 = vlaneseq
          %v1069 = vshrl.u32 %v1068, 7
          %v1070 = vsub.s32 %v1067, %v1069
          %v1071 = vrot.slane %v1064, %v1070
          %v1072 = vcombine.low %v1046, %v1047
          %v1074 = vunpack.c.l.s4 1983009808
          %v1075 = vunpack.c.0.s8 %v1074
          %v1076 = vlaneseq
          %v1077 = vshrl.u32 %v1076, 7
          %v1078 = vsub.s32 %v1075, %v1077
          %v1079 = vrot.slane %v1072, %v1078
          %v1080 = vcombine.low %v1055, %v1063
          %v1081 = vcombine.high %v1055, %v1063
          %v1083 = vunpack.c.l.s4 1934713408
          %v1084 = vunpack.c.0.s8 %v1083
          %v1085 = vlaneseq
          %v1086 = vshrl.u32 %v1085, 7
          %v1087 = vsub.s32 %v1084, %v1086
          %v1088 = vrot.slane %v1080, %v1087
          %v1090 = vunpack.c.l.s4 1934713408
          %v1091 = vunpack.c.0.s8 %v1090
          %v1092 = vlaneseq
          %v1093 = vshrl.u32 %v1092, 7
          %v1094 = vsub.s32 %v1091, %v1093
          %v1095 = vrot.slane %v1081, %v1094
          %v1096 = vcombine.low %v1071, %v1079
          %v1097 = vcombine.high %v1071, %v1079
          %v1099 = vunpack.c.l.s4 1934713408
          %v1100 = vunpack.c.0.s8 %v1099
          %v1101 = vlaneseq
          %v1102 = vshrl.u32 %v1101, 7
          %v1103 = vsub.s32 %v1100, %v1102
          %v1104 = vrot.slane %v1096, %v1103
          %v1106 = vunpack.c.l.s4 1934713408
          %v1107 = vunpack.c.0.s8 %v1106
          %v1108 = vlaneseq
          %v1109 = vshrl.u32 %v1108, 7
          %v1110 = vsub.s32 %v1107, %v1109
          %v1111 = vrot.slane %v1097, %v1110
          %v1112 = vcombine.low %v1088, %v1104
          %v1113 = vcombine.high %v1088, %v1104
          %v1114 = vcombine.low %v1095, %v1111
          %v1115 = vcombine.high %v1095, %v1111
          %1116 = vst.msk [vmem:[#allocation3] sm:$0xff] %vm965, %v1112
          %1117 = vst.msk [vmem:[#allocation3 + $0x8] sm:$0xff] %vm965, %v1113
          %1118 = vst.msk [vmem:[#allocation3 + $0x10] sm:$0xff] %vm965, %v1114
          %1119 = vst.msk [vmem:[#allocation3 + $0x18] sm:$0xff] %vm965, %v1115
        $region108: #{tpu_custom_call.1} parent=91 // pred_fallthru
          _
        %s1120 = smul.u32 %s41, 8
        %s1121 = scalar_lea.vmem %s581, %s1120 [#allocation4]
        %v1122 = vld [vmem:[%s1121] sm:$0xff]
        %v1123 = vld [vmem:[%s647] sm:$0x1]
        %v1124 = vld [vmem:[%s2] sm:$0xff]
        %v1125 = vld [vmem:[%s2 + $0x8] sm:$0xff]
        %v1126 = vld [vmem:[%s2 + $0x10] sm:$0xff]
        %v1127 = vld [vmem:[%s2 + $0x18] sm:$0xff]
        %v1128 = vld [vmem:[%s3] sm:$0x1]
        %v1130 = vlaneseq
        %v1131 = vshrl.u32 %v1130, 7
        %v1132 = vsub.s32 0, %v1131
        %v1133 = vrot.slane %v1128, %v1132
        %vm1135 = vcmask 261120
        %v1137 = vsel %vm1135, %v1122, 0
        %1139 = vmatprep.subr.mxu0 0.0
        %1140 = vmatpush1.msra.mxu0 %v1124
        %1141 = vmatprep.subr.mxu0 0.0
        %1142 = vmatpush1.msra.mxu0 %v1125
        %1143 = vmatprep.subr.mxu0 0.0
        %1144 = vmatpush1.msra.mxu0 %v1126
        %1145 = vmatprep.subr.mxu0 0.0
        %1146 = vmatpush1.msra.mxu0 %v1127
        %1147 = vmatprep.subr.mxu0 0.0
        %1148 = vmatpush1.msra.mxu0 0.0
        %1149 = vmatprep.subr.mxu0 0.0
        %1150 = vmatpush1.msra.mxu0 0.0
        %1151 = vmatprep.subr.mxu0 0.0
        %1152 = vmatpush1.msra.mxu0 0.0
        %1153 = vmatprep.subr.mxu0 0.0
        %1154 = vmatpush1.msra.mxu0 0.0
        %1155 = vmatprep.subr.mxu0 0.0
        %1156 = vmatpush1.msra.mxu0 0.0
        %1157 = vmatprep.subr.mxu0 0.0
        %1158 = vmatpush1.msra.mxu0 0.0
        %1159 = vmatprep.subr.mxu0 0.0
        %1160 = vmatpush1.msra.mxu0 0.0
        %1161 = vmatprep.subr.mxu0 0.0
        %1162 = vmatpush1.msra.mxu0 0.0
        %1163 = vmatprep.subr.mxu0 0.0
        %1164 = vmatpush1.msra.mxu0 0.0
        %1165 = vmatprep.subr.mxu0 0.0
        %1166 = vmatpush1.msra.mxu0 0.0
        %1167 = vmatprep.subr.mxu0 0.0
        %1168 = vmatpush1.msra.mxu0 0.0
        %1169 = vmatprep.subr.mxu0 0.0
        %1170 = vmatpush1.msra.mxu0 0.0
        %1171 = vmatprep.subr.mxu0 0.0
        %1172 = vmatpush1.msra.mxu0 0.0
        %1173 = vmatprep.subr.mxu0 0.0
        %1174 = vmatpush1.msra.mxu0 0.0
        %1175 = vmatprep.subr.mxu0 0.0
        %1176 = vmatpush1.msra.mxu0 0.0
        %1177 = vmatprep.subr.mxu0 0.0
        %1178 = vmatpush1.msra.mxu0 0.0
        %1179 = vmatprep.subr.mxu0 0.0
        %1180 = vmatpush1.msra.mxu0 0.0
        %1181 = vmatprep.subr.mxu0 0.0
        %1182 = vmatpush1.msra.mxu0 0.0
        %1183 = vmatprep.subr.mxu0 0.0
        %1184 = vmatpush1.msra.mxu0 0.0
        %1185 = vmatprep.subr.mxu0 0.0
        %1186 = vmatpush1.msra.mxu0 0.0
        %1187 = vmatprep.subr.mxu0 0.0
        %1188 = vmatpush1.msra.mxu0 0.0
        %1189 = vmatprep.subr.mxu0 0.0
        %1190 = vmatpush1.msra.mxu0 0.0
        %1191 = vmatprep.subr.mxu0 0.0
        %1192 = vmatpush1.msra.mxu0 0.0
        %1193 = vmatprep.subr.mxu0 0.0
        %1194 = vmatpush1.msra.mxu0 0.0
        %1195 = vmatprep.subr.mxu0 0.0
        %1196 = vmatpush1.msra.mxu0 0.0
        %1197 = vmatprep.subr.mxu0 0.0
        %1198 = vmatpush1.msra.mxu0 0.0
        %1199 = vmatprep.subr.mxu0 0.0
        %1200 = vmatpush1.msra.mxu0 0.0
        %1201 = vmatprep.subr.mxu0 0.0
        %1202 = vmatpush1.msra.mxu0 0.0
        %1203 = vmatprep.mubr.f32.mxu0 0.0
        %1204 = vmatmul.mubr.f32.gmra.mrb[0].mxu0 %v1137
        %v1205 = vpop.f32.mrb[0].mxu0
        %v1206 = vadd.f32 %v1133, %v1205
        %v1207 = vpop.f32.mrb[0].mxu0
        %1208 = vdwg.mxu0
        %v1209 = vmul.f32 %v1206, 0.35355338
        %1211 = vrot.lane.b32.xlu0 %v1209, 120
        %v1212 = vpop.permute.xlu0 %1211
        %1214 = vrot.lane.b32.xlu0 %v1209, 112
        %v1215 = vpop.permute.xlu0 %1214
        %1217 = vrot.lane.b32.xlu0 %v1209, 104
        %v1218 = vpop.permute.xlu0 %1217
        %v1220 = vcombine.low %v1209, %v1215
        %v1221 = vcombine.high %v1209, %v1215
        %v1223 = vunpack.c.l.s4 1983009808
        %v1224 = vunpack.c.0.s8 %v1223
        %v1225 = vlaneseq
        %v1226 = vshrl.u32 %v1225, 7
        %v1227 = vsub.s32 %v1224, %v1226
        %v1228 = vrot.slane %v1220, %v1227
        %v1230 = vunpack.c.l.s4 1983009808
        %v1231 = vunpack.c.0.s8 %v1230
        %v1232 = vlaneseq
        %v1233 = vshrl.u32 %v1232, 7
        %v1234 = vsub.s32 %v1231, %v1233
        %v1235 = vrot.slane %v1221, %v1234
        %v1236 = vcombine.low %v1212, %v1218
        %v1237 = vcombine.high %v1212, %v1218
        %v1239 = vunpack.c.l.s4 1983009808
        %v1240 = vunpack.c.0.s8 %v1239
        %v1241 = vlaneseq
        %v1242 = vshrl.u32 %v1241, 7
        %v1243 = vsub.s32 %v1240, %v1242
        %v1244 = vrot.slane %v1236, %v1243
        %v1246 = vunpack.c.l.s4 1983009808
        %v1247 = vunpack.c.0.s8 %v1246
        %v1248 = vlaneseq
        %v1249 = vshrl.u32 %v1248, 7
        %v1250 = vsub.s32 %v1247, %v1249
        %v1251 = vrot.slane %v1237, %v1250
        %v1252 = vcombine.low %v1228, %v1244
        %v1253 = vcombine.high %v1228, %v1244
        %v1255 = vunpack.c.l.s4 1934713408
        %v1256 = vunpack.c.0.s8 %v1255
        %v1257 = vlaneseq
        %v1258 = vshrl.u32 %v1257, 7
        %v1259 = vsub.s32 %v1256, %v1258
        %v1260 = vrot.slane %v1252, %v1259
        %v1262 = vunpack.c.l.s4 1934713408
        %v1263 = vunpack.c.0.s8 %v1262
        %v1264 = vlaneseq
        %v1265 = vshrl.u32 %v1264, 7
        %v1266 = vsub.s32 %v1263, %v1265
        %v1267 = vrot.slane %v1253, %v1266
        %v1268 = vcombine.low %v1235, %v1251
        %v1269 = vcombine.high %v1235, %v1251
        %v1271 = vunpack.c.l.s4 1934713408
        %v1272 = vunpack.c.0.s8 %v1271
        %v1273 = vlaneseq
        %v1274 = vshrl.u32 %v1273, 7
        %v1275 = vsub.s32 %v1272, %v1274
        %v1276 = vrot.slane %v1268, %v1275
        %v1278 = vunpack.c.l.s4 1934713408
        %v1279 = vunpack.c.0.s8 %v1278
        %v1280 = vlaneseq
        %v1281 = vshrl.u32 %v1280, 7
        %v1282 = vsub.s32 %v1279, %v1281
        %v1283 = vrot.slane %v1269, %v1282
        %v1284 = vcombine.high %v1260, 0.0
        %v1285 = vcombine.high %v1267, 0.0
        %v1286 = vcombine.high %v1276, 0.0
        %v1287 = vcombine.high %v1283, 0.0
        %v1288 = vcombine.low %v1260, %v1267
        %v1290 = vunpack.c.l.s4 1983009808
        %v1291 = vunpack.c.0.s8 %v1290
        %v1292 = vlaneseq
        %v1293 = vshrl.u32 %v1292, 7
        %v1294 = vsub.s32 %v1291, %v1293
        %v1295 = vrot.slane %v1288, %v1294
        %v1296 = vcombine.low %v1284, %v1285
        %v1298 = vunpack.c.l.s4 1983009808
        %v1299 = vunpack.c.0.s8 %v1298
        %v1300 = vlaneseq
        %v1301 = vshrl.u32 %v1300, 7
        %v1302 = vsub.s32 %v1299, %v1301
        %v1303 = vrot.slane %v1296, %v1302
        %v1304 = vcombine.low %v1276, %v1283
        %v1306 = vunpack.c.l.s4 1983009808
        %v1307 = vunpack.c.0.s8 %v1306
        %v1308 = vlaneseq
        %v1309 = vshrl.u32 %v1308, 7
        %v1310 = vsub.s32 %v1307, %v1309
        %v1311 = vrot.slane %v1304, %v1310
        %v1312 = vcombine.low %v1286, %v1287
        %v1314 = vunpack.c.l.s4 1983009808
        %v1315 = vunpack.c.0.s8 %v1314
        %v1316 = vlaneseq
        %v1317 = vshrl.u32 %v1316, 7
        %v1318 = vsub.s32 %v1315, %v1317
        %v1319 = vrot.slane %v1312, %v1318
        %v1320 = vcombine.low %v1295, %v1303
        %v1321 = vcombine.high %v1295, %v1303
        %v1323 = vunpack.c.l.s4 1934713408
        %v1324 = vunpack.c.0.s8 %v1323
        %v1325 = vlaneseq
        %v1326 = vshrl.u32 %v1325, 7
        %v1327 = vsub.s32 %v1324, %v1326
        %v1328 = vrot.slane %v1320, %v1327
        %v1330 = vunpack.c.l.s4 1934713408
        %v1331 = vunpack.c.0.s8 %v1330
        %v1332 = vlaneseq
        %v1333 = vshrl.u32 %v1332, 7
        %v1334 = vsub.s32 %v1331, %v1333
        %v1335 = vrot.slane %v1321, %v1334
        %v1336 = vcombine.low %v1311, %v1319
        %v1337 = vcombine.high %v1311, %v1319
        %v1339 = vunpack.c.l.s4 1934713408
        %v1340 = vunpack.c.0.s8 %v1339
        %v1341 = vlaneseq
        %v1342 = vshrl.u32 %v1341, 7
        %v1343 = vsub.s32 %v1340, %v1342
        %v1344 = vrot.slane %v1336, %v1343
        %v1346 = vunpack.c.l.s4 1934713408
        %v1347 = vunpack.c.0.s8 %v1346
        %v1348 = vlaneseq
        %v1349 = vshrl.u32 %v1348, 7
        %v1350 = vsub.s32 %v1347, %v1349
        %v1351 = vrot.slane %v1337, %v1350
        %v1352 = vcombine.low %v1328, %v1344
        %v1353 = vcombine.high %v1328, %v1344
        %v1354 = vcombine.low %v1335, %v1351
        %v1355 = vcombine.high %v1335, %v1351
        %v1356 = vld [vmem:[#allocation2] sm:$0xff]
        %v1357 = vld [vmem:[#allocation2 + $0x8] sm:$0xff]
        %v1358 = vld [vmem:[#allocation2 + $0x10] sm:$0xff]
        %v1359 = vld [vmem:[#allocation2 + $0x18] sm:$0xff]
        %v1361 = vlaneseq
        %v1362 = vshrl.u32 %v1361, 7
        %v1363 = vsub.s32 0, %v1362
        %v1364 = vrot.slane %v1123, %v1363
        %vm1366 = vcmask 64512
        %v1368 = vsel %vm1366, %v1352, 0
        %v1371 = vsel %vm1366, %v1356, 0
        %1373 = vmatprep.subr.mxu0 0.0
        %1374 = vmatpush1.xpose.msra.mxu0 %v1371
        %1375 = vmatprep.subr.mxu0 0.0
        %1376 = vmatpush1.xpose.msra.mxu0 0.0
        %1377 = vmatprep.subr.mxu0 0.0
        %1378 = vmatpush1.xpose.msra.mxu0 0.0
        %1379 = vmatprep.subr.mxu0 0.0
        %1380 = vmatpush1.xpose.msra.mxu0 0.0
        %1381 = vmatprep.subr.mxu0 0.0
        %1382 = vmatpush1.xpose.msra.mxu0 0.0
        %1383 = vmatprep.subr.mxu0 0.0
        %1384 = vmatpush1.xpose.msra.mxu0 0.0
        %1385 = vmatprep.subr.mxu0 0.0
        %1386 = vmatpush1.xpose.msra.mxu0 0.0
        %1387 = vmatprep.subr.mxu0 0.0
        %1388 = vmatpush1.xpose.msra.mxu0 0.0
        %1389 = vmatprep.subr.mxu0 0.0
        %1390 = vmatpush1.xpose.msra.mxu0 0.0
        %1391 = vmatprep.subr.mxu0 0.0
        %1392 = vmatpush1.xpose.msra.mxu0 0.0
        %1393 = vmatprep.subr.mxu0 0.0
        %1394 = vmatpush1.xpose.msra.mxu0 0.0
        %1395 = vmatprep.subr.mxu0 0.0
        %1396 = vmatpush1.xpose.msra.mxu0 0.0
        %1397 = vmatprep.subr.mxu0 0.0
        %1398 = vmatpush1.xpose.msra.mxu0 0.0
        %1399 = vmatprep.subr.mxu0 0.0
        %1400 = vmatpush1.xpose.msra.mxu0 0.0
        %1401 = vmatprep.subr.mxu0 0.0
        %1402 = vmatpush1.xpose.msra.mxu0 0.0
        %1403 = vmatprep.subr.mxu0 0.0
        %1404 = vmatpush1.xpose.msra.mxu0 0.0
        %1405 = vmatprep.subr.mxu0 0.0
        %1406 = vmatpush1.xpose.msra.mxu0 0.0
        %1407 = vmatprep.subr.mxu0 0.0
        %1408 = vmatpush1.xpose.msra.mxu0 0.0
        %1409 = vmatprep.subr.mxu0 0.0
        %1410 = vmatpush1.xpose.msra.mxu0 0.0
        %1411 = vmatprep.subr.mxu0 0.0
        %1412 = vmatpush1.xpose.msra.mxu0 0.0
        %1413 = vmatprep.subr.mxu0 0.0
        %1414 = vmatpush1.xpose.msra.mxu0 0.0
        %1415 = vmatprep.subr.mxu0 0.0
        %1416 = vmatpush1.xpose.msra.mxu0 0.0
        %1417 = vmatprep.subr.mxu0 0.0
        %1418 = vmatpush1.xpose.msra.mxu0 0.0
        %1419 = vmatprep.subr.mxu0 0.0
        %1420 = vmatpush1.xpose.msra.mxu0 0.0
        %1421 = vmatprep.subr.mxu0 0.0
        %1422 = vmatpush1.xpose.msra.mxu0 0.0
        %1423 = vmatprep.subr.mxu0 0.0
        %1424 = vmatpush1.xpose.msra.mxu0 0.0
        %1425 = vmatprep.subr.mxu0 0.0
        %1426 = vmatpush1.xpose.msra.mxu0 0.0
        %1427 = vmatprep.subr.mxu0 0.0
        %1428 = vmatpush1.xpose.msra.mxu0 0.0
        %1429 = vmatprep.subr.mxu0 0.0
        %1430 = vmatpush1.xpose.msra.mxu0 0.0
        %1431 = vmatprep.subr.mxu0 0.0
        %1432 = vmatpush1.xpose.msra.mxu0 0.0
        %1433 = vmatprep.subr.mxu0 0.0
        %1434 = vmatpush1.xpose.msra.mxu0 0.0
        %1435 = vmatprep.subr.mxu0 0.0
        %1436 = vmatpush1.xpose.msra.mxu0 0.0
        %1437 = vmatprep.mubr.f32.mxu0 0.0
        %1438 = vmatmul.mubr.f32.gmra.mrb[0].mxu0 %v1368
        %v1439 = vpop.f32.mrb[0].mxu0
        %v1440 = vadd.f32 %v1364, %v1439
        %v1441 = vpop.f32.mrb[0].mxu0
        %1442 = vdwg.mxu0
        %v1444 = vsel %vm1366, %v1353, 0
        %v1447 = vsel %vm1366, %v1357, 0
        %1449 = vmatprep.subr.mxu0 0.0
        %1450 = vmatpush1.xpose.msra.mxu0 %v1447
        %1451 = vmatprep.subr.mxu0 0.0
        %1452 = vmatpush1.xpose.msra.mxu0 0.0
        %1453 = vmatprep.subr.mxu0 0.0
        %1454 = vmatpush1.xpose.msra.mxu0 0.0
        %1455 = vmatprep.subr.mxu0 0.0
        %1456 = vmatpush1.xpose.msra.mxu0 0.0
        %1457 = vmatprep.subr.mxu0 0.0
        %1458 = vmatpush1.xpose.msra.mxu0 0.0
        %1459 = vmatprep.subr.mxu0 0.0
        %1460 = vmatpush1.xpose.msra.mxu0 0.0
        %1461 = vmatprep.subr.mxu0 0.0
        %1462 = vmatpush1.xpose.msra.mxu0 0.0
        %1463 = vmatprep.subr.mxu0 0.0
        %1464 = vmatpush1.xpose.msra.mxu0 0.0
        %1465 = vmatprep.subr.mxu0 0.0
        %1466 = vmatpush1.xpose.msra.mxu0 0.0
        %1467 = vmatprep.subr.mxu0 0.0
        %1468 = vmatpush1.xpose.msra.mxu0 0.0
        %1469 = vmatprep.subr.mxu0 0.0
        %1470 = vmatpush1.xpose.msra.mxu0 0.0
        %1471 = vmatprep.subr.mxu0 0.0
        %1472 = vmatpush1.xpose.msra.mxu0 0.0
        %1473 = vmatprep.subr.mxu0 0.0
        %1474 = vmatpush1.xpose.msra.mxu0 0.0
        %1475 = vmatprep.subr.mxu0 0.0
        %1476 = vmatpush1.xpose.msra.mxu0 0.0
        %1477 = vmatprep.subr.mxu0 0.0
        %1478 = vmatpush1.xpose.msra.mxu0 0.0
        %1479 = vmatprep.subr.mxu0 0.0
        %1480 = vmatpush1.xpose.msra.mxu0 0.0
        %1481 = vmatprep.subr.mxu0 0.0
        %1482 = vmatpush1.xpose.msra.mxu0 0.0
        %1483 = vmatprep.subr.mxu0 0.0
        %1484 = vmatpush1.xpose.msra.mxu0 0.0
        %1485 = vmatprep.subr.mxu0 0.0
        %1486 = vmatpush1.xpose.msra.mxu0 0.0
        %1487 = vmatprep.subr.mxu0 0.0
        %1488 = vmatpush1.xpose.msra.mxu0 0.0
        %1489 = vmatprep.subr.mxu0 0.0
        %1490 = vmatpush1.xpose.msra.mxu0 0.0
        %1491 = vmatprep.subr.mxu0 0.0
        %1492 = vmatpush1.xpose.msra.mxu0 0.0
        %1493 = vmatprep.subr.mxu0 0.0
        %1494 = vmatpush1.xpose.msra.mxu0 0.0
        %1495 = vmatprep.subr.mxu0 0.0
        %1496 = vmatpush1.xpose.msra.mxu0 0.0
        %1497 = vmatprep.subr.mxu0 0.0
        %1498 = vmatpush1.xpose.msra.mxu0 0.0
        %1499 = vmatprep.subr.mxu0 0.0
        %1500 = vmatpush1.xpose.msra.mxu0 0.0
        %1501 = vmatprep.subr.mxu0 0.0
        %1502 = vmatpush1.xpose.msra.mxu0 0.0
        %1503 = vmatprep.subr.mxu0 0.0
        %1504 = vmatpush1.xpose.msra.mxu0 0.0
        %1505 = vmatprep.subr.mxu0 0.0
        %1506 = vmatpush1.xpose.msra.mxu0 0.0
        %1507 = vmatprep.subr.mxu0 0.0
        %1508 = vmatpush1.xpose.msra.mxu0 0.0
        %1509 = vmatprep.subr.mxu0 0.0
        %1510 = vmatpush1.xpose.msra.mxu0 0.0
        %1511 = vmatprep.subr.mxu0 0.0
        %1512 = vmatpush1.xpose.msra.mxu0 0.0
        %1513 = vmatprep.mubr.f32.mxu0 0.0
        %1514 = vmatmul.mubr.f32.gmra.mrb[0].mxu0 %v1444
        %v1515 = vpop.f32.mrb[0].mxu0
        %v1516 = vadd.f32 %v1364, %v1515
        %v1517 = vpop.f32.mrb[0].mxu0
        %1518 = vdwg.mxu0
        %v1520 = vsel %vm1366, %v1354, 0
        %v1523 = vsel %vm1366, %v1358, 0
        %1525 = vmatprep.subr.mxu0 0.0
        %1526 = vmatpush1.xpose.msra.mxu0 %v1523
        %1527 = vmatprep.subr.mxu0 0.0
        %1528 = vmatpush1.xpose.msra.mxu0 0.0
        %1529 = vmatprep.subr.mxu0 0.0
        %1530 = vmatpush1.xpose.msra.mxu0 0.0
        %1531 = vmatprep.subr.mxu0 0.0
        %1532 = vmatpush1.xpose.msra.mxu0 0.0
        %1533 = vmatprep.subr.mxu0 0.0
        %1534 = vmatpush1.xpose.msra.mxu0 0.0
        %1535 = vmatprep.subr.mxu0 0.0
        %1536 = vmatpush1.xpose.msra.mxu0 0.0
        %1537 = vmatprep.subr.mxu0 0.0
        %1538 = vmatpush1.xpose.msra.mxu0 0.0
        %1539 = vmatprep.subr.mxu0 0.0
        %1540 = vmatpush1.xpose.msra.mxu0 0.0
        %1541 = vmatprep.subr.mxu0 0.0
        %1542 = vmatpush1.xpose.msra.mxu0 0.0
        %1543 = vmatprep.subr.mxu0 0.0
        %1544 = vmatpush1.xpose.msra.mxu0 0.0
        %1545 = vmatprep.subr.mxu0 0.0
        %1546 = vmatpush1.xpose.msra.mxu0 0.0
        %1547 = vmatprep.subr.mxu0 0.0
        %1548 = vmatpush1.xpose.msra.mxu0 0.0
        %1549 = vmatprep.subr.mxu0 0.0
        %1550 = vmatpush1.xpose.msra.mxu0 0.0
        %1551 = vmatprep.subr.mxu0 0.0
        %1552 = vmatpush1.xpose.msra.mxu0 0.0
        %1553 = vmatprep.subr.mxu0 0.0
        %1554 = vmatpush1.xpose.msra.mxu0 0.0
        %1555 = vmatprep.subr.mxu0 0.0
        %1556 = vmatpush1.xpose.msra.mxu0 0.0
        %1557 = vmatprep.subr.mxu0 0.0
        %1558 = vmatpush1.xpose.msra.mxu0 0.0
        %1559 = vmatprep.subr.mxu0 0.0
        %1560 = vmatpush1.xpose.msra.mxu0 0.0
        %1561 = vmatprep.subr.mxu0 0.0
        %1562 = vmatpush1.xpose.msra.mxu0 0.0
        %1563 = vmatprep.subr.mxu0 0.0
        %1564 = vmatpush1.xpose.msra.mxu0 0.0
        %1565 = vmatprep.subr.mxu0 0.0
        %1566 = vmatpush1.xpose.msra.mxu0 0.0
        %1567 = vmatprep.subr.mxu0 0.0
        %1568 = vmatpush1.xpose.msra.mxu0 0.0
        %1569 = vmatprep.subr.mxu0 0.0
        %1570 = vmatpush1.xpose.msra.mxu0 0.0
        %1571 = vmatprep.subr.mxu0 0.0
        %1572 = vmatpush1.xpose.msra.mxu0 0.0
        %1573 = vmatprep.subr.mxu0 0.0
        %1574 = vmatpush1.xpose.msra.mxu0 0.0
        %1575 = vmatprep.subr.mxu0 0.0
        %1576 = vmatpush1.xpose.msra.mxu0 0.0
        %1577 = vmatprep.subr.mxu0 0.0
        %1578 = vmatpush1.xpose.msra.mxu0 0.0
        %1579 = vmatprep.subr.mxu0 0.0
        %1580 = vmatpush1.xpose.msra.mxu0 0.0
        %1581 = vmatprep.subr.mxu0 0.0
        %1582 = vmatpush1.xpose.msra.mxu0 0.0
        %1583 = vmatprep.subr.mxu0 0.0
        %1584 = vmatpush1.xpose.msra.mxu0 0.0
        %1585 = vmatprep.subr.mxu0 0.0
        %1586 = vmatpush1.xpose.msra.mxu0 0.0
        %1587 = vmatprep.subr.mxu0 0.0
        %1588 = vmatpush1.xpose.msra.mxu0 0.0
        %1589 = vmatprep.mubr.f32.mxu0 0.0
        %1590 = vmatmul.mubr.f32.gmra.mrb[0].mxu0 %v1520
        %v1591 = vpop.f32.mrb[0].mxu0
        %v1592 = vadd.f32 %v1364, %v1591
        %v1593 = vpop.f32.mrb[0].mxu0
        %1594 = vdwg.mxu0
        %v1596 = vsel %vm1366, %v1355, 0
        %v1599 = vsel %vm1366, %v1359, 0
        %1601 = vmatprep.subr.mxu0 0.0
        %1602 = vmatpush1.xpose.msra.mxu0 %v1599
        %1603 = vmatprep.subr.mxu0 0.0
        %1604 = vmatpush1.xpose.msra.mxu0 0.0
        %1605 = vmatprep.subr.mxu0 0.0
        %1606 = vmatpush1.xpose.msra.mxu0 0.0
        %1607 = vmatprep.subr.mxu0 0.0
        %1608 = vmatpush1.xpose.msra.mxu0 0.0
        %1609 = vmatprep.subr.mxu0 0.0
        %1610 = vmatpush1.xpose.msra.mxu0 0.0
        %1611 = vmatprep.subr.mxu0 0.0
        %1612 = vmatpush1.xpose.msra.mxu0 0.0
        %1613 = vmatprep.subr.mxu0 0.0
        %1614 = vmatpush1.xpose.msra.mxu0 0.0
        %1615 = vmatprep.subr.mxu0 0.0
        %1616 = vmatpush1.xpose.msra.mxu0 0.0
        %1617 = vmatprep.subr.mxu0 0.0
        %1618 = vmatpush1.xpose.msra.mxu0 0.0
        %1619 = vmatprep.subr.mxu0 0.0
        %1620 = vmatpush1.xpose.msra.mxu0 0.0
        %1621 = vmatprep.subr.mxu0 0.0
        %1622 = vmatpush1.xpose.msra.mxu0 0.0
        %1623 = vmatprep.subr.mxu0 0.0
        %1624 = vmatpush1.xpose.msra.mxu0 0.0
        %1625 = vmatprep.subr.mxu0 0.0
        %1626 = vmatpush1.xpose.msra.mxu0 0.0
        %1627 = vmatprep.subr.mxu0 0.0
        %1628 = vmatpush1.xpose.msra.mxu0 0.0
        %1629 = vmatprep.subr.mxu0 0.0
        %1630 = vmatpush1.xpose.msra.mxu0 0.0
        %1631 = vmatprep.subr.mxu0 0.0
        %1632 = vmatpush1.xpose.msra.mxu0 0.0
        %1633 = vmatprep.subr.mxu0 0.0
        %1634 = vmatpush1.xpose.msra.mxu0 0.0
        %1635 = vmatprep.subr.mxu0 0.0
        %1636 = vmatpush1.xpose.msra.mxu0 0.0
        %1637 = vmatprep.subr.mxu0 0.0
        %1638 = vmatpush1.xpose.msra.mxu0 0.0
        %1639 = vmatprep.subr.mxu0 0.0
        %1640 = vmatpush1.xpose.msra.mxu0 0.0
        %1641 = vmatprep.subr.mxu0 0.0
        %1642 = vmatpush1.xpose.msra.mxu0 0.0
        %1643 = vmatprep.subr.mxu0 0.0
        %1644 = vmatpush1.xpose.msra.mxu0 0.0
        %1645 = vmatprep.subr.mxu0 0.0
        %1646 = vmatpush1.xpose.msra.mxu0 0.0
        %1647 = vmatprep.subr.mxu0 0.0
        %1648 = vmatpush1.xpose.msra.mxu0 0.0
        %1649 = vmatprep.subr.mxu0 0.0
        %1650 = vmatpush1.xpose.msra.mxu0 0.0
        %1651 = vmatprep.subr.mxu0 0.0
        %1652 = vmatpush1.xpose.msra.mxu0 0.0
        %1653 = vmatprep.subr.mxu0 0.0
        %1654 = vmatpush1.xpose.msra.mxu0 0.0
        %1655 = vmatprep.subr.mxu0 0.0
        %1656 = vmatpush1.xpose.msra.mxu0 0.0
        %1657 = vmatprep.subr.mxu0 0.0
        %1658 = vmatpush1.xpose.msra.mxu0 0.0
        %1659 = vmatprep.subr.mxu0 0.0
        %1660 = vmatpush1.xpose.msra.mxu0 0.0
        %1661 = vmatprep.subr.mxu0 0.0
        %1662 = vmatpush1.xpose.msra.mxu0 0.0
        %1663 = vmatprep.subr.mxu0 0.0
        %1664 = vmatpush1.xpose.msra.mxu0 0.0
        %1665 = vmatprep.mubr.f32.mxu0 0.0
        %1666 = vmatmul.mubr.f32.gmra.mrb[0].mxu0 %v1596
        %v1667 = vpop.f32.mrb[0].mxu0
        %v1668 = vadd.f32 %v1364, %v1667
        %v1669 = vpop.f32.mrb[0].mxu0
        %1670 = vdwg.mxu0
        %v1671 = vsel %vm1366, %v1440, -inf
        %1672 = vmax.xlane.f32.xlu0 %v1671
        %v1673 = vpop.xlane.xlu0 %1672
        %v1674 = vsel %vm1366, %v1516, -inf
        %1675 = vmax.xlane.f32.xlu0 %v1674
        %v1676 = vpop.xlane.xlu0 %1675
        %v1677 = vsel %vm1366, %v1592, -inf
        %1678 = vmax.xlane.f32.xlu0 %v1677
        %v1679 = vpop.xlane.xlu0 %1678
        %v1680 = vsel %vm1366, %v1668, -inf
        %1681 = vmax.xlane.f32.xlu0 %v1680
        %v1682 = vpop.xlane.xlu0 %1681
        %v1683 = vsub.f32 %v1440, %v1673
        %v1684 = vsub.f32 %v1516, %v1676
        %v1685 = vsub.f32 %v1592, %v1679
        %v1686 = vsub.f32 %v1668, %v1682
        %v1687 = vmul.f32 %v1683, 1.442695
        %v1688 = vpow.pop %v1687
        %v1689 = vmul.f32 %v1684, 1.442695
        %v1690 = vpow.pop %v1689
        %v1691 = vmul.f32 %v1685, 1.442695
        %v1692 = vpow.pop %v1691
        %v1693 = vmul.f32 %v1686, 1.442695
        %v1694 = vpow.pop %v1693
        %v1695 = vsel %vm1366, %v1688, 0.0
        %1696 = vadd.xlane.f32.xlu0 %v1695
        %v1697 = vpop.xlane.xlu0 %1696
        %v1698 = vsel %vm1366, %v1690, 0.0
        %1699 = vadd.xlane.f32.xlu0 %v1698
        %v1700 = vpop.xlane.xlu0 %1699
        %v1701 = vsel %vm1366, %v1692, 0.0
        %1702 = vadd.xlane.f32.xlu0 %v1701
        %v1703 = vpop.xlane.xlu0 %1702
        %v1704 = vsel %vm1366, %v1694, 0.0
        %1705 = vadd.xlane.f32.xlu0 %v1704
        %v1706 = vpop.xlane.xlu0 %1705
        %v1707 = vrcp.pop %v1697
        %v1708 = vrcp.pop %v1700
        %v1709 = vrcp.pop %v1703
        %v1710 = vrcp.pop %v1706
        %v1711 = vmul.f32 %v1688, %v1707
        %v1712 = vmul.f32 %v1690, %v1708
        %v1713 = vmul.f32 %v1692, %v1709
        %v1714 = vmul.f32 %v1694, %v1710
        %v1715 = vld [vmem:[#allocation3] sm:$0xff]
        %v1716 = vld [vmem:[#allocation3 + $0x8] sm:$0xff]
        %v1717 = vld [vmem:[#allocation3 + $0x10] sm:$0xff]
        %v1718 = vld [vmem:[#allocation3 + $0x18] sm:$0xff]
        %v1720 = vsel %vm1366, %v1711, 0
        %1722 = vmatprep.subr.mxu0 0.0
        %1723 = vmatpush1.msra.mxu0 %v1715
        %1724 = vmatprep.subr.mxu0 0.0
        %1725 = vmatpush1.msra.mxu0 0.0
        %1726 = vmatprep.subr.mxu0 0.0
        %1727 = vmatpush1.msra.mxu0 0.0
        %1728 = vmatprep.subr.mxu0 0.0
        %1729 = vmatpush1.msra.mxu0 0.0
        %1730 = vmatprep.subr.mxu0 0.0
        %1731 = vmatpush1.msra.mxu0 0.0
        %1732 = vmatprep.subr.mxu0 0.0
        %1733 = vmatpush1.msra.mxu0 0.0
        %1734 = vmatprep.subr.mxu0 0.0
        %1735 = vmatpush1.msra.mxu0 0.0
        %1736 = vmatprep.subr.mxu0 0.0
        %1737 = vmatpush1.msra.mxu0 0.0
        %1738 = vmatprep.subr.mxu0 0.0
        %1739 = vmatpush1.msra.mxu0 0.0
        %1740 = vmatprep.subr.mxu0 0.0
        %1741 = vmatpush1.msra.mxu0 0.0
        %1742 = vmatprep.subr.mxu0 0.0
        %1743 = vmatpush1.msra.mxu0 0.0
        %1744 = vmatprep.subr.mxu0 0.0
        %1745 = vmatpush1.msra.mxu0 0.0
        %1746 = vmatprep.subr.mxu0 0.0
        %1747 = vmatpush1.msra.mxu0 0.0
        %1748 = vmatprep.subr.mxu0 0.0
        %1749 = vmatpush1.msra.mxu0 0.0
        %1750 = vmatprep.subr.mxu0 0.0
        %1751 = vmatpush1.msra.mxu0 0.0
        %1752 = vmatprep.subr.mxu0 0.0
        %1753 = vmatpush1.msra.mxu0 0.0
        %1754 = vmatprep.subr.mxu0 0.0
        %1755 = vmatpush1.msra.mxu0 0.0
        %1756 = vmatprep.subr.mxu0 0.0
        %1757 = vmatpush1.msra.mxu0 0.0
        %1758 = vmatprep.subr.mxu0 0.0
        %1759 = vmatpush1.msra.mxu0 0.0
        %1760 = vmatprep.subr.mxu0 0.0
        %1761 = vmatpush1.msra.mxu0 0.0
        %1762 = vmatprep.subr.mxu0 0.0
        %1763 = vmatpush1.msra.mxu0 0.0
        %1764 = vmatprep.subr.mxu0 0.0
        %1765 = vmatpush1.msra.mxu0 0.0
        %1766 = vmatprep.subr.mxu0 0.0
        %1767 = vmatpush1.msra.mxu0 0.0
        %1768 = vmatprep.subr.mxu0 0.0
        %1769 = vmatpush1.msra.mxu0 0.0
        %1770 = vmatprep.subr.mxu0 0.0
        %1771 = vmatpush1.msra.mxu0 0.0
        %1772 = vmatprep.subr.mxu0 0.0
        %1773 = vmatpush1.msra.mxu0 0.0
        %1774 = vmatprep.subr.mxu0 0.0
        %1775 = vmatpush1.msra.mxu0 0.0
        %1776 = vmatprep.subr.mxu0 0.0
        %1777 = vmatpush1.msra.mxu0 0.0
        %1778 = vmatprep.subr.mxu0 0.0
        %1779 = vmatpush1.msra.mxu0 0.0
        %1780 = vmatprep.subr.mxu0 0.0
        %1781 = vmatpush1.msra.mxu0 0.0
        %1782 = vmatprep.subr.mxu0 0.0
        %1783 = vmatpush1.msra.mxu0 0.0
        %1784 = vmatprep.subr.mxu0 0.0
        %1785 = vmatpush1.msra.mxu0 0.0
        %1786 = vmatprep.mubr.f32.mxu0 0.0
        %1787 = vmatmul.mubr.f32.gmra.mrb[0].mxu0 %v1720
        %v1788 = vpop.f32.mrb[0].mxu0
        %v1789 = vadd.f32 0.0, %v1788
        %v1790 = vpop.f32.mrb[0].mxu0
        %1791 = vdwg.mxu0
        %v1793 = vsel %vm1366, %v1712, 0
        %1795 = vmatprep.subr.mxu0 0.0
        %1796 = vmatpush1.msra.mxu0 %v1716
        %1797 = vmatprep.subr.mxu0 0.0
        %1798 = vmatpush1.msra.mxu0 0.0
        %1799 = vmatprep.subr.mxu0 0.0
        %1800 = vmatpush1.msra.mxu0 0.0
        %1801 = vmatprep.subr.mxu0 0.0
        %1802 = vmatpush1.msra.mxu0 0.0
        %1803 = vmatprep.subr.mxu0 0.0
        %1804 = vmatpush1.msra.mxu0 0.0
        %1805 = vmatprep.subr.mxu0 0.0
        %1806 = vmatpush1.msra.mxu0 0.0
        %1807 = vmatprep.subr.mxu0 0.0
        %1808 = vmatpush1.msra.mxu0 0.0
        %1809 = vmatprep.subr.mxu0 0.0
        %1810 = vmatpush1.msra.mxu0 0.0
        %1811 = vmatprep.subr.mxu0 0.0
        %1812 = vmatpush1.msra.mxu0 0.0
        %1813 = vmatprep.subr.mxu0 0.0
        %1814 = vmatpush1.msra.mxu0 0.0
        %1815 = vmatprep.subr.mxu0 0.0
        %1816 = vmatpush1.msra.mxu0 0.0
        %1817 = vmatprep.subr.mxu0 0.0
        %1818 = vmatpush1.msra.mxu0 0.0
        %1819 = vmatprep.subr.mxu0 0.0
        %1820 = vmatpush1.msra.mxu0 0.0
        %1821 = vmatprep.subr.mxu0 0.0
        %1822 = vmatpush1.msra.mxu0 0.0
        %1823 = vmatprep.subr.mxu0 0.0
        %1824 = vmatpush1.msra.mxu0 0.0
        %1825 = vmatprep.subr.mxu0 0.0
        %1826 = vmatpush1.msra.mxu0 0.0
        %1827 = vmatprep.subr.mxu0 0.0
        %1828 = vmatpush1.msra.mxu0 0.0
        %1829 = vmatprep.subr.mxu0 0.0
        %1830 = vmatpush1.msra.mxu0 0.0
        %1831 = vmatprep.subr.mxu0 0.0
        %1832 = vmatpush1.msra.mxu0 0.0
        %1833 = vmatprep.subr.mxu0 0.0
        %1834 = vmatpush1.msra.mxu0 0.0
        %1835 = vmatprep.subr.mxu0 0.0
        %1836 = vmatpush1.msra.mxu0 0.0
        %1837 = vmatprep.subr.mxu0 0.0
        %1838 = vmatpush1.msra.mxu0 0.0
        %1839 = vmatprep.subr.mxu0 0.0
        %1840 = vmatpush1.msra.mxu0 0.0
        %1841 = vmatprep.subr.mxu0 0.0
        %1842 = vmatpush1.msra.mxu0 0.0
        %1843 = vmatprep.subr.mxu0 0.0
        %1844 = vmatpush1.msra.mxu0 0.0
        %1845 = vmatprep.subr.mxu0 0.0
        %1846 = vmatpush1.msra.mxu0 0.0
        %1847 = vmatprep.subr.mxu0 0.0
        %1848 = vmatpush1.msra.mxu0 0.0
        %1849 = vmatprep.subr.mxu0 0.0
        %1850 = vmatpush1.msra.mxu0 0.0
        %1851 = vmatprep.subr.mxu0 0.0
        %1852 = vmatpush1.msra.mxu0 0.0
        %1853 = vmatprep.subr.mxu0 0.0
        %1854 = vmatpush1.msra.mxu0 0.0
        %1855 = vmatprep.subr.mxu0 0.0
        %1856 = vmatpush1.msra.mxu0 0.0
        %1857 = vmatprep.subr.mxu0 0.0
        %1858 = vmatpush1.msra.mxu0 0.0
        %1859 = vmatprep.mubr.f32.mxu0 0.0
        %1860 = vmatmul.mubr.f32.gmra.mrb[0].mxu0 %v1793
        %v1861 = vpop.f32.mrb[0].mxu0
        %v1862 = vadd.f32 0.0, %v1861
        %v1863 = vpop.f32.mrb[0].mxu0
        %1864 = vdwg.mxu0
        %v1866 = vsel %vm1366, %v1713, 0
        %1868 = vmatprep.subr.mxu0 0.0
        %1869 = vmatpush1.msra.mxu0 %v1717
        %1870 = vmatprep.subr.mxu0 0.0
        %1871 = vmatpush1.msra.mxu0 0.0
        %1872 = vmatprep.subr.mxu0 0.0
        %1873 = vmatpush1.msra.mxu0 0.0
        %1874 = vmatprep.subr.mxu0 0.0
        %1875 = vmatpush1.msra.mxu0 0.0
        %1876 = vmatprep.subr.mxu0 0.0
        %1877 = vmatpush1.msra.mxu0 0.0
        %1878 = vmatprep.subr.mxu0 0.0
        %1879 = vmatpush1.msra.mxu0 0.0
        %1880 = vmatprep.subr.mxu0 0.0
        %1881 = vmatpush1.msra.mxu0 0.0
        %1882 = vmatprep.subr.mxu0 0.0
        %1883 = vmatpush1.msra.mxu0 0.0
        %1884 = vmatprep.subr.mxu0 0.0
        %1885 = vmatpush1.msra.mxu0 0.0
        %1886 = vmatprep.subr.mxu0 0.0
        %1887 = vmatpush1.msra.mxu0 0.0
        %1888 = vmatprep.subr.mxu0 0.0
        %1889 = vmatpush1.msra.mxu0 0.0
        %1890 = vmatprep.subr.mxu0 0.0
        %1891 = vmatpush1.msra.mxu0 0.0
        %1892 = vmatprep.subr.mxu0 0.0
        %1893 = vmatpush1.msra.mxu0 0.0
        %1894 = vmatprep.subr.mxu0 0.0
        %1895 = vmatpush1.msra.mxu0 0.0
        %1896 = vmatprep.subr.mxu0 0.0
        %1897 = vmatpush1.msra.mxu0 0.0
        %1898 = vmatprep.subr.mxu0 0.0
        %1899 = vmatpush1.msra.mxu0 0.0
        %1900 = vmatprep.subr.mxu0 0.0
        %1901 = vmatpush1.msra.mxu0 0.0
        %1902 = vmatprep.subr.mxu0 0.0
        %1903 = vmatpush1.msra.mxu0 0.0
        %1904 = vmatprep.subr.mxu0 0.0
        %1905 = vmatpush1.msra.mxu0 0.0
        %1906 = vmatprep.subr.mxu0 0.0
        %1907 = vmatpush1.msra.mxu0 0.0
        %1908 = vmatprep.subr.mxu0 0.0
        %1909 = vmatpush1.msra.mxu0 0.0
        %1910 = vmatprep.subr.mxu0 0.0
        %1911 = vmatpush1.msra.mxu0 0.0
        %1912 = vmatprep.subr.mxu0 0.0
        %1913 = vmatpush1.msra.mxu0 0.0
        %1914 = vmatprep.subr.mxu0 0.0
        %1915 = vmatpush1.msra.mxu0 0.0
        %1916 = vmatprep.subr.mxu0 0.0
        %1917 = vmatpush1.msra.mxu0 0.0
        %1918 = vmatprep.subr.mxu0 0.0
        %1919 = vmatpush1.msra.mxu0 0.0
        %1920 = vmatprep.subr.mxu0 0.0
        %1921 = vmatpush1.msra.mxu0 0.0
        %1922 = vmatprep.subr.mxu0 0.0
        %1923 = vmatpush1.msra.mxu0 0.0
        %1924 = vmatprep.subr.mxu0 0.0
        %1925 = vmatpush1.msra.mxu0 0.0
        %1926 = vmatprep.subr.mxu0 0.0
        %1927 = vmatpush1.msra.mxu0 0.0
        %1928 = vmatprep.subr.mxu0 0.0
        %1929 = vmatpush1.msra.mxu0 0.0
        %1930 = vmatprep.subr.mxu0 0.0
        %1931 = vmatpush1.msra.mxu0 0.0
        %1932 = vmatprep.mubr.f32.mxu0 0.0
        %1933 = vmatmul.mubr.f32.gmra.mrb[0].mxu0 %v1866
        %v1934 = vpop.f32.mrb[0].mxu0
        %v1935 = vadd.f32 0.0, %v1934
        %v1936 = vpop.f32.mrb[0].mxu0
        %1937 = vdwg.mxu0
        %v1939 = vsel %vm1366, %v1714, 0
        %1941 = vmatprep.subr.mxu0 0.0
        %1942 = vmatpush1.msra.mxu0 %v1718
        %1943 = vmatprep.subr.mxu0 0.0
        %1944 = vmatpush1.msra.mxu0 0.0
        %1945 = vmatprep.subr.mxu0 0.0
        %1946 = vmatpush1.msra.mxu0 0.0
        %1947 = vmatprep.subr.mxu0 0.0
        %1948 = vmatpush1.msra.mxu0 0.0
        %1949 = vmatprep.subr.mxu0 0.0
        %1950 = vmatpush1.msra.mxu0 0.0
        %1951 = vmatprep.subr.mxu0 0.0
        %1952 = vmatpush1.msra.mxu0 0.0
        %1953 = vmatprep.subr.mxu0 0.0
        %1954 = vmatpush1.msra.mxu0 0.0
        %1955 = vmatprep.subr.mxu0 0.0
        %1956 = vmatpush1.msra.mxu0 0.0
        %1957 = vmatprep.subr.mxu0 0.0
        %1958 = vmatpush1.msra.mxu0 0.0
        %1959 = vmatprep.subr.mxu0 0.0
        %1960 = vmatpush1.msra.mxu0 0.0
        %1961 = vmatprep.subr.mxu0 0.0
        %1962 = vmatpush1.msra.mxu0 0.0
        %1963 = vmatprep.subr.mxu0 0.0
        %1964 = vmatpush1.msra.mxu0 0.0
        %1965 = vmatprep.subr.mxu0 0.0
        %1966 = vmatpush1.msra.mxu0 0.0
        %1967 = vmatprep.subr.mxu0 0.0
        %1968 = vmatpush1.msra.mxu0 0.0
        %1969 = vmatprep.subr.mxu0 0.0
        %1970 = vmatpush1.msra.mxu0 0.0
        %1971 = vmatprep.subr.mxu0 0.0
        %1972 = vmatpush1.msra.mxu0 0.0
        %1973 = vmatprep.subr.mxu0 0.0
        %1974 = vmatpush1.msra.mxu0 0.0
        %1975 = vmatprep.subr.mxu0 0.0
        %1976 = vmatpush1.msra.mxu0 0.0
        %1977 = vmatprep.subr.mxu0 0.0
        %1978 = vmatpush1.msra.mxu0 0.0
        %1979 = vmatprep.subr.mxu0 0.0
        %1980 = vmatpush1.msra.mxu0 0.0
        %1981 = vmatprep.subr.mxu0 0.0
        %1982 = vmatpush1.msra.mxu0 0.0
        %1983 = vmatprep.subr.mxu0 0.0
        %1984 = vmatpush1.msra.mxu0 0.0
        %1985 = vmatprep.subr.mxu0 0.0
        %1986 = vmatpush1.msra.mxu0 0.0
        %1987 = vmatprep.subr.mxu0 0.0
        %1988 = vmatpush1.msra.mxu0 0.0
        %1989 = vmatprep.subr.mxu0 0.0
        %1990 = vmatpush1.msra.mxu0 0.0
        %1991 = vmatprep.subr.mxu0 0.0
        %1992 = vmatpush1.msra.mxu0 0.0
        %1993 = vmatprep.subr.mxu0 0.0
        %1994 = vmatpush1.msra.mxu0 0.0
        %1995 = vmatprep.subr.mxu0 0.0
        %1996 = vmatpush1.msra.mxu0 0.0
        %1997 = vmatprep.subr.mxu0 0.0
        %1998 = vmatpush1.msra.mxu0 0.0
        %1999 = vmatprep.subr.mxu0 0.0
        %2000 = vmatpush1.msra.mxu0 0.0
        %2001 = vmatprep.subr.mxu0 0.0
        %2002 = vmatpush1.msra.mxu0 0.0
        %2003 = vmatprep.subr.mxu0 0.0
        %2004 = vmatpush1.msra.mxu0 0.0
        %2005 = vmatprep.mubr.f32.mxu0 0.0
        %2006 = vmatmul.mubr.f32.gmra.mrb[0].mxu0 %v1939
        %v2007 = vpop.f32.mrb[0].mxu0
        %v2008 = vadd.f32 0.0, %v2007
        %v2009 = vpop.f32.mrb[0].mxu0
        %2010 = vdwg.mxu0
        %v2011 = vld [vmem:[#allocation7] sm:$0xff]
        %v2012 = vld [vmem:[#allocation7 + $0x8] sm:$0xff]
        %v2013 = vld [vmem:[#allocation7 + $0x10] sm:$0xff]
        %v2014 = vld [vmem:[#allocation7 + $0x18] sm:$0xff]
        %v2016 = vsel %vm1366, %v1789, 0
        %2018 = vmatprep.subr.mxu0 0.0
        %2019 = vmatpush1.msra.mxu0 %v2011
        %2020 = vmatprep.subr.mxu0 0.0
        %2021 = vmatpush1.msra.mxu0 0.0
        %2022 = vmatprep.subr.mxu0 0.0
        %2023 = vmatpush1.msra.mxu0 0.0
        %2024 = vmatprep.subr.mxu0 0.0
        %2025 = vmatpush1.msra.mxu0 0.0
        %2026 = vmatprep.subr.mxu0 0.0
        %2027 = vmatpush1.msra.mxu0 0.0
        %2028 = vmatprep.subr.mxu0 0.0
        %2029 = vmatpush1.msra.mxu0 0.0
        %2030 = vmatprep.subr.mxu0 0.0
        %2031 = vmatpush1.msra.mxu0 0.0
        %2032 = vmatprep.subr.mxu0 0.0
        %2033 = vmatpush1.msra.mxu0 0.0
        %2034 = vmatprep.subr.mxu0 0.0
        %2035 = vmatpush1.msra.mxu0 0.0
        %2036 = vmatprep.subr.mxu0 0.0
        %2037 = vmatpush1.msra.mxu0 0.0
        %2038 = vmatprep.subr.mxu0 0.0
        %2039 = vmatpush1.msra.mxu0 0.0
        %2040 = vmatprep.subr.mxu0 0.0
        %2041 = vmatpush1.msra.mxu0 0.0
        %2042 = vmatprep.subr.mxu0 0.0
        %2043 = vmatpush1.msra.mxu0 0.0
        %2044 = vmatprep.subr.mxu0 0.0
        %2045 = vmatpush1.msra.mxu0 0.0
        %2046 = vmatprep.subr.mxu0 0.0
        %2047 = vmatpush1.msra.mxu0 0.0
        %2048 = vmatprep.subr.mxu0 0.0
        %2049 = vmatpush1.msra.mxu0 0.0
        %2050 = vmatprep.subr.mxu0 0.0
        %2051 = vmatpush1.msra.mxu0 0.0
        %2052 = vmatprep.subr.mxu0 0.0
        %2053 = vmatpush1.msra.mxu0 0.0
        %2054 = vmatprep.subr.mxu0 0.0
        %2055 = vmatpush1.msra.mxu0 0.0
        %2056 = vmatprep.subr.mxu0 0.0
        %2057 = vmatpush1.msra.mxu0 0.0
        %2058 = vmatprep.subr.mxu0 0.0
        %2059 = vmatpush1.msra.mxu0 0.0
        %2060 = vmatprep.subr.mxu0 0.0
        %2061 = vmatpush1.msra.mxu0 0.0
        %2062 = vmatprep.subr.mxu0 0.0
        %2063 = vmatpush1.msra.mxu0 0.0
        %2064 = vmatprep.subr.mxu0 0.0
        %2065 = vmatpush1.msra.mxu0 0.0
        %2066 = vmatprep.subr.mxu0 0.0
        %2067 = vmatpush1.msra.mxu0 0.0
        %2068 = vmatprep.subr.mxu0 0.0
        %2069 = vmatpush1.msra.mxu0 0.0
        %2070 = vmatprep.subr.mxu0 0.0
        %2071 = vmatpush1.msra.mxu0 0.0
        %2072 = vmatprep.subr.mxu0 0.0
        %2073 = vmatpush1.msra.mxu0 0.0
        %2074 = vmatprep.subr.mxu0 0.0
        %2075 = vmatpush1.msra.mxu0 0.0
        %2076 = vmatprep.subr.mxu0 0.0
        %2077 = vmatpush1.msra.mxu0 0.0
        %2078 = vmatprep.subr.mxu0 0.0
        %2079 = vmatpush1.msra.mxu0 0.0
        %2080 = vmatprep.subr.mxu0 0.0
        %2081 = vmatpush1.msra.mxu0 0.0
        %2082 = vmatprep.mubr.f32.mxu0 0.0
        %2083 = vmatmul.mubr.f32.gmra.mrb[0].mxu0 %v2016
        %v2084 = vpop.f32.mrb[0].mxu0
        %v2085 = vadd.f32 0.0, %v2084
        %v2086 = vpop.f32.mrb[0].mxu0
        %2087 = vdwg.mxu0
        %v2089 = vsel %vm1366, %v1862, 0
        %2091 = vmatprep.subr.mxu0 0.0
        %2092 = vmatpush1.msra.mxu0 %v2012
        %2093 = vmatprep.subr.mxu0 0.0
        %2094 = vmatpush1.msra.mxu0 0.0
        %2095 = vmatprep.subr.mxu0 0.0
        %2096 = vmatpush1.msra.mxu0 0.0
        %2097 = vmatprep.subr.mxu0 0.0
        %2098 = vmatpush1.msra.mxu0 0.0
        %2099 = vmatprep.subr.mxu0 0.0
        %2100 = vmatpush1.msra.mxu0 0.0
        %2101 = vmatprep.subr.mxu0 0.0
        %2102 = vmatpush1.msra.mxu0 0.0
        %2103 = vmatprep.subr.mxu0 0.0
        %2104 = vmatpush1.msra.mxu0 0.0
        %2105 = vmatprep.subr.mxu0 0.0
        %2106 = vmatpush1.msra.mxu0 0.0
        %2107 = vmatprep.subr.mxu0 0.0
        %2108 = vmatpush1.msra.mxu0 0.0
        %2109 = vmatprep.subr.mxu0 0.0
        %2110 = vmatpush1.msra.mxu0 0.0
        %2111 = vmatprep.subr.mxu0 0.0
        %2112 = vmatpush1.msra.mxu0 0.0
        %2113 = vmatprep.subr.mxu0 0.0
        %2114 = vmatpush1.msra.mxu0 0.0
        %2115 = vmatprep.subr.mxu0 0.0
        %2116 = vmatpush1.msra.mxu0 0.0
        %2117 = vmatprep.subr.mxu0 0.0
        %2118 = vmatpush1.msra.mxu0 0.0
        %2119 = vmatprep.subr.mxu0 0.0
        %2120 = vmatpush1.msra.mxu0 0.0
        %2121 = vmatprep.subr.mxu0 0.0
        %2122 = vmatpush1.msra.mxu0 0.0
        %2123 = vmatprep.subr.mxu0 0.0
        %2124 = vmatpush1.msra.mxu0 0.0
        %2125 = vmatprep.subr.mxu0 0.0
        %2126 = vmatpush1.msra.mxu0 0.0
        %2127 = vmatprep.subr.mxu0 0.0
        %2128 = vmatpush1.msra.mxu0 0.0
        %2129 = vmatprep.subr.mxu0 0.0
        %2130 = vmatpush1.msra.mxu0 0.0
        %2131 = vmatprep.subr.mxu0 0.0
        %2132 = vmatpush1.msra.mxu0 0.0
        %2133 = vmatprep.subr.mxu0 0.0
        %2134 = vmatpush1.msra.mxu0 0.0
        %2135 = vmatprep.subr.mxu0 0.0
        %2136 = vmatpush1.msra.mxu0 0.0
        %2137 = vmatprep.subr.mxu0 0.0
        %2138 = vmatpush1.msra.mxu0 0.0
        %2139 = vmatprep.subr.mxu0 0.0
        %2140 = vmatpush1.msra.mxu0 0.0
        %2141 = vmatprep.subr.mxu0 0.0
        %2142 = vmatpush1.msra.mxu0 0.0
        %2143 = vmatprep.subr.mxu0 0.0
        %2144 = vmatpush1.msra.mxu0 0.0
        %2145 = vmatprep.subr.mxu0 0.0
        %2146 = vmatpush1.msra.mxu0 0.0
        %2147 = vmatprep.subr.mxu0 0.0
        %2148 = vmatpush1.msra.mxu0 0.0
        %2149 = vmatprep.subr.mxu0 0.0
        %2150 = vmatpush1.msra.mxu0 0.0
        %2151 = vmatprep.subr.mxu0 0.0
        %2152 = vmatpush1.msra.mxu0 0.0
        %2153 = vmatprep.subr.mxu0 0.0
        %2154 = vmatpush1.msra.mxu0 0.0
        %2155 = vmatprep.mubr.f32.mxu0 0.0
        %2156 = vmatmul.mubr.f32.gmra.mrb[0].mxu0 %v2089
        %v2157 = vpop.f32.mrb[0].mxu0
        %v2158 = vadd.f32 0.0, %v2157
        %v2159 = vpop.f32.mrb[0].mxu0
        %2160 = vdwg.mxu0
        %v2162 = vsel %vm1366, %v1935, 0
        %2164 = vmatprep.subr.mxu0 0.0
        %2165 = vmatpush1.msra.mxu0 %v2013
        %2166 = vmatprep.subr.mxu0 0.0
        %2167 = vmatpush1.msra.mxu0 0.0
        %2168 = vmatprep.subr.mxu0 0.0
        %2169 = vmatpush1.msra.mxu0 0.0
        %2170 = vmatprep.subr.mxu0 0.0
        %2171 = vmatpush1.msra.mxu0 0.0
        %2172 = vmatprep.subr.mxu0 0.0
        %2173 = vmatpush1.msra.mxu0 0.0
        %2174 = vmatprep.subr.mxu0 0.0
        %2175 = vmatpush1.msra.mxu0 0.0
        %2176 = vmatprep.subr.mxu0 0.0
        %2177 = vmatpush1.msra.mxu0 0.0
        %2178 = vmatprep.subr.mxu0 0.0
        %2179 = vmatpush1.msra.mxu0 0.0
        %2180 = vmatprep.subr.mxu0 0.0
        %2181 = vmatpush1.msra.mxu0 0.0
        %2182 = vmatprep.subr.mxu0 0.0
        %2183 = vmatpush1.msra.mxu0 0.0
        %2184 = vmatprep.subr.mxu0 0.0
        %2185 = vmatpush1.msra.mxu0 0.0
        %2186 = vmatprep.subr.mxu0 0.0
        %2187 = vmatpush1.msra.mxu0 0.0
        %2188 = vmatprep.subr.mxu0 0.0
        %2189 = vmatpush1.msra.mxu0 0.0
        %2190 = vmatprep.subr.mxu0 0.0
        %2191 = vmatpush1.msra.mxu0 0.0
        %2192 = vmatprep.subr.mxu0 0.0
        %2193 = vmatpush1.msra.mxu0 0.0
        %2194 = vmatprep.subr.mxu0 0.0
        %2195 = vmatpush1.msra.mxu0 0.0
        %2196 = vmatprep.subr.mxu0 0.0
        %2197 = vmatpush1.msra.mxu0 0.0
        %2198 = vmatprep.subr.mxu0 0.0
        %2199 = vmatpush1.msra.mxu0 0.0
        %2200 = vmatprep.subr.mxu0 0.0
        %2201 = vmatpush1.msra.mxu0 0.0
        %2202 = vmatprep.subr.mxu0 0.0
        %2203 = vmatpush1.msra.mxu0 0.0
        %2204 = vmatprep.subr.mxu0 0.0
        %2205 = vmatpush1.msra.mxu0 0.0
        %2206 = vmatprep.subr.mxu0 0.0
        %2207 = vmatpush1.msra.mxu0 0.0
        %2208 = vmatprep.subr.mxu0 0.0
        %2209 = vmatpush1.msra.mxu0 0.0
        %2210 = vmatprep.subr.mxu0 0.0
        %2211 = vmatpush1.msra.mxu0 0.0
        %2212 = vmatprep.subr.mxu0 0.0
        %2213 = vmatpush1.msra.mxu0 0.0
        %2214 = vmatprep.subr.mxu0 0.0
        %2215 = vmatpush1.msra.mxu0 0.0
        %2216 = vmatprep.subr.mxu0 0.0
        %2217 = vmatpush1.msra.mxu0 0.0
        %2218 = vmatprep.subr.mxu0 0.0
        %2219 = vmatpush1.msra.mxu0 0.0
        %2220 = vmatprep.subr.mxu0 0.0
        %2221 = vmatpush1.msra.mxu0 0.0
        %2222 = vmatprep.subr.mxu0 0.0
        %2223 = vmatpush1.msra.mxu0 0.0
        %2224 = vmatprep.subr.mxu0 0.0
        %2225 = vmatpush1.msra.mxu0 0.0
        %2226 = vmatprep.subr.mxu0 0.0
        %2227 = vmatpush1.msra.mxu0 0.0
        %2228 = vmatprep.mubr.f32.mxu0 0.0
        %2229 = vmatmul.mubr.f32.gmra.mrb[0].mxu0 %v2162
        %v2230 = vpop.f32.mrb[0].mxu0
        %v2231 = vadd.f32 0.0, %v2230
        %v2232 = vpop.f32.mrb[0].mxu0
        %2233 = vdwg.mxu0
        %v2235 = vsel %vm1366, %v2008, 0
        %2237 = vmatprep.subr.mxu0 0.0
        %2238 = vmatpush1.msra.mxu0 %v2014
        %2239 = vmatprep.subr.mxu0 0.0
        %2240 = vmatpush1.msra.mxu0 0.0
        %2241 = vmatprep.subr.mxu0 0.0
        %2242 = vmatpush1.msra.mxu0 0.0
        %2243 = vmatprep.subr.mxu0 0.0
        %2244 = vmatpush1.msra.mxu0 0.0
        %2245 = vmatprep.subr.mxu0 0.0
        %2246 = vmatpush1.msra.mxu0 0.0
        %2247 = vmatprep.subr.mxu0 0.0
        %2248 = vmatpush1.msra.mxu0 0.0
        %2249 = vmatprep.subr.mxu0 0.0
        %2250 = vmatpush1.msra.mxu0 0.0
        %2251 = vmatprep.subr.mxu0 0.0
        %2252 = vmatpush1.msra.mxu0 0.0
        %2253 = vmatprep.subr.mxu0 0.0
        %2254 = vmatpush1.msra.mxu0 0.0
        %2255 = vmatprep.subr.mxu0 0.0
        %2256 = vmatpush1.msra.mxu0 0.0
        %2257 = vmatprep.subr.mxu0 0.0
        %2258 = vmatpush1.msra.mxu0 0.0
        %2259 = vmatprep.subr.mxu0 0.0
        %2260 = vmatpush1.msra.mxu0 0.0
        %2261 = vmatprep.subr.mxu0 0.0
        %2262 = vmatpush1.msra.mxu0 0.0
        %2263 = vmatprep.subr.mxu0 0.0
        %2264 = vmatpush1.msra.mxu0 0.0
        %2265 = vmatprep.subr.mxu0 0.0
        %2266 = vmatpush1.msra.mxu0 0.0
        %2267 = vmatprep.subr.mxu0 0.0
        %2268 = vmatpush1.msra.mxu0 0.0
        %2269 = vmatprep.subr.mxu0 0.0
        %2270 = vmatpush1.msra.mxu0 0.0
        %2271 = vmatprep.subr.mxu0 0.0
        %2272 = vmatpush1.msra.mxu0 0.0
        %2273 = vmatprep.subr.mxu0 0.0
        %2274 = vmatpush1.msra.mxu0 0.0
        %2275 = vmatprep.subr.mxu0 0.0
        %2276 = vmatpush1.msra.mxu0 0.0
        %2277 = vmatprep.subr.mxu0 0.0
        %2278 = vmatpush1.msra.mxu0 0.0
        %2279 = vmatprep.subr.mxu0 0.0
        %2280 = vmatpush1.msra.mxu0 0.0
        %2281 = vmatprep.subr.mxu0 0.0
        %2282 = vmatpush1.msra.mxu0 0.0
        %2283 = vmatprep.subr.mxu0 0.0
        %2284 = vmatpush1.msra.mxu0 0.0
        %2285 = vmatprep.subr.mxu0 0.0
        %2286 = vmatpush1.msra.mxu0 0.0
        %2287 = vmatprep.subr.mxu0 0.0
        %2288 = vmatpush1.msra.mxu0 0.0
        %2289 = vmatprep.subr.mxu0 0.0
        %2290 = vmatpush1.msra.mxu0 0.0
        %2291 = vmatprep.subr.mxu0 0.0
        %2292 = vmatpush1.msra.mxu0 0.0
        %2293 = vmatprep.subr.mxu0 0.0
        %2294 = vmatpush1.msra.mxu0 0.0
        %2295 = vmatprep.subr.mxu0 0.0
        %2296 = vmatpush1.msra.mxu0 0.0
        %2297 = vmatprep.subr.mxu0 0.0
        %2298 = vmatpush1.msra.mxu0 0.0
        %2299 = vmatprep.subr.mxu0 0.0
        %2300 = vmatpush1.msra.mxu0 0.0
        %2301 = vmatprep.mubr.f32.mxu0 0.0
        %2302 = vmatmul.mubr.f32.gmra.mrb[0].mxu0 %v2235
        %v2303 = vpop.f32.mrb[0].mxu0
        %v2304 = vadd.f32 0.0, %v2303
        %v2305 = vpop.f32.mrb[0].mxu0
        %2306 = vdwg.mxu0
        %v2307 = vadd.f32 %v2085, %v2158
        %v2308 = vadd.f32 %v2307, %v2231
        %v2309 = vadd.f32 %v2308, %v2304
        %v2310 = vld [vmem:[%s9] sm:$0x1]
        %v2312 = vlaneseq
        %v2313 = vshrl.u32 %v2312, 7
        %v2314 = vsub.s32 0, %v2313
        %v2315 = vrot.slane %v2310, %v2314
        %v2317 = vadd.f32 %v2309, %v2315
        %v2318 = vadd.f32 %v2317, %v1122
        %v2319 = vsel %vm1135, %v2318, 0.0
        %2320 = vadd.xlane.f32.xlu0 %v2319
        %v2321 = vpop.xlane.xlu0 %2320
        %v2322 = vrcp.pop 32.0
        %v2323 = vmul.f32 %v2321, %v2322
        %v2324 = vsub.f32 %v2318, %v2323
        %v2325 = vmul.f32 %v2324, %v2324
        %v2326 = vsel %vm1135, %v2325, 0.0
        %2327 = vadd.xlane.f32.xlu0 %v2326
        %v2328 = vpop.xlane.xlu0 %2327
        %v2329 = vmul.f32 %v2328, %v2322
        %v2330 = vadd.f32 %v2329, 1e-12
        %v2331 = vrsqrt.pop %v2330
        %v2332 = vmul.f32 %v2324, %v2331
        %v2333 = vld [vmem:[%s10] sm:$0x1]
        %v2335 = vlaneseq
        %v2336 = vshrl.u32 %v2335, 7
        %v2337 = vsub.s32 0, %v2336
        %v2338 = vrot.slane %v2333, %v2337
        %v2340 = vmul.f32 %v2338, %v2332
        %v2341 = vld [vmem:[%s11] sm:$0x1]
        %v2343 = vlaneseq
        %v2344 = vshrl.u32 %v2343, 7
        %v2345 = vsub.s32 0, %v2344
        %v2346 = vrot.slane %v2341, %v2345
        %v2348 = vadd.f32 %v2340, %v2346
        %v2349 = vld [vmem:[#allocation9] sm:$0xff]
        %v2350 = vld [vmem:[#allocation9 + $0x8] sm:$0xff]
        %v2351 = vld [vmem:[#allocation9 + $0x10] sm:$0xff]
        %v2352 = vld [vmem:[#allocation9 + $0x18] sm:$0xff]
        %v2353 = vld [vmem:[%s13] sm:$0x1]
        %v2355 = vlaneseq
        %v2356 = vshrl.u32 %v2355, 7
        %v2357 = vsub.s32 0, %v2356
        %v2358 = vrot.slane %v2353, %v2357
        %v2361 = vsel %vm1135, %v2348, 0
        %2363 = vmatprep.subr.mxu0 0.0
        %2364 = vmatpush1.msra.mxu0 %v2349
        %2365 = vmatprep.subr.mxu0 0.0
        %2366 = vmatpush1.msra.mxu0 %v2350
        %2367 = vmatprep.subr.mxu0 0.0
        %2368 = vmatpush1.msra.mxu0 %v2351
        %2369 = vmatprep.subr.mxu0 0.0
        %2370 = vmatpush1.msra.mxu0 %v2352
        %2371 = vmatprep.subr.mxu0 0.0
        %2372 = vmatpush1.msra.mxu0 0.0
        %2373 = vmatprep.subr.mxu0 0.0
        %2374 = vmatpush1.msra.mxu0 0.0
        %2375 = vmatprep.subr.mxu0 0.0
        %2376 = vmatpush1.msra.mxu0 0.0
        %2377 = vmatprep.subr.mxu0 0.0
        %2378 = vmatpush1.msra.mxu0 0.0
        %2379 = vmatprep.subr.mxu0 0.0
        %2380 = vmatpush1.msra.mxu0 0.0
        %2381 = vmatprep.subr.mxu0 0.0
        %2382 = vmatpush1.msra.mxu0 0.0
        %2383 = vmatprep.subr.mxu0 0.0
        %2384 = vmatpush1.msra.mxu0 0.0
        %2385 = vmatprep.subr.mxu0 0.0
        %2386 = vmatpush1.msra.mxu0 0.0
        %2387 = vmatprep.subr.mxu0 0.0
        %2388 = vmatpush1.msra.mxu0 0.0
        %2389 = vmatprep.subr.mxu0 0.0
        %2390 = vmatpush1.msra.mxu0 0.0
        %2391 = vmatprep.subr.mxu0 0.0
        %2392 = vmatpush1.msra.mxu0 0.0
        %2393 = vmatprep.subr.mxu0 0.0
        %2394 = vmatpush1.msra.mxu0 0.0
        %2395 = vmatprep.subr.mxu0 0.0
        %2396 = vmatpush1.msra.mxu0 0.0
        %2397 = vmatprep.subr.mxu0 0.0
        %2398 = vmatpush1.msra.mxu0 0.0
        %2399 = vmatprep.subr.mxu0 0.0
        %2400 = vmatpush1.msra.mxu0 0.0
        %2401 = vmatprep.subr.mxu0 0.0
        %2402 = vmatpush1.msra.mxu0 0.0
        %2403 = vmatprep.subr.mxu0 0.0
        %2404 = vmatpush1.msra.mxu0 0.0
        %2405 = vmatprep.subr.mxu0 0.0
        %2406 = vmatpush1.msra.mxu0 0.0
        %2407 = vmatprep.subr.mxu0 0.0
        %2408 = vmatpush1.msra.mxu0 0.0
        %2409 = vmatprep.subr.mxu0 0.0
        %2410 = vmatpush1.msra.mxu0 0.0
        %2411 = vmatprep.subr.mxu0 0.0
        %2412 = vmatpush1.msra.mxu0 0.0
        %2413 = vmatprep.subr.mxu0 0.0
        %2414 = vmatpush1.msra.mxu0 0.0
        %2415 = vmatprep.subr.mxu0 0.0
        %2416 = vmatpush1.msra.mxu0 0.0
        %2417 = vmatprep.subr.mxu0 0.0
        %2418 = vmatpush1.msra.mxu0 0.0
        %2419 = vmatprep.subr.mxu0 0.0
        %2420 = vmatpush1.msra.mxu0 0.0
        %2421 = vmatprep.subr.mxu0 0.0
        %2422 = vmatpush1.msra.mxu0 0.0
        %2423 = vmatprep.subr.mxu0 0.0
        %2424 = vmatpush1.msra.mxu0 0.0
        %2425 = vmatprep.subr.mxu0 0.0
        %2426 = vmatpush1.msra.mxu0 0.0
        %2427 = vmatprep.mubr.f32.mxu0 0.0
        %2428 = vmatmul.mubr.f32.gmra.mrb[0].mxu0 %v2361
        %v2429 = vpop.f32.mrb[0].mxu0
        %v2430 = vadd.f32 %v2358, %v2429
        %v2431 = vpop.f32.mrb[0].mxu0
        %2432 = vdwg.mxu0
        %v2433 = vmul.f32 %v2430, 0.5
        %v2434 = vmul.f32 %v2430, 0.70710677
        %v2435 = verf.f32.pop %v2434
        %v2436 = vadd.f32 %v2435, 1.0
        %v2437 = vmul.f32 %v2433, %v2436
        %v2438 = vld [vmem:[%s14] sm:$0xff]
        %v2439 = vld [vmem:[%s14 + $0x8] sm:$0xff]
        %v2440 = vld [vmem:[%s14 + $0x10] sm:$0xff]
        %v2441 = vld [vmem:[%s14 + $0x18] sm:$0xff]
        %v2442 = vld [vmem:[%s14 + $0x20] sm:$0xff]
        %v2443 = vld [vmem:[%s14 + $0x28] sm:$0xff]
        %v2444 = vld [vmem:[%s14 + $0x30] sm:$0xff]
        %v2445 = vld [vmem:[%s14 + $0x38] sm:$0xff]
        %v2446 = vld [vmem:[%s15] sm:$0x1]
        %v2448 = vlaneseq
        %v2449 = vshrl.u32 %v2448, 7
        %v2450 = vsub.s32 0, %v2449
        %v2451 = vrot.slane %v2446, %v2450
        %vm2453 = vcmask 523264
        %v2455 = vsel %vm2453, %v2437, 0
        %2457 = vmatprep.subr.mxu0 0.0
        %2458 = vmatpush1.msra.mxu0 %v2438
        %2459 = vmatprep.subr.mxu0 0.0
        %2460 = vmatpush1.msra.mxu0 %v2439
        %2461 = vmatprep.subr.mxu0 0.0
        %2462 = vmatpush1.msra.mxu0 %v2440
        %2463 = vmatprep.subr.mxu0 0.0
        %2464 = vmatpush1.msra.mxu0 %v2441
        %2465 = vmatprep.subr.mxu0 0.0
        %2466 = vmatpush1.msra.mxu0 %v2442
        %2467 = vmatprep.subr.mxu0 0.0
        %2468 = vmatpush1.msra.mxu0 %v2443
        %2469 = vmatprep.subr.mxu0 0.0
        %2470 = vmatpush1.msra.mxu0 %v2444
        %2471 = vmatprep.subr.mxu0 0.0
        %2472 = vmatpush1.msra.mxu0 %v2445
        %2473 = vmatprep.subr.mxu0 0.0
        %2474 = vmatpush1.msra.mxu0 0.0
        %2475 = vmatprep.subr.mxu0 0.0
        %2476 = vmatpush1.msra.mxu0 0.0
        %2477 = vmatprep.subr.mxu0 0.0
        %2478 = vmatpush1.msra.mxu0 0.0
        %2479 = vmatprep.subr.mxu0 0.0
        %2480 = vmatpush1.msra.mxu0 0.0
        %2481 = vmatprep.subr.mxu0 0.0
        %2482 = vmatpush1.msra.mxu0 0.0
        %2483 = vmatprep.subr.mxu0 0.0
        %2484 = vmatpush1.msra.mxu0 0.0
        %2485 = vmatprep.subr.mxu0 0.0
        %2486 = vmatpush1.msra.mxu0 0.0
        %2487 = vmatprep.subr.mxu0 0.0
        %2488 = vmatpush1.msra.mxu0 0.0
        %2489 = vmatprep.subr.mxu0 0.0
        %2490 = vmatpush1.msra.mxu0 0.0
        %2491 = vmatprep.subr.mxu0 0.0
        %2492 = vmatpush1.msra.mxu0 0.0
        %2493 = vmatprep.subr.mxu0 0.0
        %2494 = vmatpush1.msra.mxu0 0.0
        %2495 = vmatprep.subr.mxu0 0.0
        %2496 = vmatpush1.msra.mxu0 0.0
        %2497 = vmatprep.subr.mxu0 0.0
        %2498 = vmatpush1.msra.mxu0 0.0
        %2499 = vmatprep.subr.mxu0 0.0
        %2500 = vmatpush1.msra.mxu0 0.0
        %2501 = vmatprep.subr.mxu0 0.0
        %2502 = vmatpush1.msra.mxu0 0.0
        %2503 = vmatprep.subr.mxu0 0.0
        %2504 = vmatpush1.msra.mxu0 0.0
        %2505 = vmatprep.subr.mxu0 0.0
        %2506 = vmatpush1.msra.mxu0 0.0
        %2507 = vmatprep.subr.mxu0 0.0
        %2508 = vmatpush1.msra.mxu0 0.0
        %2509 = vmatprep.subr.mxu0 0.0
        %2510 = vmatpush1.msra.mxu0 0.0
        %2511 = vmatprep.subr.mxu0 0.0
        %2512 = vmatpush1.msra.mxu0 0.0
        %2513 = vmatprep.subr.mxu0 0.0
        %2514 = vmatpush1.msra.mxu0 0.0
        %2515 = vmatprep.subr.mxu0 0.0
        %2516 = vmatpush1.msra.mxu0 0.0
        %2517 = vmatprep.subr.mxu0 0.0
        %2518 = vmatpush1.msra.mxu0 0.0
        %2519 = vmatprep.subr.mxu0 0.0
        %2520 = vmatpush1.msra.mxu0 0.0
        %2521 = vmatprep.mubr.f32.mxu0 0.0
        %2522 = vmatmul.mubr.f32.gmra.mrb[0].mxu0 %v2455
        %v2523 = vpop.f32.mrb[0].mxu0
        %v2524 = vadd.f32 %v2451, %v2523
        %v2525 = vpop.f32.mrb[0].mxu0
        %2526 = vdwg.mxu0
        %v2527 = vadd.f32 %v2524, %v2348
        %v2528 = vsel %vm1135, %v2527, 0.0
        %2529 = vadd.xlane.f32.xlu0 %v2528
        %v2530 = vpop.xlane.xlu0 %2529
        %v2531 = vmul.f32 %v2530, %v2322
        %v2532 = vsub.f32 %v2527, %v2531
        %v2533 = vmul.f32 %v2532, %v2532
        %v2534 = vsel %vm1135, %v2533, 0.0
        %2535 = vadd.xlane.f32.xlu0 %v2534
        %v2536 = vpop.xlane.xlu0 %2535
        %v2537 = vmul.f32 %v2536, %v2322
        %v2538 = vadd.f32 %v2537, 1e-12
        %v2539 = vrsqrt.pop %v2538
        %v2540 = vmul.f32 %v2532, %v2539
        %v2541 = vld [vmem:[%s16] sm:$0x1]
        %v2543 = vlaneseq
        %v2544 = vshrl.u32 %v2543, 7
        %v2545 = vsub.s32 0, %v2544
        %v2546 = vrot.slane %v2541, %v2545
        %v2548 = vmul.f32 %v2546, %v2540
        %v2549 = vld [vmem:[%s17] sm:$0x1]
        %v2551 = vlaneseq
        %v2552 = vshrl.u32 %v2551, 7
        %v2553 = vsub.s32 0, %v2552
        %v2554 = vrot.slane %v2549, %v2553
        %v2556 = vadd.f32 %v2548, %v2554
        %2557 = vst.msk [vmem:[%s644] sm:$0xff] %vm1135, %v2556
        %s2558 = sand.u32 %s446, 1
        %s2559 = scalar_lea.sflag [#allocation6], %s2558
        %s2560 = sand.u32 %s446, 1
        %s2561 = smul.addr %s2560, 8
        %s2562 = scalar_lea.vmem [#allocation10], %s2561
        // Predicated region
        $region109: #{tpu_custom_call.1} parent=91 // pred_check
          %p2563 = pneg %p456
        $region110: #{tpu_custom_call.1} parent=91 // pred_check_branch
          %2565 = sbr.rel (%p2563) target = $region112
        $region111: #{tpu_custom_call.1} parent=91 // pred_region
          %s2567 = ssub.s32 128, 128
          %2568 = vsyncadd %s2559, %s2567
          %s2569 = sadd.s32 %s41, %s40
          %s2570 = smul.addr %s2569, 128
          %s2571 = scalar_lea.hbm %s18, %s2570
          %s2573 = sshll.u32 %s2562, 4
          %s2574 = int_to_ptr.vmem [resolvable:$true] %s2573
          %2576 = dma.vmem_to_hbm [thread:$0]  %s2574, 128, %s2571, %s2559
        $region112: #{tpu_custom_call.1} parent=91 // pred_fallthru
          _
      $region92: #{tpu_custom_call.1} parent=5 // pred_fallthru
        _
      %p2577 = scmp.le.s32.totalorder 2, %s31
      // Predicated region
      $region113: #{tpu_custom_call.1} parent=5 // pred_check
        %p2578 = pneg %p2577
      $region114: #{tpu_custom_call.1} parent=5 // pred_check_branch
        %2580 = sbr.rel (%p2578) target = $region116
      $region115: #{tpu_custom_call.1} parent=5 // pred_region
        %s2581 = ssub.s32 %s31, 2
        // Predicated region
        $region117: #{tpu_custom_call.1} parent=115 // pred_check
          %p2582 = pneg %p462
        $region118: #{tpu_custom_call.1} parent=115 // pred_check_branch
          %2584 = sbr.rel (%p2582) target = $region120
        $region119: #{tpu_custom_call.1} parent=115 // pred_region
          %s2585 = sand.u32 %s447, 1
          %s2586 = scalar_lea.sflag [#allocation6], %s2585
          %s2587 = sand.u32 %s447, 1
          %s2588 = smul.addr %s2587, 8
          %s2589 = scalar_lea.vmem [#allocation10], %s2588
          %2590 = dma.done %s2586, 128
        $region120: #{tpu_custom_call.1} parent=115 // pred_fallthru
          _
      $region116: #{tpu_custom_call.1} parent=5 // pred_fallthru
        _
    $region6: #{tpu_custom_call.1} parent=1 // loop_footer
      %s35 = sadd.s32 1, %s31
    $region7: #{tpu_custom_call.1} parent=1 // loop_footer_branch
      %30 = sbr.rel target = $region3
    $region8: #{tpu_custom_call.1} parent=1 // loop_exit
      _
    %2591 = vsyncpa [#allocation5], 1
    %s2592 = scalar_lea.sflag [#allocation5], 1
    %2593 = vsyncpa %s2592, 1
    %2594 = vsyncpa [#allocation8], 1
    %2595 = vsyncpa [#allocation6], 1
    %s2596 = scalar_lea.sflag [#allocation6], 1
    %2597 = vsyncpa %s2596, 1

</llo_original>
